<compile_context>
chip_gen: v6e
topology: v6e:2x2x1
jax: 0.10.0
libtpu: 0.0.40
codegen_flags: <defaults>
</compile_context>

<pallas_src>
import jax
import jax.numpy as jnp
from jax.experimental import pallas as pl
from jax.experimental.pallas import tpu as pltpu


def offset_head_kernel(w_ref, b_ref, x_ref, o_ref):
    # w_ref: VMEM (2, C)          -- 1x1 conv weight (out_ch, in_ch)
    # b_ref: VMEM (2, 1)          -- conv bias (column vector)
    # x_ref: VMEM (1, C, 2*TR, W) -- TR pooling row-pairs of the NCHW input
    # o_ref: VMEM (1, 2, TR, W2)  -- pooled + sigmoid output rows
    TR = o_ref.shape[2]
    W = x_ref.shape[3]
    W2 = o_ref.shape[3]

    w = w_ref[...]                       # (2, C)
    bias = b_ref[...]                    # (2, 1), lane-broadcast below

    # 0/1 selectors gathering even / odd columns: (rm @ ce)[o, k] == rm[o, 2k].
    j = jax.lax.broadcasted_iota(jnp.int32, (W, W2), 0)
    k = jax.lax.broadcasted_iota(jnp.int32, (W, W2), 1)
    ce = (j == 2 * k).astype(jnp.float32)
    co = (j == 2 * k + 1).astype(jnp.float32)

    for t in range(TR):                  # static unroll over row pairs in this tile
        xa = x_ref[0, :, 2 * t, :]       # (C, W)  input row 2t
        xb = x_ref[0, :, 2 * t + 1, :]   # (C, W)  input row 2t+1
        # 1x1 conv = contraction over C on the MXU, f32 accumulation.
        ya = jnp.dot(w, xa, preferred_element_type=jnp.float32)    # (2, W)
        yb = jnp.dot(w, xb, preferred_element_type=jnp.float32)    # (2, W)
        rmax = jnp.maximum(ya, yb)                                  # row-pair max
        # Column-pair max + compaction W -> W2 via selector matmuls (idle MXU).
        pooled = jnp.maximum(
            jnp.dot(rmax, ce, preferred_element_type=jnp.float32),
            jnp.dot(rmax, co, preferred_element_type=jnp.float32))  # (2, W2)
        # Bias is position-independent: add once after the max, then sigmoid.
        o_ref[0, :, t, :] = jax.nn.sigmoid(pooled + bias).astype(o_ref.dtype)


def _pick_tile_rows(h2, c, w, itemsize):
    """Output-row tile: multiple of 8 (or all of H2), sized so the double-buffered
    x block stays far below the VMEM limits of v5e / v6e / v7x."""
    if h2 % 8 != 0:
        return h2                         # tiny feature maps: one spatial step
    budget = 2 * 1024 * 1024              # per input block (x2 for double buffering)
    lanes = max(w, 128)                   # VMEM lane padding
    tile = 8
    while tile * 2 <= h2 and h2 % (tile * 2) == 0:
        if c * (4 * tile) * lanes * itemsize > budget:
            break
        tile *= 2
    return tile


def offset_head(x, w, b, *, tile_rows=None):
    """x: (B, C, H, W) NCHW; w: (2, C) 1x1-conv weight; b: (2,) bias."""
    B, C, H, W = x.shape
    assert H % 2 == 0 and W % 2 == 0
    H2, W2 = H // 2, W // 2
    if tile_rows is None:
        tile_rows = _pick_tile_rows(H2, C, W, jnp.dtype(x.dtype).itemsize)
    assert H2 % tile_rows == 0
    assert tile_rows % 8 == 0 or tile_rows == H2   # (8,128) block-tiling rule
    grid = (B, H2 // tile_rows)

    w2 = w.reshape(2, C)
    b2 = b.reshape(2, 1).astype(jnp.float32)

    return pl.pallas_call(
        offset_head_kernel,
        out_shape=jax.ShapeDtypeStruct((B, 2, H2, W2), x.dtype),
        grid=grid,
        in_specs=[
            pl.BlockSpec((2, C), lambda bi, ri: (0, 0)),                        # weight
            pl.BlockSpec((2, 1), lambda bi, ri: (0, 0)),                        # bias
            pl.BlockSpec((1, C, 2 * tile_rows, W), lambda bi, ri: (bi, 0, ri, 0)),
        ],
        out_specs=pl.BlockSpec((1, 2, tile_rows, W2), lambda bi, ri: (bi, 0, ri, 0)),
        compiler_params=pltpu.CompilerParams(
            dimension_semantics=("parallel", "parallel"),
            vmem_limit_bytes=32 * 1024 * 1024,
        ),
    )(w2, b2, x)


def offset_head_ref(x, w, b):
    # pure-JAX reference mirroring the PyTorch module
    y = jnp.einsum('bchw,oc->bohw', x, w,
                   precision=jax.lax.Precision.HIGHEST) + b[None, :, None, None]
    B, O, H, W = y.shape
    y = y.reshape(B, O, H // 2, 2, W // 2, 2).max(axis=(3, 5))
    return jax.nn.sigmoid(y)


if __name__ == "__main__":
    key = jax.random.PRNGKey(0)
    kx, kw, kb = jax.random.split(key, 3)
    B, C, H, W = 2, 4, 16, 16
    x = jax.random.normal(kx, (B, C, H, W), jnp.float32)
    # Conv2d(in_channels=C, out_channels=2, kernel_size=1) parameters
    # (weight stored as (2, C); the 1x1 spatial taps are squeezed).
    w = jax.random.normal(kw, (2, C), jnp.float32) * 0.1
    b = jax.random.normal(kb, (2,), jnp.float32) * 0.1

    out = offset_head(x, w, b)
    jax.block_until_ready(out)

    ref = offset_head_ref(x, w, b)
    assert out.shape == (B, 2, H // 2, W // 2)
    # MXU matmul accumulation / precision differs slightly from the XLA reference;
    # 2e-3 is a safe bound (observed error is ~1e-6).
    assert jnp.allclose(out, ref, atol=2e-3, rtol=2e-3)
    print("KERNEL_OK")
</pallas_src>

<mosaic_0001>
module attributes {stable_mosaic.version = 11 : i64} {
  func.func @offset_head_kernel(%arg0: i32, %arg1: i32, %arg2: memref<2x4xf32, #tpu.memory_space<vmem>>, %arg3: memref<2x1xf32, #tpu.memory_space<vmem>>, %arg4: memref<1x4x16x16xf32, #tpu.memory_space<vmem>>, %arg5: memref<1x2x8x8xf32, #tpu.memory_space<vmem>>) attributes {dimension_semantics = [#tpu.dimension_semantics<parallel>, #tpu.dimension_semantics<parallel>], iteration_bounds = array<i64: 2, 1>, scalar_prefetch = 0 : i64, scratch_operands = 0 : i64, tpu.core_type = #tpu.core_type<tc>, window_params = [{pipeline_mode = #tpu.pipeline_mode<synchronous>, transform_indices = @transform_0, window_bounds = array<i64: 2, 4>}, {pipeline_mode = #tpu.pipeline_mode<synchronous>, transform_indices = @transform_1, window_bounds = array<i64: 2, 1>}, {transform_indices = @transform_2, window_bounds = array<i64: 1, 4, 16, 16>}, {transform_indices = @transform_3, window_bounds = array<i64: 1, 2, 8, 8>}]} {
    %c0 = arith.constant 0 : index
    %c0_0 = arith.constant 0 : index
    %0 = vector.load %arg2[%c0, %c0_0] : memref<2x4xf32, #tpu.memory_space<vmem>>, vector<2x4xf32>
    %c0_1 = arith.constant 0 : index
    %c0_2 = arith.constant 0 : index
    %1 = vector.load %arg3[%c0_1, %c0_2] : memref<2x1xf32, #tpu.memory_space<vmem>>, vector<2x1xf32>
    %2 = tpu.iota {dimensions = array<i32: 0>} : vector<16x8xi32>
    %3 = tpu.iota {dimensions = array<i32: 1>} : vector<16x8xi32>
    %c2_i32 = arith.constant 2 : i32
    %4 = vector.broadcast %c2_i32 : i32 to vector<16x8xi32>
    %5 = arith.muli %4, %3 : vector<16x8xi32>
    %6 = arith.cmpi eq, %2, %5 : vector<16x8xi32>
    %7 = arith.extui %6 : vector<16x8xi1> to vector<16x8xi32>
    %8 = arith.sitofp %7 : vector<16x8xi32> to vector<16x8xf32>
    %c2_i32_3 = arith.constant 2 : i32
    %9 = vector.broadcast %c2_i32_3 : i32 to vector<16x8xi32>
    %10 = arith.muli %9, %3 : vector<16x8xi32>
    %c1_i32 = arith.constant 1 : i32
    %11 = vector.broadcast %c1_i32 : i32 to vector<16x8xi32>
    %12 = arith.addi %10, %11 : vector<16x8xi32>
    %13 = arith.cmpi eq, %2, %12 : vector<16x8xi32>
    %14 = arith.extui %13 : vector<16x8xi1> to vector<16x8xi32>
    %15 = arith.sitofp %14 : vector<16x8xi32> to vector<16x8xf32>
    %c0_4 = arith.constant 0 : index
    %c0_5 = arith.constant 0 : index
    %c0_6 = arith.constant 0 : index
    %c0_7 = arith.constant 0 : index
    %16 = vector.load %arg4[%c0_4, %c0_5, %c0_6, %c0_7] : memref<1x4x16x16xf32, #tpu.memory_space<vmem>>, vector<1x4x1x16xf32>
    %17 = vector.shape_cast %16 : vector<1x4x1x16xf32> to vector<4x16xf32>
    %c0_8 = arith.constant 0 : index
    %c0_9 = arith.constant 0 : index
    %c1 = arith.constant 1 : index
    %c0_10 = arith.constant 0 : index
    %18 = vector.load %arg4[%c0_8, %c0_9, %c1, %c0_10] : memref<1x4x16x16xf32, #tpu.memory_space<vmem>>, vector<1x4x1x16xf32>
    %19 = vector.shape_cast %18 : vector<1x4x1x16xf32> to vector<4x16xf32>
    %cst = arith.constant dense<0.000000e+00> : vector<2x16xf32>
    %20 = tpu.matmul %0, %17, %cst {dimension_numbers = #tpu.dot_dimension_numbers<[1], [0], [0], [1], [0, 0, 1, 1], [], []>} : vector<2x4xf32>, vector<4x16xf32>, vector<2x16xf32> -> vector<2x16xf32>
    %cst_11 = arith.constant dense<0.000000e+00> : vector<2x16xf32>
    %21 = tpu.matmul %0, %19, %cst_11 {dimension_numbers = #tpu.dot_dimension_numbers<[1], [0], [0], [1], [0, 0, 1, 1], [], []>} : vector<2x4xf32>, vector<4x16xf32>, vector<2x16xf32> -> vector<2x16xf32>
    %22 = arith.maximumf %20, %21 : vector<2x16xf32>
    %cst_12 = arith.constant dense<0.000000e+00> : vector<2x8xf32>
    %23 = tpu.matmul %22, %8, %cst_12 {dimension_numbers = #tpu.dot_dimension_numbers<[1], [0], [0], [1], [0, 0, 1, 1], [], []>} : vector<2x16xf32>, vector<16x8xf32>, vector<2x8xf32> -> vector<2x8xf32>
    %cst_13 = arith.constant dense<0.000000e+00> : vector<2x8xf32>
    %24 = tpu.matmul %22, %15, %cst_13 {dimension_numbers = #tpu.dot_dimension_numbers<[1], [0], [0], [1], [0, 0, 1, 1], [], []>} : vector<2x16xf32>, vector<16x8xf32>, vector<2x8xf32> -> vector<2x8xf32>
    %25 = arith.maximumf %23, %24 : vector<2x8xf32>
    %26 = vector.broadcast %1 : vector<2x1xf32> to vector<2x8xf32>
    %27 = arith.addf %25, %26 : vector<2x8xf32>
    %28 = arith.negf %27 : vector<2x8xf32>
    %29 = math.exp %28 : vector<2x8xf32>
    %cst_14 = arith.constant 1.000000e+00 : f32
    %30 = vector.broadcast %cst_14 : f32 to vector<2x8xf32>
    %31 = arith.addf %30, %29 : vector<2x8xf32>
    %32 = arith.divf %30, %31 : vector<2x8xf32>
    %c0_15 = arith.constant 0 : index
    %c0_16 = arith.constant 0 : index
    %c0_17 = arith.constant 0 : index
    %c0_18 = arith.constant 0 : index
    %33 = vector.load %arg5[%c0_15, %c0_16, %c0_17, %c0_18] : memref<1x2x8x8xf32, #tpu.memory_space<vmem>>, vector<1x2x1x8xf32>
    %34 = vector.shape_cast %33 : vector<1x2x1x8xf32> to vector<2x8xf32>
    %35 = vector.shape_cast %32 : vector<2x8xf32> to vector<1x2x1x8xf32>
    tpu.vector_store %arg5[%c0_15, %c0_16, %c0_17, %c0_18], %35 {strides = array<i32>} : memref<1x2x8x8xf32, #tpu.memory_space<vmem>>, vector<1x2x1x8xf32>,
    %c0_19 = arith.constant 0 : index
    %c0_20 = arith.constant 0 : index
    %c2 = arith.constant 2 : index
    %c0_21 = arith.constant 0 : index
    %36 = vector.load %arg4[%c0_19, %c0_20, %c2, %c0_21] : memref<1x4x16x16xf32, #tpu.memory_space<vmem>>, vector<1x4x1x16xf32>
    %37 = vector.shape_cast %36 : vector<1x4x1x16xf32> to vector<4x16xf32>
    %c0_22 = arith.constant 0 : index
    %c0_23 = arith.constant 0 : index
    %c3 = arith.constant 3 : index
    %c0_24 = arith.constant 0 : index
    %38 = vector.load %arg4[%c0_22, %c0_23, %c3, %c0_24] : memref<1x4x16x16xf32, #tpu.memory_space<vmem>>, vector<1x4x1x16xf32>
    %39 = vector.shape_cast %38 : vector<1x4x1x16xf32> to vector<4x16xf32>
    %cst_25 = arith.constant dense<0.000000e+00> : vector<2x16xf32>
    %40 = tpu.matmul %0, %37, %cst_25 {dimension_numbers = #tpu.dot_dimension_numbers<[1], [0], [0], [1], [0, 0, 1, 1], [], []>} : vector<2x4xf32>, vector<4x16xf32>, vector<2x16xf32> -> vector<2x16xf32>
    %cst_26 = arith.constant dense<0.000000e+00> : vector<2x16xf32>
    %41 = tpu.matmul %0, %39, %cst_26 {dimension_numbers = #tpu.dot_dimension_numbers<[1], [0], [0], [1], [0, 0, 1, 1], [], []>} : vector<2x4xf32>, vector<4x16xf32>, vector<2x16xf32> -> vector<2x16xf32>
    %42 = arith.maximumf %40, %41 : vector<2x16xf32>
    %cst_27 = arith.constant dense<0.000000e+00> : vector<2x8xf32>
    %43 = tpu.matmul %42, %8, %cst_27 {dimension_numbers = #tpu.dot_dimension_numbers<[1], [0], [0], [1], [0, 0, 1, 1], [], []>} : vector<2x16xf32>, vector<16x8xf32>, vector<2x8xf32> -> vector<2x8xf32>
    %cst_28 = arith.constant dense<0.000000e+00> : vector<2x8xf32>
    %44 = tpu.matmul %42, %15, %cst_28 {dimension_numbers = #tpu.dot_dimension_numbers<[1], [0], [0], [1], [0, 0, 1, 1], [], []>} : vector<2x16xf32>, vector<16x8xf32>, vector<2x8xf32> -> vector<2x8xf32>
    %45 = arith.maximumf %43, %44 : vector<2x8xf32>
    %46 = vector.broadcast %1 : vector<2x1xf32> to vector<2x8xf32>
    %47 = arith.addf %45, %46 : vector<2x8xf32>
    %48 = arith.negf %47 : vector<2x8xf32>
    %49 = math.exp %48 : vector<2x8xf32>
    %cst_29 = arith.constant 1.000000e+00 : f32
    %50 = vector.broadcast %cst_29 : f32 to vector<2x8xf32>
    %51 = arith.addf %50, %49 : vector<2x8xf32>
    %52 = arith.divf %50, %51 : vector<2x8xf32>
    %c0_30 = arith.constant 0 : index
    %c0_31 = arith.constant 0 : index
    %c1_32 = arith.constant 1 : index
    %c0_33 = arith.constant 0 : index
    %53 = vector.load %arg5[%c0_30, %c0_31, %c1_32, %c0_33] : memref<1x2x8x8xf32, #tpu.memory_space<vmem>>, vector<1x2x1x8xf32>
    %54 = vector.shape_cast %53 : vector<1x2x1x8xf32> to vector<2x8xf32>
    %55 = vector.shape_cast %52 : vector<2x8xf32> to vector<1x2x1x8xf32>
    tpu.vector_store %arg5[%c0_30, %c0_31, %c1_32, %c0_33], %55 {strides = array<i32>} : memref<1x2x8x8xf32, #tpu.memory_space<vmem>>, vector<1x2x1x8xf32>,
    %c0_34 = arith.constant 0 : index
    %c0_35 = arith.constant 0 : index
    %c4 = arith.constant 4 : index
    %c0_36 = arith.constant 0 : index
    %56 = vector.load %arg4[%c0_34, %c0_35, %c4, %c0_36] : memref<1x4x16x16xf32, #tpu.memory_space<vmem>>, vector<1x4x1x16xf32>
    %57 = vector.shape_cast %56 : vector<1x4x1x16xf32> to vector<4x16xf32>
    %c0_37 = arith.constant 0 : index
    %c0_38 = arith.constant 0 : index
    %c5 = arith.constant 5 : index
    %c0_39 = arith.constant 0 : index
    %58 = vector.load %arg4[%c0_37, %c0_38, %c5, %c0_39] : memref<1x4x16x16xf32, #tpu.memory_space<vmem>>, vector<1x4x1x16xf32>
    %59 = vector.shape_cast %58 : vector<1x4x1x16xf32> to vector<4x16xf32>
    %cst_40 = arith.constant dense<0.000000e+00> : vector<2x16xf32>
    %60 = tpu.matmul %0, %57, %cst_40 {dimension_numbers = #tpu.dot_dimension_numbers<[1], [0], [0], [1], [0, 0, 1, 1], [], []>} : vector<2x4xf32>, vector<4x16xf32>, vector<2x16xf32> -> vector<2x16xf32>
    %cst_41 = arith.constant dense<0.000000e+00> : vector<2x16xf32>
    %61 = tpu.matmul %0, %59, %cst_41 {dimension_numbers = #tpu.dot_dimension_numbers<[1], [0], [0], [1], [0, 0, 1, 1], [], []>} : vector<2x4xf32>, vector<4x16xf32>, vector<2x16xf32> -> vector<2x16xf32>
    %62 = arith.maximumf %60, %61 : vector<2x16xf32>
    %cst_42 = arith.constant dense<0.000000e+00> : vector<2x8xf32>
    %63 = tpu.matmul %62, %8, %cst_42 {dimension_numbers = #tpu.dot_dimension_numbers<[1], [0], [0], [1], [0, 0, 1, 1], [], []>} : vector<2x16xf32>, vector<16x8xf32>, vector<2x8xf32> -> vector<2x8xf32>
    %cst_43 = arith.constant dense<0.000000e+00> : vector<2x8xf32>
    %64 = tpu.matmul %62, %15, %cst_43 {dimension_numbers = #tpu.dot_dimension_numbers<[1], [0], [0], [1], [0, 0, 1, 1], [], []>} : vector<2x16xf32>, vector<16x8xf32>, vector<2x8xf32> -> vector<2x8xf32>
    %65 = arith.maximumf %63, %64 : vector<2x8xf32>
    %66 = vector.broadcast %1 : vector<2x1xf32> to vector<2x8xf32>
    %67 = arith.addf %65, %66 : vector<2x8xf32>
    %68 = arith.negf %67 : vector<2x8xf32>
    %69 = math.exp %68 : vector<2x8xf32>
    %cst_44 = arith.constant 1.000000e+00 : f32
    %70 = vector.broadcast %cst_44 : f32 to vector<2x8xf32>
    %71 = arith.addf %70, %69 : vector<2x8xf32>
    %72 = arith.divf %70, %71 : vector<2x8xf32>
    %c0_45 = arith.constant 0 : index
    %c0_46 = arith.constant 0 : index
    %c2_47 = arith.constant 2 : index
    %c0_48 = arith.constant 0 : index
    %73 = vector.load %arg5[%c0_45, %c0_46, %c2_47, %c0_48] : memref<1x2x8x8xf32, #tpu.memory_space<vmem>>, vector<1x2x1x8xf32>
    %74 = vector.shape_cast %73 : vector<1x2x1x8xf32> to vector<2x8xf32>
    %75 = vector.shape_cast %72 : vector<2x8xf32> to vector<1x2x1x8xf32>
    tpu.vector_store %arg5[%c0_45, %c0_46, %c2_47, %c0_48], %75 {strides = array<i32>} : memref<1x2x8x8xf32, #tpu.memory_space<vmem>>, vector<1x2x1x8xf32>,
    %c0_49 = arith.constant 0 : index
    %c0_50 = arith.constant 0 : index
    %c6 = arith.constant 6 : index
    %c0_51 = arith.constant 0 : index
    %76 = vector.load %arg4[%c0_49, %c0_50, %c6, %c0_51] : memref<1x4x16x16xf32, #tpu.memory_space<vmem>>, vector<1x4x1x16xf32>
    %77 = vector.shape_cast %76 : vector<1x4x1x16xf32> to vector<4x16xf32>
    %c0_52 = arith.constant 0 : index
    %c0_53 = arith.constant 0 : index
    %c7 = arith.constant 7 : index
    %c0_54 = arith.constant 0 : index
    %78 = vector.load %arg4[%c0_52, %c0_53, %c7, %c0_54] : memref<1x4x16x16xf32, #tpu.memory_space<vmem>>, vector<1x4x1x16xf32>
    %79 = vector.shape_cast %78 : vector<1x4x1x16xf32> to vector<4x16xf32>
    %cst_55 = arith.constant dense<0.000000e+00> : vector<2x16xf32>
    %80 = tpu.matmul %0, %77, %cst_55 {dimension_numbers = #tpu.dot_dimension_numbers<[1], [0], [0], [1], [0, 0, 1, 1], [], []>} : vector<2x4xf32>, vector<4x16xf32>, vector<2x16xf32> -> vector<2x16xf32>
    %cst_56 = arith.constant dense<0.000000e+00> : vector<2x16xf32>
    %81 = tpu.matmul %0, %79, %cst_56 {dimension_numbers = #tpu.dot_dimension_numbers<[1], [0], [0], [1], [0, 0, 1, 1], [], []>} : vector<2x4xf32>, vector<4x16xf32>, vector<2x16xf32> -> vector<2x16xf32>
    %82 = arith.maximumf %80, %81 : vector<2x16xf32>
    %cst_57 = arith.constant dense<0.000000e+00> : vector<2x8xf32>
    %83 = tpu.matmul %82, %8, %cst_57 {dimension_numbers = #tpu.dot_dimension_numbers<[1], [0], [0], [1], [0, 0, 1, 1], [], []>} : vector<2x16xf32>, vector<16x8xf32>, vector<2x8xf32> -> vector<2x8xf32>
    %cst_58 = arith.constant dense<0.000000e+00> : vector<2x8xf32>
    %84 = tpu.matmul %82, %15, %cst_58 {dimension_numbers = #tpu.dot_dimension_numbers<[1], [0], [0], [1], [0, 0, 1, 1], [], []>} : vector<2x16xf32>, vector<16x8xf32>, vector<2x8xf32> -> vector<2x8xf32>
    %85 = arith.maximumf %83, %84 : vector<2x8xf32>
    %86 = vector.broadcast %1 : vector<2x1xf32> to vector<2x8xf32>
    %87 = arith.addf %85, %86 : vector<2x8xf32>
    %88 = arith.negf %87 : vector<2x8xf32>
    %89 = math.exp %88 : vector<2x8xf32>
    %cst_59 = arith.constant 1.000000e+00 : f32
    %90 = vector.broadcast %cst_59 : f32 to vector<2x8xf32>
    %91 = arith.addf %90, %89 : vector<2x8xf32>
    %92 = arith.divf %90, %91 : vector<2x8xf32>
    %c0_60 = arith.constant 0 : index
    %c0_61 = arith.constant 0 : index
    %c3_62 = arith.constant 3 : index
    %c0_63 = arith.constant 0 : index
    %93 = vector.load %arg5[%c0_60, %c0_61, %c3_62, %c0_63] : memref<1x2x8x8xf32, #tpu.memory_space<vmem>>, vector<1x2x1x8xf32>
    %94 = vector.shape_cast %93 : vector<1x2x1x8xf32> to vector<2x8xf32>
    %95 = vector.shape_cast %92 : vector<2x8xf32> to vector<1x2x1x8xf32>
    tpu.vector_store %arg5[%c0_60, %c0_61, %c3_62, %c0_63], %95 {strides = array<i32>} : memref<1x2x8x8xf32, #tpu.memory_space<vmem>>, vector<1x2x1x8xf32>,
    %c0_64 = arith.constant 0 : index
    %c0_65 = arith.constant 0 : index
    %c8 = arith.constant 8 : index
    %c0_66 = arith.constant 0 : index
    %96 = vector.load %arg4[%c0_64, %c0_65, %c8, %c0_66] : memref<1x4x16x16xf32, #tpu.memory_space<vmem>>, vector<1x4x1x16xf32>
    %97 = vector.shape_cast %96 : vector<1x4x1x16xf32> to vector<4x16xf32>
    %c0_67 = arith.constant 0 : index
    %c0_68 = arith.constant 0 : index
    %c9 = arith.constant 9 : index
    %c0_69 = arith.constant 0 : index
    %98 = vector.load %arg4[%c0_67, %c0_68, %c9, %c0_69] : memref<1x4x16x16xf32, #tpu.memory_space<vmem>>, vector<1x4x1x16xf32>
    %99 = vector.shape_cast %98 : vector<1x4x1x16xf32> to vector<4x16xf32>
    %cst_70 = arith.constant dense<0.000000e+00> : vector<2x16xf32>
    %100 = tpu.matmul %0, %97, %cst_70 {dimension_numbers = #tpu.dot_dimension_numbers<[1], [0], [0], [1], [0, 0, 1, 1], [], []>} : vector<2x4xf32>, vector<4x16xf32>, vector<2x16xf32> -> vector<2x16xf32>
    %cst_71 = arith.constant dense<0.000000e+00> : vector<2x16xf32>
    %101 = tpu.matmul %0, %99, %cst_71 {dimension_numbers = #tpu.dot_dimension_numbers<[1], [0], [0], [1], [0, 0, 1, 1], [], []>} : vector<2x4xf32>, vector<4x16xf32>, vector<2x16xf32> -> vector<2x16xf32>
    %102 = arith.maximumf %100, %101 : vector<2x16xf32>
    %cst_72 = arith.constant dense<0.000000e+00> : vector<2x8xf32>
    %103 = tpu.matmul %102, %8, %cst_72 {dimension_numbers = #tpu.dot_dimension_numbers<[1], [0], [0], [1], [0, 0, 1, 1], [], []>} : vector<2x16xf32>, vector<16x8xf32>, vector<2x8xf32> -> vector<2x8xf32>
    %cst_73 = arith.constant dense<0.000000e+00> : vector<2x8xf32>
    %104 = tpu.matmul %102, %15, %cst_73 {dimension_numbers = #tpu.dot_dimension_numbers<[1], [0], [0], [1], [0, 0, 1, 1], [], []>} : vector<2x16xf32>, vector<16x8xf32>, vector<2x8xf32> -> vector<2x8xf32>
    %105 = arith.maximumf %103, %104 : vector<2x8xf32>
    %106 = vector.broadcast %1 : vector<2x1xf32> to vector<2x8xf32>
    %107 = arith.addf %105, %106 : vector<2x8xf32>
    %108 = arith.negf %107 : vector<2x8xf32>
    %109 = math.exp %108 : vector<2x8xf32>
    %cst_74 = arith.constant 1.000000e+00 : f32
    %110 = vector.broadcast %cst_74 : f32 to vector<2x8xf32>
    %111 = arith.addf %110, %109 : vector<2x8xf32>
    %112 = arith.divf %110, %111 : vector<2x8xf32>
    %c0_75 = arith.constant 0 : index
    %c0_76 = arith.constant 0 : index
    %c4_77 = arith.constant 4 : index
    %c0_78 = arith.constant 0 : index
    %113 = vector.load %arg5[%c0_75, %c0_76, %c4_77, %c0_78] : memref<1x2x8x8xf32, #tpu.memory_space<vmem>>, vector<1x2x1x8xf32>
    %114 = vector.shape_cast %113 : vector<1x2x1x8xf32> to vector<2x8xf32>
    %115 = vector.shape_cast %112 : vector<2x8xf32> to vector<1x2x1x8xf32>
    tpu.vector_store %arg5[%c0_75, %c0_76, %c4_77, %c0_78], %115 {strides = array<i32>} : memref<1x2x8x8xf32, #tpu.memory_space<vmem>>, vector<1x2x1x8xf32>,
    %c0_79 = arith.constant 0 : index
    %c0_80 = arith.constant 0 : index
    %c10 = arith.constant 10 : index
    %c0_81 = arith.constant 0 : index
    %116 = vector.load %arg4[%c0_79, %c0_80, %c10, %c0_81] : memref<1x4x16x16xf32, #tpu.memory_space<vmem>>, vector<1x4x1x16xf32>
    %117 = vector.shape_cast %116 : vector<1x4x1x16xf32> to vector<4x16xf32>
    %c0_82 = arith.constant 0 : index
    %c0_83 = arith.constant 0 : index
    %c11 = arith.constant 11 : index
    %c0_84 = arith.constant 0 : index
    %118 = vector.load %arg4[%c0_82, %c0_83, %c11, %c0_84] : memref<1x4x16x16xf32, #tpu.memory_space<vmem>>, vector<1x4x1x16xf32>
    %119 = vector.shape_cast %118 : vector<1x4x1x16xf32> to vector<4x16xf32>
    %cst_85 = arith.constant dense<0.000000e+00> : vector<2x16xf32>
    %120 = tpu.matmul %0, %117, %cst_85 {dimension_numbers = #tpu.dot_dimension_numbers<[1], [0], [0], [1], [0, 0, 1, 1], [], []>} : vector<2x4xf32>, vector<4x16xf32>, vector<2x16xf32> -> vector<2x16xf32>
    %cst_86 = arith.constant dense<0.000000e+00> : vector<2x16xf32>
    %121 = tpu.matmul %0, %119, %cst_86 {dimension_numbers = #tpu.dot_dimension_numbers<[1], [0], [0], [1], [0, 0, 1, 1], [], []>} : vector<2x4xf32>, vector<4x16xf32>, vector<2x16xf32> -> vector<2x16xf32>
    %122 = arith.maximumf %120, %121 : vector<2x16xf32>
    %cst_87 = arith.constant dense<0.000000e+00> : vector<2x8xf32>
    %123 = tpu.matmul %122, %8, %cst_87 {dimension_numbers = #tpu.dot_dimension_numbers<[1], [0], [0], [1], [0, 0, 1, 1], [], []>} : vector<2x16xf32>, vector<16x8xf32>, vector<2x8xf32> -> vector<2x8xf32>
    %cst_88 = arith.constant dense<0.000000e+00> : vector<2x8xf32>
    %124 = tpu.matmul %122, %15, %cst_88 {dimension_numbers = #tpu.dot_dimension_numbers<[1], [0], [0], [1], [0, 0, 1, 1], [], []>} : vector<2x16xf32>, vector<16x8xf32>, vector<2x8xf32> -> vector<2x8xf32>
    %125 = arith.maximumf %123, %124 : vector<2x8xf32>
    %126 = vector.broadcast %1 : vector<2x1xf32> to vector<2x8xf32>
    %127 = arith.addf %125, %126 : vector<2x8xf32>
    %128 = arith.negf %127 : vector<2x8xf32>
    %129 = math.exp %128 : vector<2x8xf32>
    %cst_89 = arith.constant 1.000000e+00 : f32
    %130 = vector.broadcast %cst_89 : f32 to vector<2x8xf32>
    %131 = arith.addf %130, %129 : vector<2x8xf32>
    %132 = arith.divf %130, %131 : vector<2x8xf32>
    %c0_90 = arith.constant 0 : index
    %c0_91 = arith.constant 0 : index
    %c5_92 = arith.constant 5 : index
    %c0_93 = arith.constant 0 : index
    %133 = vector.load %arg5[%c0_90, %c0_91, %c5_92, %c0_93] : memref<1x2x8x8xf32, #tpu.memory_space<vmem>>, vector<1x2x1x8xf32>
    %134 = vector.shape_cast %133 : vector<1x2x1x8xf32> to vector<2x8xf32>
    %135 = vector.shape_cast %132 : vector<2x8xf32> to vector<1x2x1x8xf32>
    tpu.vector_store %arg5[%c0_90, %c0_91, %c5_92, %c0_93], %135 {strides = array<i32>} : memref<1x2x8x8xf32, #tpu.memory_space<vmem>>, vector<1x2x1x8xf32>,
    %c0_94 = arith.constant 0 : index
    %c0_95 = arith.constant 0 : index
    %c12 = arith.constant 12 : index
    %c0_96 = arith.constant 0 : index
    %136 = vector.load %arg4[%c0_94, %c0_95, %c12, %c0_96] : memref<1x4x16x16xf32, #tpu.memory_space<vmem>>, vector<1x4x1x16xf32>
    %137 = vector.shape_cast %136 : vector<1x4x1x16xf32> to vector<4x16xf32>
    %c0_97 = arith.constant 0 : index
    %c0_98 = arith.constant 0 : index
    %c13 = arith.constant 13 : index
    %c0_99 = arith.constant 0 : index
    %138 = vector.load %arg4[%c0_97, %c0_98, %c13, %c0_99] : memref<1x4x16x16xf32, #tpu.memory_space<vmem>>, vector<1x4x1x16xf32>
    %139 = vector.shape_cast %138 : vector<1x4x1x16xf32> to vector<4x16xf32>
    %cst_100 = arith.constant dense<0.000000e+00> : vector<2x16xf32>
    %140 = tpu.matmul %0, %137, %cst_100 {dimension_numbers = #tpu.dot_dimension_numbers<[1], [0], [0], [1], [0, 0, 1, 1], [], []>} : vector<2x4xf32>, vector<4x16xf32>, vector<2x16xf32> -> vector<2x16xf32>
    %cst_101 = arith.constant dense<0.000000e+00> : vector<2x16xf32>
    %141 = tpu.matmul %0, %139, %cst_101 {dimension_numbers = #tpu.dot_dimension_numbers<[1], [0], [0], [1], [0, 0, 1, 1], [], []>} : vector<2x4xf32>, vector<4x16xf32>, vector<2x16xf32> -> vector<2x16xf32>
    %142 = arith.maximumf %140, %141 : vector<2x16xf32>
    %cst_102 = arith.constant dense<0.000000e+00> : vector<2x8xf32>
    %143 = tpu.matmul %142, %8, %cst_102 {dimension_numbers = #tpu.dot_dimension_numbers<[1], [0], [0], [1], [0, 0, 1, 1], [], []>} : vector<2x16xf32>, vector<16x8xf32>, vector<2x8xf32> -> vector<2x8xf32>
    %cst_103 = arith.constant dense<0.000000e+00> : vector<2x8xf32>
    %144 = tpu.matmul %142, %15, %cst_103 {dimension_numbers = #tpu.dot_dimension_numbers<[1], [0], [0], [1], [0, 0, 1, 1], [], []>} : vector<2x16xf32>, vector<16x8xf32>, vector<2x8xf32> -> vector<2x8xf32>
    %145 = arith.maximumf %143, %144 : vector<2x8xf32>
    %146 = vector.broadcast %1 : vector<2x1xf32> to vector<2x8xf32>
    %147 = arith.addf %145, %146 : vector<2x8xf32>
    %148 = arith.negf %147 : vector<2x8xf32>
    %149 = math.exp %148 : vector<2x8xf32>
    %cst_104 = arith.constant 1.000000e+00 : f32
    %150 = vector.broadcast %cst_104 : f32 to vector<2x8xf32>
    %151 = arith.addf %150, %149 : vector<2x8xf32>
    %152 = arith.divf %150, %151 : vector<2x8xf32>
    %c0_105 = arith.constant 0 : index
    %c0_106 = arith.constant 0 : index
    %c6_107 = arith.constant 6 : index
    %c0_108 = arith.constant 0 : index
    %153 = vector.load %arg5[%c0_105, %c0_106, %c6_107, %c0_108] : memref<1x2x8x8xf32, #tpu.memory_space<vmem>>, vector<1x2x1x8xf32>
    %154 = vector.shape_cast %153 : vector<1x2x1x8xf32> to vector<2x8xf32>
    %155 = vector.shape_cast %152 : vector<2x8xf32> to vector<1x2x1x8xf32>
    tpu.vector_store %arg5[%c0_105, %c0_106, %c6_107, %c0_108], %155 {strides = array<i32>} : memref<1x2x8x8xf32, #tpu.memory_space<vmem>>, vector<1x2x1x8xf32>,
    %c0_109 = arith.constant 0 : index
    %c0_110 = arith.constant 0 : index
    %c14 = arith.constant 14 : index
    %c0_111 = arith.constant 0 : index
    %156 = vector.load %arg4[%c0_109, %c0_110, %c14, %c0_111] : memref<1x4x16x16xf32, #tpu.memory_space<vmem>>, vector<1x4x1x16xf32>
    %157 = vector.shape_cast %156 : vector<1x4x1x16xf32> to vector<4x16xf32>
    %c0_112 = arith.constant 0 : index
    %c0_113 = arith.constant 0 : index
    %c15 = arith.constant 15 : index
    %c0_114 = arith.constant 0 : index
    %158 = vector.load %arg4[%c0_112, %c0_113, %c15, %c0_114] : memref<1x4x16x16xf32, #tpu.memory_space<vmem>>, vector<1x4x1x16xf32>
    %159 = vector.shape_cast %158 : vector<1x4x1x16xf32> to vector<4x16xf32>
    %cst_115 = arith.constant dense<0.000000e+00> : vector<2x16xf32>
    %160 = tpu.matmul %0, %157, %cst_115 {dimension_numbers = #tpu.dot_dimension_numbers<[1], [0], [0], [1], [0, 0, 1, 1], [], []>} : vector<2x4xf32>, vector<4x16xf32>, vector<2x16xf32> -> vector<2x16xf32>
    %cst_116 = arith.constant dense<0.000000e+00> : vector<2x16xf32>
    %161 = tpu.matmul %0, %159, %cst_116 {dimension_numbers = #tpu.dot_dimension_numbers<[1], [0], [0], [1], [0, 0, 1, 1], [], []>} : vector<2x4xf32>, vector<4x16xf32>, vector<2x16xf32> -> vector<2x16xf32>
    %162 = arith.maximumf %160, %161 : vector<2x16xf32>
    %cst_117 = arith.constant dense<0.000000e+00> : vector<2x8xf32>
    %163 = tpu.matmul %162, %8, %cst_117 {dimension_numbers = #tpu.dot_dimension_numbers<[1], [0], [0], [1], [0, 0, 1, 1], [], []>} : vector<2x16xf32>, vector<16x8xf32>, vector<2x8xf32> -> vector<2x8xf32>
    %cst_118 = arith.constant dense<0.000000e+00> : vector<2x8xf32>
    %164 = tpu.matmul %162, %15, %cst_118 {dimension_numbers = #tpu.dot_dimension_numbers<[1], [0], [0], [1], [0, 0, 1, 1], [], []>} : vector<2x16xf32>, vector<16x8xf32>, vector<2x8xf32> -> vector<2x8xf32>
    %165 = arith.maximumf %163, %164 : vector<2x8xf32>
    %166 = vector.broadcast %1 : vector<2x1xf32> to vector<2x8xf32>
    %167 = arith.addf %165, %166 : vector<2x8xf32>
    %168 = arith.negf %167 : vector<2x8xf32>
    %169 = math.exp %168 : vector<2x8xf32>
    %cst_119 = arith.constant 1.000000e+00 : f32
    %170 = vector.broadcast %cst_119 : f32 to vector<2x8xf32>
    %171 = arith.addf %170, %169 : vector<2x8xf32>
    %172 = arith.divf %170, %171 : vector<2x8xf32>
    %c0_120 = arith.constant 0 : index
    %c0_121 = arith.constant 0 : index
    %c7_122 = arith.constant 7 : index
    %c0_123 = arith.constant 0 : index
    %173 = vector.load %arg5[%c0_120, %c0_121, %c7_122, %c0_123] : memref<1x2x8x8xf32, #tpu.memory_space<vmem>>, vector<1x2x1x8xf32>
    %174 = vector.shape_cast %173 : vector<1x2x1x8xf32> to vector<2x8xf32>
    %175 = vector.shape_cast %172 : vector<2x8xf32> to vector<1x2x1x8xf32>
    tpu.vector_store %arg5[%c0_120, %c0_121, %c7_122, %c0_123], %175 {strides = array<i32>} : memref<1x2x8x8xf32, #tpu.memory_space<vmem>>, vector<1x2x1x8xf32>,
    return
  }
  func.func @transform_0(%arg0: i32, %arg1: i32) -> (i32, i32) {
    %c0_i32 = arith.constant 0 : i32
    %c0_i32_0 = arith.constant 0 : i32
    %c0_i32_1 = arith.constant 0 : i32
    return %c0_i32, %c0_i32_0 : i32, i32
  }
  func.func @transform_1(%arg0: i32, %arg1: i32) -> (i32, i32) {
    %c0_i32 = arith.constant 0 : i32
    %c0_i32_0 = arith.constant 0 : i32
    %c0_i32_1 = arith.constant 0 : i32
    return %c0_i32, %c0_i32_0 : i32, i32
  }
  func.func @transform_2(%arg0: i32, %arg1: i32) -> (i32, i32, i32, i32) {
    %c0_i32 = arith.constant 0 : i32
    %c0_i32_0 = arith.constant 0 : i32
    %c0_i32_1 = arith.constant 0 : i32
    return %arg0, %c0_i32, %arg1, %c0_i32_0 : i32, i32, i32, i32
  }
  func.func @transform_3(%arg0: i32, %arg1: i32) -> (i32, i32, i32, i32) {
    %c0_i32 = arith.constant 0 : i32
    %c0_i32_0 = arith.constant 0 : i32
    %c0_i32_1 = arith.constant 0 : i32
    return %arg0, %c0_i32, %arg1, %c0_i32_0 : i32, i32, i32, i32
  }
}

</mosaic_0001>

<llo_original>
// kernel: tpu_custom_call.1
$region0: #{tpu_custom_call.1}
  #allocation0 [shape = 'u32[]', space=smem, size = 0x4, offset = 0x4, fixed_abs, tag = 'smem constant byte address 0x4 - core index']
  #allocation1 [shape = 'u32[144,128]{1,0:T(1,128)}', space=vmem, size = 0x12000, scoped, tag = 'internal scratch']
  %s0 = inlined_call_operand.vmem [shape: f32[2,4], index: 0, kind: input, shape index: {}]
  %s1 = inlined_call_operand.vmem [shape: f32[2,1], index: 1, kind: input, shape index: {}]
  %s2 = inlined_call_operand.hbm [shape: f32[2,4,16,16], index: 2, kind: input, shape index: {}]
  %s3 = inlined_call_operand.hbm [shape: f32[2,2,8,8], index: 3, kind: output, shape index: {}]
  %s4 = sld [smem:[#allocation0]]
  $region49: #{tpu_custom_call.1} parent=0
    _
  %s6 = ssub.s32 1, %s4
  %s7 = scalar_select 0, %s6, %s4
  $region1: #{tpu_custom_call.1} parent=0
    #allocation2 [shape = 'u8[65536]{0}', space=vmem, size = 0x10000, scoped, tag = 'input window, operand 2']
    #allocation3 [shape = 's32[2]{0}', space=sflag, size = 0x8, scoped, tag = 'scoped memory for tpu_custom_call.1']
    #allocation4 [shape = 's32[2]{0}', space=sflag, size = 0x8, scoped, tag = 'scoped memory for tpu_custom_call.1']
    #allocation5 [shape = 'u8[16384]{0}', space=vmem, size = 0x4000, scoped, tag = 'output window, operand 0']
    %8 = vsyncpa [#allocation3], 0
    %s9 = scalar_lea.sflag [#allocation3], 1
    %10 = vsyncpa %s9, 0
    %11 = vsyncpa [#allocation4], 0
    %s12 = scalar_lea.sflag [#allocation4], 1
    %13 = vsyncpa %s12, 0
    loop: start=0, step=1, limit=4
    $region2: #{tpu_custom_call.1} parent=1 // loop_pre_header
      _
    $region3: #{tpu_custom_call.1} parent=1 // loop_header
      %s15 = sphi 0, %s19
      %p16 = scmp.ge.s32.totalorder %s15, 4
      %s22 = sphi 0, %s34
      %s23 = sphi 0, %s30
      %s24 = sphi 0, %s22
      %s25 = sphi 0, %s23
      %s26 = sphi 0, %s24
      %s27 = sphi 0, %s25
      %s35 = sphi 0, %s35
      %s37 = sphi 0, %s35
      %s38 = sphi 0, %s37
      %s52 = sphi 0, %s38
      %s56 = sphi 0, %s56
      %s58 = sphi 0, %s56
      %s59 = sphi 0, %s58
      %s73 = sphi 0, %s59
      %s81 = sphi 0, %s83
      %s84 = sphi 0, %s81
      %s85 = sphi 0, %s84
      %s101 = sphi 0, %s85
      %s109 = sphi 0, %s111
      %s112 = sphi 0, %s109
      %s113 = sphi 0, %s112
      %s129 = sphi 0, %s113
    $region4: #{tpu_custom_call.1} parent=1 // loop_header_branch
      %18 = sbr.rel (%p16) target = $region8
    $region5: #{tpu_custom_call.1} parent=1 // loop_body
      %s20 = ssub.s32 %s15, 1
      %s21 = ssub.s32 %s15, 2
      %s28 = sadd.s32 1, %s23
      %p29 = scmp.ge.s32.totalorder %s28, 1
      %s30 = scalar_select %p29, 0, %s28
      %s31 = sadd.s32 1, %s22
      %s32 = scalar_select %p29, %s31, %s22
      %p33 = scmp.ge.s32.totalorder %s32, 2
      %s34 = scalar_select %p33, 0, %s32
      %s36 = sadd.s32 %s35, 1
      %p39 = scmp.eq.s32.totalorder %s15, 1
      %p40 = scmp.ne.s32.totalorder %s35, %s37
      %p41 = scmp.eq.s32.totalorder %s15, 0
      %p42 = por %p40, %p41
      %p43 = scmp.ne.s32.totalorder %s35, %s37
      %p44 = scmp.eq.s32.totalorder %s20, 1
      %p45 = por %p43, %p44
      %p46 = scmp.ne.s32.totalorder %s37, %s38
      %p47 = scmp.eq.s32.totalorder %s20, 0
      %p48 = por %p46, %p47
      %p49 = scmp.ne.s32.totalorder %s37, %s38
      %p50 = scmp.eq.s32.totalorder %s21, 1
      %p51 = por %p49, %p50
      %p53 = scmp.ne.s32.totalorder %s38, %s52
      %p54 = scmp.eq.s32.totalorder %s21, 0
      %p55 = por %p53, %p54
      %s57 = sadd.s32 %s56, 1
      %p60 = scmp.eq.s32.totalorder %s15, 1
      %p61 = scmp.ne.s32.totalorder %s56, %s58
      %p62 = scmp.eq.s32.totalorder %s15, 0
      %p63 = por %p61, %p62
      %p64 = scmp.ne.s32.totalorder %s56, %s58
      %p65 = scmp.eq.s32.totalorder %s20, 1
      %p66 = por %p64, %p65
      %p67 = scmp.ne.s32.totalorder %s58, %s59
      %p68 = scmp.eq.s32.totalorder %s20, 0
      %p69 = por %p67, %p68
      %p70 = scmp.ne.s32.totalorder %s58, %s59
      %p71 = scmp.eq.s32.totalorder %s21, 1
      %p72 = por %p70, %p71
      %p74 = scmp.ne.s32.totalorder %s59, %s73
      %p75 = scmp.eq.s32.totalorder %s21, 0
      %p76 = por %p74, %p75
      %s77 = ssub.s32 %s22, %s34
      %s78 = ssub.s32 %s23, %s30
      %s79 = sor.u32 %s77, %s78
      %p80 = scmp.eq.s32.totalorder %s79, 0
      %s82 = sadd.s32 %s81, 1
      %s83 = scalar_select %p80, %s81, %s82
      %p86 = pneg %p80
      %p87 = scmp.eq.s32.totalorder %s15, 1
      %p88 = por %p86, %p87
      %p89 = scmp.ne.s32.totalorder %s81, %s84
      %p90 = scmp.eq.s32.totalorder %s15, 0
      %p91 = por %p89, %p90
      %p92 = scmp.ne.s32.totalorder %s81, %s84
      %p93 = scmp.eq.s32.totalorder %s20, 1
      %p94 = por %p92, %p93
      %p95 = scmp.ne.s32.totalorder %s84, %s85
      %p96 = scmp.eq.s32.totalorder %s20, 0
      %p97 = por %p95, %p96
      %p98 = scmp.ne.s32.totalorder %s84, %s85
      %p99 = scmp.eq.s32.totalorder %s21, 1
      %p100 = por %p98, %p99
      %p102 = scmp.ne.s32.totalorder %s85, %s101
      %p103 = scmp.eq.s32.totalorder %s21, 0
      %p104 = por %p102, %p103
      %s105 = ssub.s32 %s22, %s34
      %s106 = ssub.s32 %s23, %s30
      %s107 = sor.u32 %s105, %s106
      %p108 = scmp.eq.s32.totalorder %s107, 0
      %s110 = sadd.s32 %s109, 1
      %s111 = scalar_select %p108, %s109, %s110
      %p114 = pneg %p108
      %p115 = scmp.eq.s32.totalorder %s15, 1
      %p116 = por %p114, %p115
      %p117 = scmp.ne.s32.totalorder %s109, %s112
      %p118 = scmp.eq.s32.totalorder %s15, 0
      %p119 = por %p117, %p118
      %p120 = scmp.ne.s32.totalorder %s109, %s112
      %p121 = scmp.eq.s32.totalorder %s20, 1
      %p122 = por %p120, %p121
      %p123 = scmp.ne.s32.totalorder %s112, %s113
      %p124 = scmp.eq.s32.totalorder %s20, 0
      %p125 = por %p123, %p124
      %p126 = scmp.ne.s32.totalorder %s112, %s113
      %p127 = scmp.eq.s32.totalorder %s21, 1
      %p128 = por %p126, %p127
      %p130 = scmp.ne.s32.totalorder %s113, %s129
      %p131 = scmp.eq.s32.totalorder %s21, 0
      %p132 = por %p130, %p131
      %p133 = scmp.le.s32.totalorder 1, %s15
      %p134 = scmp.lt.s32.totalorder %s15, 3
      %p135 = pnand %p133, %p134
      %p136 = pneg %p135
      // Predicated region
      $region9: #{tpu_custom_call.1} parent=5 // pred_check
        _
      $region10: #{tpu_custom_call.1} parent=5 // pred_check_branch
        %138 = sbr.rel (%p135) target = $region12
      $region11: #{tpu_custom_call.1} parent=5 // pred_region
        %s139 = ssub.s32 %s15, 1
        // Predicated region
        $region13: #{tpu_custom_call.1} parent=11 // pred_check
          %p140 = pneg %p48
        $region14: #{tpu_custom_call.1} parent=11 // pred_check_branch
          %142 = sbr.rel (%p140) target = $region16
        $region15: #{tpu_custom_call.1} parent=11 // pred_region
          _
        $region16: #{tpu_custom_call.1} parent=11 // pred_fallthru
          _
        // Predicated region
        $region17: #{tpu_custom_call.1} parent=11 // pred_check
          %p143 = pneg %p69
        $region18: #{tpu_custom_call.1} parent=11 // pred_check_branch
          %145 = sbr.rel (%p143) target = $region20
        $region19: #{tpu_custom_call.1} parent=11 // pred_region
          _
        $region20: #{tpu_custom_call.1} parent=11 // pred_fallthru
          _
      $region12: #{tpu_custom_call.1} parent=5 // pred_fallthru
        _
      %p146 = scmp.lt.s32.totalorder %s15, 2
      // Predicated region
      $region21: #{tpu_custom_call.1} parent=5 // pred_check
        %p147 = pneg %p146
      $region22: #{tpu_custom_call.1} parent=5 // pred_check_branch
        %149 = sbr.rel (%p147) target = $region24
      $region23: #{tpu_custom_call.1} parent=5 // pred_region
        // Predicated region
        $region25: #{tpu_custom_call.1} parent=23 // pred_check
          %p150 = pneg %p91
        $region26: #{tpu_custom_call.1} parent=23 // pred_check_branch
          %152 = sbr.rel (%p150) target = $region28
        $region27: #{tpu_custom_call.1} parent=23 // pred_region
          %s153 = sand.u32 %s81, 1
          %s154 = scalar_lea.sflag [#allocation3], %s153
          %s155 = sand.u32 %s81, 1
          %s156 = smul.addr %s155, 64
          %s157 = scalar_lea.vmem [#allocation2], %s156
          %s158 = smul.u32 2, %s23
          %s160 = ssub.s32 1024, 1024
          %161 = vsyncadd %s154, %s160
          %s162 = smul.addr %s22, 8
          %s163 = sadd.s32 %s158, %s162
          %s164 = smul.addr %s163, 128
          %s165 = scalar_lea.hbm %s2, %s164
          %s166 = sshll.u32 %s157, 4
          %s167 = int_to_ptr.vmem [resolvable:$true] %s166
          %172 = dma.hbm_to_vmem [thread:$0]  %s165, 1024, %s167, %s154, 128, 128, 8
        $region28: #{tpu_custom_call.1} parent=23 // pred_fallthru
          _
      $region24: #{tpu_custom_call.1} parent=5 // pred_fallthru
        _
      %p173 = scmp.le.s32.totalorder 1, %s15
      %p174 = scmp.lt.s32.totalorder %s15, 3
      %p175 = pnand %p173, %p174
      %p176 = pneg %p175
      // Predicated region
      $region29: #{tpu_custom_call.1} parent=5 // pred_check
        _
      $region30: #{tpu_custom_call.1} parent=5 // pred_check_branch
        %178 = sbr.rel (%p175) target = $region32
      $region31: #{tpu_custom_call.1} parent=5 // pred_region
        %s179 = ssub.s32 %s15, 1
        %s180 = sand.u32 %s84, 1
        %s181 = scalar_lea.sflag [#allocation3], %s180
        %s182 = sand.u32 %s84, 1
        %s183 = smul.addr %s182, 64
        %s184 = scalar_lea.vmem [#allocation2], %s183
        // Predicated region
        $region33: #{tpu_custom_call.1} parent=31 // pred_check
          %p185 = pneg %p97
        $region34: #{tpu_custom_call.1} parent=31 // pred_check_branch
          %187 = sbr.rel (%p185) target = $region36
        $region35: #{tpu_custom_call.1} parent=31 // pred_region
          %188 = dma.done %s181, 1024
        $region36: #{tpu_custom_call.1} parent=31 // pred_fallthru
          _
        %p189 = pneg %p48
        %p190 = pneg %p45
        %p191 = pneg %p69
        %p192 = pneg %p66
        %s193 = sand.u32 %s84, 1
        %s194 = scalar_lea.sflag [#allocation3], %s193
        %s195 = sand.u32 %s84, 1
        %s196 = smul.addr %s195, 64
        %s197 = scalar_lea.vmem [#allocation2], %s196
        %p198 = pneg %p97
        %p199 = pneg %p94
        %p200 = pneg %p125
        %p201 = pneg %p122
        %s202 = sand.u32 %s112, 1
        %s203 = scalar_lea.sflag [#allocation4], %s202
        %s204 = sand.u32 %s112, 1
        %s205 = smul.addr %s204, 16
        %s206 = scalar_lea.vmem [#allocation5], %s205
        %s207 = smul.u32 2, %s25
        %v208 = vld [vmem:[%s0] sm:$0x3]
        %v209 = vld [vmem:[%s1] sm:$0x3]
        %v210 = vlaneseq
        %v211 = vshrl.u32 %v210, 7
        %v212 = vadd.s32 %v211, 8
        %v213 = vlaneseq
        %v214 = vand.u32 %v213, 127
        %v215 = vmul.u32 %v214, 2
        %vm216 = vcmp.eq.s32.totalorder %v211, %v215
        %vm217 = vcmp.eq.s32.totalorder %v212, %v215
        %v218 = vsel %vm216, 1, 0
        %v219 = vsel %vm217, 1, 0
        %v220 = vcvt.s32.f32 %v218
        %v221 = vcvt.s32.f32 %v219
        %v222 = vadd.s32 %v215, 1
        %vm223 = vcmp.eq.s32.totalorder %v211, %v222
        %vm224 = vcmp.eq.s32.totalorder %v212, %v222
        %v225 = vsel %vm223, 1, 0
        %v226 = vsel %vm224, 1, 0
        %v227 = vcvt.s32.f32 %v225
        %v228 = vcvt.s32.f32 %v226
        %v229 = vld [vmem:[%s184] sm:$0x1]
        %v230 = vld [vmem:[%s184 + $0x10] sm:$0x1]
        %v231 = vld [vmem:[%s184 + $0x20] sm:$0x1]
        %v232 = vld [vmem:[%s184 + $0x30] sm:$0x1]
        %v233 = vld [vmem:[%s184 + $0x1] sm:$0x1]
        %v234 = vld [vmem:[%s184 + $0x11] sm:$0x1]
        %v235 = vld [vmem:[%s184 + $0x21] sm:$0x1]
        %v236 = vld [vmem:[%s184 + $0x31] sm:$0x1]
        %v241 = vrot.slane %v230, 7
        %vm242 = vcmask 1041409
        %v243 = vsel %vm242, %v241, %v229
        %v244 = vrot.slane %v231, 6
        %vm245 = vcmask 1042434
        %v246 = vsel %vm245, %v244, %v243
        %v247 = vrot.slane %v232, 5
        %vm248 = vcmask 1043459
        %v249 = vsel %vm248, %v247, %v246
        %vm250 = vcmask 31744
        %v252 = vsel %vm250, %v208, 0
        %vm254 = vcmask 1043456
        %v255 = vsel %vm254, %v249, 0
        %257 = vmatprep.subr.mxu0 0.0
        %258 = vmatpush1.msra.mxu0 0.0
        %259 = vmatprep.subr.mxu0 0.0
        %260 = vmatpush1.msra.mxu0 0.0
        %261 = vmatprep.subr.mxu0 0.0
        %262 = vmatpush1.msra.mxu0 0.0
        %263 = vmatprep.subr.mxu0 0.0
        %264 = vmatpush1.msra.mxu0 0.0
        %265 = vmatprep.subr.mxu0 0.0
        %266 = vmatpush1.msra.mxu0 0.0
        %267 = vmatprep.subr.mxu0 0.0
        %268 = vmatpush1.msra.mxu0 0.0
        %269 = vmatprep.subr.mxu0 0.0
        %270 = vmatpush1.msra.mxu0 0.0
        %271 = vmatprep.subr.mxu0 0.0
        %272 = vmatpush1.msra.mxu0 0.0
        %273 = vmatprep.subr.mxu0 0.0
        %274 = vmatpush1.msra.mxu0 0.0
        %275 = vmatprep.subr.mxu0 0.0
        %276 = vmatpush1.msra.mxu0 0.0
        %277 = vmatprep.subr.mxu0 0.0
        %278 = vmatpush1.msra.mxu0 0.0
        %279 = vmatprep.subr.mxu0 0.0
        %280 = vmatpush1.msra.mxu0 0.0
        %281 = vmatprep.subr.mxu0 0.0
        %282 = vmatpush1.msra.mxu0 0.0
        %283 = vmatprep.subr.mxu0 0.0
        %284 = vmatpush1.msra.mxu0 0.0
        %285 = vmatprep.subr.mxu0 0.0
        %286 = vmatpush1.msra.mxu0 0.0
        %287 = vmatprep.subr.mxu0 0.0
        %288 = vmatpush1.msra.mxu0 %v255
        %289 = vmatprep.subr.mxu0 0.0
        %290 = vmatpush2.msra.mxu0 0.0
        %291 = vmatprep.subr.mxu0 0.0
        %292 = vmatpush2.msra.mxu0 0.0
        %293 = vmatprep.subr.mxu0 0.0
        %294 = vmatpush2.msra.mxu0 0.0
        %295 = vmatprep.subr.mxu0 0.0
        %296 = vmatpush2.msra.mxu0 0.0
        %297 = vmatprep.subr.mxu0 0.0
        %298 = vmatpush2.msra.mxu0 0.0
        %299 = vmatprep.subr.mxu0 0.0
        %300 = vmatpush2.msra.mxu0 0.0
        %301 = vmatprep.subr.mxu0 0.0
        %302 = vmatpush2.msra.mxu0 0.0
        %303 = vmatprep.subr.mxu0 0.0
        %304 = vmatpush2.msra.mxu0 0.0
        %305 = vmatprep.subr.mxu0 0.0
        %306 = vmatpush2.msra.mxu0 0.0
        %307 = vmatprep.subr.mxu0 0.0
        %308 = vmatpush2.msra.mxu0 0.0
        %309 = vmatprep.subr.mxu0 0.0
        %310 = vmatpush2.msra.mxu0 0.0
        %311 = vmatprep.subr.mxu0 0.0
        %312 = vmatpush2.msra.mxu0 0.0
        %313 = vmatprep.subr.mxu0 0.0
        %314 = vmatpush2.msra.mxu0 0.0
        %315 = vmatprep.subr.mxu0 0.0
        %316 = vmatpush2.msra.mxu0 0.0
        %317 = vmatprep.subr.mxu0 0.0
        %318 = vmatpush2.msra.mxu0 0.0
        %319 = vmatprep.subr.mxu0 0.0
        %320 = vmatpush2.msra.mxu0 0.0
        %321 = vmatprep.mubr.f32.mxu0 0.0
        %322 = vmatmul.mubr.f32.gmra.mxu0 %v252
        %v323 = vpop.f32.mrf.mxu0
        %v324 = vadd.f32 0.0, %v323
        %v325 = vpop.f32.mrf.mxu0
        %326 = vdwg.mxu0
        %v331 = vrot.slane %v234, 7
        %v332 = vsel %vm242, %v331, %v233
        %v333 = vrot.slane %v235, 6
        %v334 = vsel %vm245, %v333, %v332
        %v335 = vrot.slane %v236, 5
        %v336 = vsel %vm248, %v335, %v334
        %v337 = vsel %vm254, %v336, 0
        %339 = vmatprep.subr.mxu0 0.0
        %340 = vmatpush1.msra.mxu0 0.0
        %341 = vmatprep.subr.mxu0 0.0
        %342 = vmatpush1.msra.mxu0 0.0
        %343 = vmatprep.subr.mxu0 0.0
        %344 = vmatpush1.msra.mxu0 0.0
        %345 = vmatprep.subr.mxu0 0.0
        %346 = vmatpush1.msra.mxu0 0.0
        %347 = vmatprep.subr.mxu0 0.0
        %348 = vmatpush1.msra.mxu0 0.0
        %349 = vmatprep.subr.mxu0 0.0
        %350 = vmatpush1.msra.mxu0 0.0
        %351 = vmatprep.subr.mxu0 0.0
        %352 = vmatpush1.msra.mxu0 0.0
        %353 = vmatprep.subr.mxu0 0.0
        %354 = vmatpush1.msra.mxu0 0.0
        %355 = vmatprep.subr.mxu0 0.0
        %356 = vmatpush1.msra.mxu0 0.0
        %357 = vmatprep.subr.mxu0 0.0
        %358 = vmatpush1.msra.mxu0 0.0
        %359 = vmatprep.subr.mxu0 0.0
        %360 = vmatpush1.msra.mxu0 0.0
        %361 = vmatprep.subr.mxu0 0.0
        %362 = vmatpush1.msra.mxu0 0.0
        %363 = vmatprep.subr.mxu0 0.0
        %364 = vmatpush1.msra.mxu0 0.0
        %365 = vmatprep.subr.mxu0 0.0
        %366 = vmatpush1.msra.mxu0 0.0
        %367 = vmatprep.subr.mxu0 0.0
        %368 = vmatpush1.msra.mxu0 0.0
        %369 = vmatprep.subr.mxu0 0.0
        %370 = vmatpush1.msra.mxu0 %v337
        %371 = vmatprep.subr.mxu0 0.0
        %372 = vmatpush2.msra.mxu0 0.0
        %373 = vmatprep.subr.mxu0 0.0
        %374 = vmatpush2.msra.mxu0 0.0
        %375 = vmatprep.subr.mxu0 0.0
        %376 = vmatpush2.msra.mxu0 0.0
        %377 = vmatprep.subr.mxu0 0.0
        %378 = vmatpush2.msra.mxu0 0.0
        %379 = vmatprep.subr.mxu0 0.0
        %380 = vmatpush2.msra.mxu0 0.0
        %381 = vmatprep.subr.mxu0 0.0
        %382 = vmatpush2.msra.mxu0 0.0
        %383 = vmatprep.subr.mxu0 0.0
        %384 = vmatpush2.msra.mxu0 0.0
        %385 = vmatprep.subr.mxu0 0.0
        %386 = vmatpush2.msra.mxu0 0.0
        %387 = vmatprep.subr.mxu0 0.0
        %388 = vmatpush2.msra.mxu0 0.0
        %389 = vmatprep.subr.mxu0 0.0
        %390 = vmatpush2.msra.mxu0 0.0
        %391 = vmatprep.subr.mxu0 0.0
        %392 = vmatpush2.msra.mxu0 0.0
        %393 = vmatprep.subr.mxu0 0.0
        %394 = vmatpush2.msra.mxu0 0.0
        %395 = vmatprep.subr.mxu0 0.0
        %396 = vmatpush2.msra.mxu0 0.0
        %397 = vmatprep.subr.mxu0 0.0
        %398 = vmatpush2.msra.mxu0 0.0
        %399 = vmatprep.subr.mxu0 0.0
        %400 = vmatpush2.msra.mxu0 0.0
        %401 = vmatprep.subr.mxu0 0.0
        %402 = vmatpush2.msra.mxu0 0.0
        %403 = vmatprep.mubr.f32.mxu0 0.0
        %404 = vmatmul.mubr.f32.gmra.mxu0 %v252
        %v405 = vpop.f32.mrf.mxu0
        %v406 = vadd.f32 0.0, %v405
        %v407 = vpop.f32.mrf.mxu0
        %408 = vdwg.mxu0
        %v409 = vmax.f32 %v324, %v406
        %vm410 = vcmask 130048
        %v412 = vsel %vm410, %v409, 0
        %414 = vmatprep.subr.mxu0 0.0
        %415 = vmatpush1.msra.mxu0 0.0
        %416 = vmatprep.subr.mxu0 0.0
        %417 = vmatpush1.msra.mxu0 0.0
        %418 = vmatprep.subr.mxu0 0.0
        %419 = vmatpush1.msra.mxu0 0.0
        %420 = vmatprep.subr.mxu0 0.0
        %421 = vmatpush1.msra.mxu0 0.0
        %422 = vmatprep.subr.mxu0 0.0
        %423 = vmatpush1.msra.mxu0 0.0
        %424 = vmatprep.subr.mxu0 0.0
        %425 = vmatpush1.msra.mxu0 0.0
        %426 = vmatprep.subr.mxu0 0.0
        %427 = vmatpush1.msra.mxu0 0.0
        %428 = vmatprep.subr.mxu0 0.0
        %429 = vmatpush1.msra.mxu0 0.0
        %430 = vmatprep.subr.mxu0 0.0
        %431 = vmatpush1.msra.mxu0 0.0
        %432 = vmatprep.subr.mxu0 0.0
        %433 = vmatpush1.msra.mxu0 0.0
        %434 = vmatprep.subr.mxu0 0.0
        %435 = vmatpush1.msra.mxu0 0.0
        %436 = vmatprep.subr.mxu0 0.0
        %437 = vmatpush1.msra.mxu0 0.0
        %438 = vmatprep.subr.mxu0 0.0
        %439 = vmatpush1.msra.mxu0 0.0
        %440 = vmatprep.subr.mxu0 0.0
        %441 = vmatpush1.msra.mxu0 0.0
        %442 = vmatprep.subr.mxu0 0.0
        %443 = vmatpush1.msra.mxu0 %v221
        %444 = vmatprep.subr.mxu0 0.0
        %445 = vmatpush1.msra.mxu0 %v220
        %446 = vmatprep.subr.mxu0 0.0
        %447 = vmatpush2.msra.mxu0 0.0
        %448 = vmatprep.subr.mxu0 0.0
        %449 = vmatpush2.msra.mxu0 0.0
        %450 = vmatprep.subr.mxu0 0.0
        %451 = vmatpush2.msra.mxu0 0.0
        %452 = vmatprep.subr.mxu0 0.0
        %453 = vmatpush2.msra.mxu0 0.0
        %454 = vmatprep.subr.mxu0 0.0
        %455 = vmatpush2.msra.mxu0 0.0
        %456 = vmatprep.subr.mxu0 0.0
        %457 = vmatpush2.msra.mxu0 0.0
        %458 = vmatprep.subr.mxu0 0.0
        %459 = vmatpush2.msra.mxu0 0.0
        %460 = vmatprep.subr.mxu0 0.0
        %461 = vmatpush2.msra.mxu0 0.0
        %462 = vmatprep.subr.mxu0 0.0
        %463 = vmatpush2.msra.mxu0 0.0
        %464 = vmatprep.subr.mxu0 0.0
        %465 = vmatpush2.msra.mxu0 0.0
        %466 = vmatprep.subr.mxu0 0.0
        %467 = vmatpush2.msra.mxu0 0.0
        %468 = vmatprep.subr.mxu0 0.0
        %469 = vmatpush2.msra.mxu0 0.0
        %470 = vmatprep.subr.mxu0 0.0
        %471 = vmatpush2.msra.mxu0 0.0
        %472 = vmatprep.subr.mxu0 0.0
        %473 = vmatpush2.msra.mxu0 0.0
        %474 = vmatprep.subr.mxu0 0.0
        %475 = vmatpush2.msra.mxu0 0.0
        %476 = vmatprep.subr.mxu0 0.0
        %477 = vmatpush2.msra.mxu0 0.0
        %478 = vmatprep.mubr.f32.mxu0 0.0
        %479 = vmatmul.mubr.f32.gmra.mxu0 %v412
        %v480 = vpop.f32.mrf.mxu0
        %v481 = vadd.f32 0.0, %v480
        %v482 = vpop.f32.mrf.mxu0
        %483 = vdwg.mxu0
        %484 = vmatprep.subr.mxu0 0.0
        %485 = vmatpush1.msra.mxu0 0.0
        %486 = vmatprep.subr.mxu0 0.0
        %487 = vmatpush1.msra.mxu0 0.0
        %488 = vmatprep.subr.mxu0 0.0
        %489 = vmatpush1.msra.mxu0 0.0
        %490 = vmatprep.subr.mxu0 0.0
        %491 = vmatpush1.msra.mxu0 0.0
        %492 = vmatprep.subr.mxu0 0.0
        %493 = vmatpush1.msra.mxu0 0.0
        %494 = vmatprep.subr.mxu0 0.0
        %495 = vmatpush1.msra.mxu0 0.0
        %496 = vmatprep.subr.mxu0 0.0
        %497 = vmatpush1.msra.mxu0 0.0
        %498 = vmatprep.subr.mxu0 0.0
        %499 = vmatpush1.msra.mxu0 0.0
        %500 = vmatprep.subr.mxu0 0.0
        %501 = vmatpush1.msra.mxu0 0.0
        %502 = vmatprep.subr.mxu0 0.0
        %503 = vmatpush1.msra.mxu0 0.0
        %504 = vmatprep.subr.mxu0 0.0
        %505 = vmatpush1.msra.mxu0 0.0
        %506 = vmatprep.subr.mxu0 0.0
        %507 = vmatpush1.msra.mxu0 0.0
        %508 = vmatprep.subr.mxu0 0.0
        %509 = vmatpush1.msra.mxu0 0.0
        %510 = vmatprep.subr.mxu0 0.0
        %511 = vmatpush1.msra.mxu0 0.0
        %512 = vmatprep.subr.mxu0 0.0
        %513 = vmatpush1.msra.mxu0 %v228
        %514 = vmatprep.subr.mxu0 0.0
        %515 = vmatpush1.msra.mxu0 %v227
        %516 = vmatprep.subr.mxu0 0.0
        %517 = vmatpush2.msra.mxu0 0.0
        %518 = vmatprep.subr.mxu0 0.0
        %519 = vmatpush2.msra.mxu0 0.0
        %520 = vmatprep.subr.mxu0 0.0
        %521 = vmatpush2.msra.mxu0 0.0
        %522 = vmatprep.subr.mxu0 0.0
        %523 = vmatpush2.msra.mxu0 0.0
        %524 = vmatprep.subr.mxu0 0.0
        %525 = vmatpush2.msra.mxu0 0.0
        %526 = vmatprep.subr.mxu0 0.0
        %527 = vmatpush2.msra.mxu0 0.0
        %528 = vmatprep.subr.mxu0 0.0
        %529 = vmatpush2.msra.mxu0 0.0
        %530 = vmatprep.subr.mxu0 0.0
        %531 = vmatpush2.msra.mxu0 0.0
        %532 = vmatprep.subr.mxu0 0.0
        %533 = vmatpush2.msra.mxu0 0.0
        %534 = vmatprep.subr.mxu0 0.0
        %535 = vmatpush2.msra.mxu0 0.0
        %536 = vmatprep.subr.mxu0 0.0
        %537 = vmatpush2.msra.mxu0 0.0
        %538 = vmatprep.subr.mxu0 0.0
        %539 = vmatpush2.msra.mxu0 0.0
        %540 = vmatprep.subr.mxu0 0.0
        %541 = vmatpush2.msra.mxu0 0.0
        %542 = vmatprep.subr.mxu0 0.0
        %543 = vmatpush2.msra.mxu0 0.0
        %544 = vmatprep.subr.mxu0 0.0
        %545 = vmatpush2.msra.mxu0 0.0
        %546 = vmatprep.subr.mxu0 0.0
        %547 = vmatpush2.msra.mxu0 0.0
        %548 = vmatprep.mubr.f32.mxu0 0.0
        %549 = vmatmul.mubr.f32.gmra.mxu0 %v412
        %v550 = vpop.f32.mrf.mxu0
        %v551 = vadd.f32 0.0, %v550
        %v552 = vpop.f32.mrf.mxu0
        %553 = vdwg.mxu0
        %v554 = vmax.f32 %v481, %v551
        %556 = vset.pattern.permute.xlu0 0
        %557 = vperm.xlu0 %556, %v209
        %v558 = vpop.permute.xlu0 %557
        %v560 = vadd.f32 %v554, %v558
        %v561 = vxor.u32 %v560, 2147483648
        %v562 = vmul.f32 %v561, 1.442695
        %v563 = vpow.pop %v562
        %v564 = vadd.f32 %v563, 1.0
        %v565 = vrcp.pop %v564
        %v566 = vmul.f32 1.0, %v565
        %v569 = vunpack.c.l.s4 1966171168
        %v570 = vunpack.c.0.s8 %v569
        %v571 = vlaneseq
        %v572 = vshrl.u32 %v571, 7
        %v573 = vsub.s32 %v570, %v572
        %v574 = vrot.slane %v566, %v573
        %v575 = vcombine.high %v574, %v574
        %v577 = vunpack.c.l.s4 1966171168
        %v578 = vunpack.c.0.s8 %v577
        %v579 = vlaneseq
        %v580 = vshrl.u32 %v579, 7
        %v581 = vsub.s32 %v578, %v580
        %v582 = vrot.slane %v574, %v581
        %v584 = vunpack.c.l.s4 1966171168
        %v585 = vunpack.c.0.s8 %v584
        %v586 = vlaneseq
        %v587 = vshrl.u32 %v586, 7
        %v588 = vsub.s32 %v585, %v587
        %v589 = vrot.slane %v575, %v588
        %vm592 = vcmask 57344
        %593 = vst.msk [vmem:[%s206] sm:$0x1] %vm592, %v582
        %594 = vst.msk [vmem:[%s206 + $0x8] sm:$0x1] %vm592, %v589
        %v595 = vld [vmem:[%s184 + $0x2] sm:$0x1]
        %v596 = vld [vmem:[%s184 + $0x12] sm:$0x1]
        %v597 = vld [vmem:[%s184 + $0x22] sm:$0x1]
        %v598 = vld [vmem:[%s184 + $0x32] sm:$0x1]
        %v599 = vld [vmem:[%s184 + $0x3] sm:$0x1]
        %v600 = vld [vmem:[%s184 + $0x13] sm:$0x1]
        %v601 = vld [vmem:[%s184 + $0x23] sm:$0x1]
        %v602 = vld [vmem:[%s184 + $0x33] sm:$0x1]
        %v607 = vrot.slane %v596, 7
        %v608 = vsel %vm242, %v607, %v595
        %v609 = vrot.slane %v597, 6
        %v610 = vsel %vm245, %v609, %v608
        %v611 = vrot.slane %v598, 5
        %v612 = vsel %vm248, %v611, %v610
        %v613 = vsel %vm254, %v612, 0
        %615 = vmatprep.subr.mxu0 0.0
        %616 = vmatpush1.msra.mxu0 0.0
        %617 = vmatprep.subr.mxu0 0.0
        %618 = vmatpush1.msra.mxu0 0.0
        %619 = vmatprep.subr.mxu0 0.0
        %620 = vmatpush1.msra.mxu0 0.0
        %621 = vmatprep.subr.mxu0 0.0
        %622 = vmatpush1.msra.mxu0 0.0
        %623 = vmatprep.subr.mxu0 0.0
        %624 = vmatpush1.msra.mxu0 0.0
        %625 = vmatprep.subr.mxu0 0.0
        %626 = vmatpush1.msra.mxu0 0.0
        %627 = vmatprep.subr.mxu0 0.0
        %628 = vmatpush1.msra.mxu0 0.0
        %629 = vmatprep.subr.mxu0 0.0
        %630 = vmatpush1.msra.mxu0 0.0
        %631 = vmatprep.subr.mxu0 0.0
        %632 = vmatpush1.msra.mxu0 0.0
        %633 = vmatprep.subr.mxu0 0.0
        %634 = vmatpush1.msra.mxu0 0.0
        %635 = vmatprep.subr.mxu0 0.0
        %636 = vmatpush1.msra.mxu0 0.0
        %637 = vmatprep.subr.mxu0 0.0
        %638 = vmatpush1.msra.mxu0 0.0
        %639 = vmatprep.subr.mxu0 0.0
        %640 = vmatpush1.msra.mxu0 0.0
        %641 = vmatprep.subr.mxu0 0.0
        %642 = vmatpush1.msra.mxu0 0.0
        %643 = vmatprep.subr.mxu0 0.0
        %644 = vmatpush1.msra.mxu0 0.0
        %645 = vmatprep.subr.mxu0 0.0
        %646 = vmatpush1.msra.mxu0 %v613
        %647 = vmatprep.subr.mxu0 0.0
        %648 = vmatpush2.msra.mxu0 0.0
        %649 = vmatprep.subr.mxu0 0.0
        %650 = vmatpush2.msra.mxu0 0.0
        %651 = vmatprep.subr.mxu0 0.0
        %652 = vmatpush2.msra.mxu0 0.0
        %653 = vmatprep.subr.mxu0 0.0
        %654 = vmatpush2.msra.mxu0 0.0
        %655 = vmatprep.subr.mxu0 0.0
        %656 = vmatpush2.msra.mxu0 0.0
        %657 = vmatprep.subr.mxu0 0.0
        %658 = vmatpush2.msra.mxu0 0.0
        %659 = vmatprep.subr.mxu0 0.0
        %660 = vmatpush2.msra.mxu0 0.0
        %661 = vmatprep.subr.mxu0 0.0
        %662 = vmatpush2.msra.mxu0 0.0
        %663 = vmatprep.subr.mxu0 0.0
        %664 = vmatpush2.msra.mxu0 0.0
        %665 = vmatprep.subr.mxu0 0.0
        %666 = vmatpush2.msra.mxu0 0.0
        %667 = vmatprep.subr.mxu0 0.0
        %668 = vmatpush2.msra.mxu0 0.0
        %669 = vmatprep.subr.mxu0 0.0
        %670 = vmatpush2.msra.mxu0 0.0
        %671 = vmatprep.subr.mxu0 0.0
        %672 = vmatpush2.msra.mxu0 0.0
        %673 = vmatprep.subr.mxu0 0.0
        %674 = vmatpush2.msra.mxu0 0.0
        %675 = vmatprep.subr.mxu0 0.0
        %676 = vmatpush2.msra.mxu0 0.0
        %677 = vmatprep.subr.mxu0 0.0
        %678 = vmatpush2.msra.mxu0 0.0
        %679 = vmatprep.mubr.f32.mxu0 0.0
        %680 = vmatmul.mubr.f32.gmra.mxu0 %v252
        %v681 = vpop.f32.mrf.mxu0
        %v682 = vadd.f32 0.0, %v681
        %v683 = vpop.f32.mrf.mxu0
        %684 = vdwg.mxu0
        %v689 = vrot.slane %v600, 7
        %v690 = vsel %vm242, %v689, %v599
        %v691 = vrot.slane %v601, 6
        %v692 = vsel %vm245, %v691, %v690
        %v693 = vrot.slane %v602, 5
        %v694 = vsel %vm248, %v693, %v692
        %v695 = vsel %vm254, %v694, 0
        %697 = vmatprep.subr.mxu0 0.0
        %698 = vmatpush1.msra.mxu0 0.0
        %699 = vmatprep.subr.mxu0 0.0
        %700 = vmatpush1.msra.mxu0 0.0
        %701 = vmatprep.subr.mxu0 0.0
        %702 = vmatpush1.msra.mxu0 0.0
        %703 = vmatprep.subr.mxu0 0.0
        %704 = vmatpush1.msra.mxu0 0.0
        %705 = vmatprep.subr.mxu0 0.0
        %706 = vmatpush1.msra.mxu0 0.0
        %707 = vmatprep.subr.mxu0 0.0
        %708 = vmatpush1.msra.mxu0 0.0
        %709 = vmatprep.subr.mxu0 0.0
        %710 = vmatpush1.msra.mxu0 0.0
        %711 = vmatprep.subr.mxu0 0.0
        %712 = vmatpush1.msra.mxu0 0.0
        %713 = vmatprep.subr.mxu0 0.0
        %714 = vmatpush1.msra.mxu0 0.0
        %715 = vmatprep.subr.mxu0 0.0
        %716 = vmatpush1.msra.mxu0 0.0
        %717 = vmatprep.subr.mxu0 0.0
        %718 = vmatpush1.msra.mxu0 0.0
        %719 = vmatprep.subr.mxu0 0.0
        %720 = vmatpush1.msra.mxu0 0.0
        %721 = vmatprep.subr.mxu0 0.0
        %722 = vmatpush1.msra.mxu0 0.0
        %723 = vmatprep.subr.mxu0 0.0
        %724 = vmatpush1.msra.mxu0 0.0
        %725 = vmatprep.subr.mxu0 0.0
        %726 = vmatpush1.msra.mxu0 0.0
        %727 = vmatprep.subr.mxu0 0.0
        %728 = vmatpush1.msra.mxu0 %v695
        %729 = vmatprep.subr.mxu0 0.0
        %730 = vmatpush2.msra.mxu0 0.0
        %731 = vmatprep.subr.mxu0 0.0
        %732 = vmatpush2.msra.mxu0 0.0
        %733 = vmatprep.subr.mxu0 0.0
        %734 = vmatpush2.msra.mxu0 0.0
        %735 = vmatprep.subr.mxu0 0.0
        %736 = vmatpush2.msra.mxu0 0.0
        %737 = vmatprep.subr.mxu0 0.0
        %738 = vmatpush2.msra.mxu0 0.0
        %739 = vmatprep.subr.mxu0 0.0
        %740 = vmatpush2.msra.mxu0 0.0
        %741 = vmatprep.subr.mxu0 0.0
        %742 = vmatpush2.msra.mxu0 0.0
        %743 = vmatprep.subr.mxu0 0.0
        %744 = vmatpush2.msra.mxu0 0.0
        %745 = vmatprep.subr.mxu0 0.0
        %746 = vmatpush2.msra.mxu0 0.0
        %747 = vmatprep.subr.mxu0 0.0
        %748 = vmatpush2.msra.mxu0 0.0
        %749 = vmatprep.subr.mxu0 0.0
        %750 = vmatpush2.msra.mxu0 0.0
        %751 = vmatprep.subr.mxu0 0.0
        %752 = vmatpush2.msra.mxu0 0.0
        %753 = vmatprep.subr.mxu0 0.0
        %754 = vmatpush2.msra.mxu0 0.0
        %755 = vmatprep.subr.mxu0 0.0
        %756 = vmatpush2.msra.mxu0 0.0
        %757 = vmatprep.subr.mxu0 0.0
        %758 = vmatpush2.msra.mxu0 0.0
        %759 = vmatprep.subr.mxu0 0.0
        %760 = vmatpush2.msra.mxu0 0.0
        %761 = vmatprep.mubr.f32.mxu0 0.0
        %762 = vmatmul.mubr.f32.gmra.mxu0 %v252
        %v763 = vpop.f32.mrf.mxu0
        %v764 = vadd.f32 0.0, %v763
        %v765 = vpop.f32.mrf.mxu0
        %766 = vdwg.mxu0
        %v767 = vmax.f32 %v682, %v764
        %v769 = vsel %vm410, %v767, 0
        %771 = vmatprep.subr.mxu0 0.0
        %772 = vmatpush1.msra.mxu0 0.0
        %773 = vmatprep.subr.mxu0 0.0
        %774 = vmatpush1.msra.mxu0 0.0
        %775 = vmatprep.subr.mxu0 0.0
        %776 = vmatpush1.msra.mxu0 0.0
        %777 = vmatprep.subr.mxu0 0.0
        %778 = vmatpush1.msra.mxu0 0.0
        %779 = vmatprep.subr.mxu0 0.0
        %780 = vmatpush1.msra.mxu0 0.0
        %781 = vmatprep.subr.mxu0 0.0
        %782 = vmatpush1.msra.mxu0 0.0
        %783 = vmatprep.subr.mxu0 0.0
        %784 = vmatpush1.msra.mxu0 0.0
        %785 = vmatprep.subr.mxu0 0.0
        %786 = vmatpush1.msra.mxu0 0.0
        %787 = vmatprep.subr.mxu0 0.0
        %788 = vmatpush1.msra.mxu0 0.0
        %789 = vmatprep.subr.mxu0 0.0
        %790 = vmatpush1.msra.mxu0 0.0
        %791 = vmatprep.subr.mxu0 0.0
        %792 = vmatpush1.msra.mxu0 0.0
        %793 = vmatprep.subr.mxu0 0.0
        %794 = vmatpush1.msra.mxu0 0.0
        %795 = vmatprep.subr.mxu0 0.0
        %796 = vmatpush1.msra.mxu0 0.0
        %797 = vmatprep.subr.mxu0 0.0
        %798 = vmatpush1.msra.mxu0 0.0
        %799 = vmatprep.subr.mxu0 0.0
        %800 = vmatpush1.msra.mxu0 %v221
        %801 = vmatprep.subr.mxu0 0.0
        %802 = vmatpush1.msra.mxu0 %v220
        %803 = vmatprep.subr.mxu0 0.0
        %804 = vmatpush2.msra.mxu0 0.0
        %805 = vmatprep.subr.mxu0 0.0
        %806 = vmatpush2.msra.mxu0 0.0
        %807 = vmatprep.subr.mxu0 0.0
        %808 = vmatpush2.msra.mxu0 0.0
        %809 = vmatprep.subr.mxu0 0.0
        %810 = vmatpush2.msra.mxu0 0.0
        %811 = vmatprep.subr.mxu0 0.0
        %812 = vmatpush2.msra.mxu0 0.0
        %813 = vmatprep.subr.mxu0 0.0
        %814 = vmatpush2.msra.mxu0 0.0
        %815 = vmatprep.subr.mxu0 0.0
        %816 = vmatpush2.msra.mxu0 0.0
        %817 = vmatprep.subr.mxu0 0.0
        %818 = vmatpush2.msra.mxu0 0.0
        %819 = vmatprep.subr.mxu0 0.0
        %820 = vmatpush2.msra.mxu0 0.0
        %821 = vmatprep.subr.mxu0 0.0
        %822 = vmatpush2.msra.mxu0 0.0
        %823 = vmatprep.subr.mxu0 0.0
        %824 = vmatpush2.msra.mxu0 0.0
        %825 = vmatprep.subr.mxu0 0.0
        %826 = vmatpush2.msra.mxu0 0.0
        %827 = vmatprep.subr.mxu0 0.0
        %828 = vmatpush2.msra.mxu0 0.0
        %829 = vmatprep.subr.mxu0 0.0
        %830 = vmatpush2.msra.mxu0 0.0
        %831 = vmatprep.subr.mxu0 0.0
        %832 = vmatpush2.msra.mxu0 0.0
        %833 = vmatprep.subr.mxu0 0.0
        %834 = vmatpush2.msra.mxu0 0.0
        %835 = vmatprep.mubr.f32.mxu0 0.0
        %836 = vmatmul.mubr.f32.gmra.mxu0 %v769
        %v837 = vpop.f32.mrf.mxu0
        %v838 = vadd.f32 0.0, %v837
        %v839 = vpop.f32.mrf.mxu0
        %840 = vdwg.mxu0
        %841 = vmatprep.subr.mxu0 0.0
        %842 = vmatpush1.msra.mxu0 0.0
        %843 = vmatprep.subr.mxu0 0.0
        %844 = vmatpush1.msra.mxu0 0.0
        %845 = vmatprep.subr.mxu0 0.0
        %846 = vmatpush1.msra.mxu0 0.0
        %847 = vmatprep.subr.mxu0 0.0
        %848 = vmatpush1.msra.mxu0 0.0
        %849 = vmatprep.subr.mxu0 0.0
        %850 = vmatpush1.msra.mxu0 0.0
        %851 = vmatprep.subr.mxu0 0.0
        %852 = vmatpush1.msra.mxu0 0.0
        %853 = vmatprep.subr.mxu0 0.0
        %854 = vmatpush1.msra.mxu0 0.0
        %855 = vmatprep.subr.mxu0 0.0
        %856 = vmatpush1.msra.mxu0 0.0
        %857 = vmatprep.subr.mxu0 0.0
        %858 = vmatpush1.msra.mxu0 0.0
        %859 = vmatprep.subr.mxu0 0.0
        %860 = vmatpush1.msra.mxu0 0.0
        %861 = vmatprep.subr.mxu0 0.0
        %862 = vmatpush1.msra.mxu0 0.0
        %863 = vmatprep.subr.mxu0 0.0
        %864 = vmatpush1.msra.mxu0 0.0
        %865 = vmatprep.subr.mxu0 0.0
        %866 = vmatpush1.msra.mxu0 0.0
        %867 = vmatprep.subr.mxu0 0.0
        %868 = vmatpush1.msra.mxu0 0.0
        %869 = vmatprep.subr.mxu0 0.0
        %870 = vmatpush1.msra.mxu0 %v228
        %871 = vmatprep.subr.mxu0 0.0
        %872 = vmatpush1.msra.mxu0 %v227
        %873 = vmatprep.subr.mxu0 0.0
        %874 = vmatpush2.msra.mxu0 0.0
        %875 = vmatprep.subr.mxu0 0.0
        %876 = vmatpush2.msra.mxu0 0.0
        %877 = vmatprep.subr.mxu0 0.0
        %878 = vmatpush2.msra.mxu0 0.0
        %879 = vmatprep.subr.mxu0 0.0
        %880 = vmatpush2.msra.mxu0 0.0
        %881 = vmatprep.subr.mxu0 0.0
        %882 = vmatpush2.msra.mxu0 0.0
        %883 = vmatprep.subr.mxu0 0.0
        %884 = vmatpush2.msra.mxu0 0.0
        %885 = vmatprep.subr.mxu0 0.0
        %886 = vmatpush2.msra.mxu0 0.0
        %887 = vmatprep.subr.mxu0 0.0
        %888 = vmatpush2.msra.mxu0 0.0
        %889 = vmatprep.subr.mxu0 0.0
        %890 = vmatpush2.msra.mxu0 0.0
        %891 = vmatprep.subr.mxu0 0.0
        %892 = vmatpush2.msra.mxu0 0.0
        %893 = vmatprep.subr.mxu0 0.0
        %894 = vmatpush2.msra.mxu0 0.0
        %895 = vmatprep.subr.mxu0 0.0
        %896 = vmatpush2.msra.mxu0 0.0
        %897 = vmatprep.subr.mxu0 0.0
        %898 = vmatpush2.msra.mxu0 0.0
        %899 = vmatprep.subr.mxu0 0.0
        %900 = vmatpush2.msra.mxu0 0.0
        %901 = vmatprep.subr.mxu0 0.0
        %902 = vmatpush2.msra.mxu0 0.0
        %903 = vmatprep.subr.mxu0 0.0
        %904 = vmatpush2.msra.mxu0 0.0
        %905 = vmatprep.mubr.f32.mxu0 0.0
        %906 = vmatmul.mubr.f32.gmra.mxu0 %v769
        %v907 = vpop.f32.mrf.mxu0
        %v908 = vadd.f32 0.0, %v907
        %v909 = vpop.f32.mrf.mxu0
        %910 = vdwg.mxu0
        %v911 = vmax.f32 %v838, %v908
        %v912 = vadd.f32 %v911, %v558
        %v913 = vxor.u32 %v912, 2147483648
        %v914 = vmul.f32 %v913, 1.442695
        %v915 = vpow.pop %v914
        %v916 = vadd.f32 %v915, 1.0
        %v917 = vrcp.pop %v916
        %v918 = vmul.f32 1.0, %v917
        %v921 = vunpack.c.l.s4 1966171168
        %v922 = vunpack.c.0.s8 %v921
        %v923 = vlaneseq
        %v924 = vshrl.u32 %v923, 7
        %v925 = vsub.s32 %v922, %v924
        %v926 = vrot.slane %v918, %v925
        %v927 = vcombine.high %v926, %v926
        %v929 = vunpack.c.l.s4 1966171168
        %v930 = vunpack.c.0.s8 %v929
        %v931 = vlaneseq
        %v932 = vshrl.u32 %v931, 7
        %v933 = vsub.s32 %v930, %v932
        %v934 = vrot.slane %v926, %v933
        %v936 = vunpack.c.l.s4 1966171168
        %v937 = vunpack.c.0.s8 %v936
        %v938 = vlaneseq
        %v939 = vshrl.u32 %v938, 7
        %v940 = vsub.s32 %v937, %v939
        %v941 = vrot.slane %v927, %v940
        %944 = vst.msk [vmem:[%s206 + $0x1] sm:$0x1] %vm592, %v934
        %945 = vst.msk [vmem:[%s206 + $0x9] sm:$0x1] %vm592, %v941
        %v946 = vld [vmem:[%s184 + $0x4] sm:$0x1]
        %v947 = vld [vmem:[%s184 + $0x14] sm:$0x1]
        %v948 = vld [vmem:[%s184 + $0x24] sm:$0x1]
        %v949 = vld [vmem:[%s184 + $0x34] sm:$0x1]
        %v950 = vld [vmem:[%s184 + $0x5] sm:$0x1]
        %v951 = vld [vmem:[%s184 + $0x15] sm:$0x1]
        %v952 = vld [vmem:[%s184 + $0x25] sm:$0x1]
        %v953 = vld [vmem:[%s184 + $0x35] sm:$0x1]
        %v958 = vrot.slane %v947, 7
        %v959 = vsel %vm242, %v958, %v946
        %v960 = vrot.slane %v948, 6
        %v961 = vsel %vm245, %v960, %v959
        %v962 = vrot.slane %v949, 5
        %v963 = vsel %vm248, %v962, %v961
        %v964 = vsel %vm254, %v963, 0
        %966 = vmatprep.subr.mxu0 0.0
        %967 = vmatpush1.msra.mxu0 0.0
        %968 = vmatprep.subr.mxu0 0.0
        %969 = vmatpush1.msra.mxu0 0.0
        %970 = vmatprep.subr.mxu0 0.0
        %971 = vmatpush1.msra.mxu0 0.0
        %972 = vmatprep.subr.mxu0 0.0
        %973 = vmatpush1.msra.mxu0 0.0
        %974 = vmatprep.subr.mxu0 0.0
        %975 = vmatpush1.msra.mxu0 0.0
        %976 = vmatprep.subr.mxu0 0.0
        %977 = vmatpush1.msra.mxu0 0.0
        %978 = vmatprep.subr.mxu0 0.0
        %979 = vmatpush1.msra.mxu0 0.0
        %980 = vmatprep.subr.mxu0 0.0
        %981 = vmatpush1.msra.mxu0 0.0
        %982 = vmatprep.subr.mxu0 0.0
        %983 = vmatpush1.msra.mxu0 0.0
        %984 = vmatprep.subr.mxu0 0.0
        %985 = vmatpush1.msra.mxu0 0.0
        %986 = vmatprep.subr.mxu0 0.0
        %987 = vmatpush1.msra.mxu0 0.0
        %988 = vmatprep.subr.mxu0 0.0
        %989 = vmatpush1.msra.mxu0 0.0
        %990 = vmatprep.subr.mxu0 0.0
        %991 = vmatpush1.msra.mxu0 0.0
        %992 = vmatprep.subr.mxu0 0.0
        %993 = vmatpush1.msra.mxu0 0.0
        %994 = vmatprep.subr.mxu0 0.0
        %995 = vmatpush1.msra.mxu0 0.0
        %996 = vmatprep.subr.mxu0 0.0
        %997 = vmatpush1.msra.mxu0 %v964
        %998 = vmatprep.subr.mxu0 0.0
        %999 = vmatpush2.msra.mxu0 0.0
        %1000 = vmatprep.subr.mxu0 0.0
        %1001 = vmatpush2.msra.mxu0 0.0
        %1002 = vmatprep.subr.mxu0 0.0
        %1003 = vmatpush2.msra.mxu0 0.0
        %1004 = vmatprep.subr.mxu0 0.0
        %1005 = vmatpush2.msra.mxu0 0.0
        %1006 = vmatprep.subr.mxu0 0.0
        %1007 = vmatpush2.msra.mxu0 0.0
        %1008 = vmatprep.subr.mxu0 0.0
        %1009 = vmatpush2.msra.mxu0 0.0
        %1010 = vmatprep.subr.mxu0 0.0
        %1011 = vmatpush2.msra.mxu0 0.0
        %1012 = vmatprep.subr.mxu0 0.0
        %1013 = vmatpush2.msra.mxu0 0.0
        %1014 = vmatprep.subr.mxu0 0.0
        %1015 = vmatpush2.msra.mxu0 0.0
        %1016 = vmatprep.subr.mxu0 0.0
        %1017 = vmatpush2.msra.mxu0 0.0
        %1018 = vmatprep.subr.mxu0 0.0
        %1019 = vmatpush2.msra.mxu0 0.0
        %1020 = vmatprep.subr.mxu0 0.0
        %1021 = vmatpush2.msra.mxu0 0.0
        %1022 = vmatprep.subr.mxu0 0.0
        %1023 = vmatpush2.msra.mxu0 0.0
        %1024 = vmatprep.subr.mxu0 0.0
        %1025 = vmatpush2.msra.mxu0 0.0
        %1026 = vmatprep.subr.mxu0 0.0
        %1027 = vmatpush2.msra.mxu0 0.0
        %1028 = vmatprep.subr.mxu0 0.0
        %1029 = vmatpush2.msra.mxu0 0.0
        %1030 = vmatprep.mubr.f32.mxu0 0.0
        %1031 = vmatmul.mubr.f32.gmra.mxu0 %v252
        %v1032 = vpop.f32.mrf.mxu0
        %v1033 = vadd.f32 0.0, %v1032
        %v1034 = vpop.f32.mrf.mxu0
        %1035 = vdwg.mxu0
        %v1040 = vrot.slane %v951, 7
        %v1041 = vsel %vm242, %v1040, %v950
        %v1042 = vrot.slane %v952, 6
        %v1043 = vsel %vm245, %v1042, %v1041
        %v1044 = vrot.slane %v953, 5
        %v1045 = vsel %vm248, %v1044, %v1043
        %v1046 = vsel %vm254, %v1045, 0
        %1048 = vmatprep.subr.mxu0 0.0
        %1049 = vmatpush1.msra.mxu0 0.0
        %1050 = vmatprep.subr.mxu0 0.0
        %1051 = vmatpush1.msra.mxu0 0.0
        %1052 = vmatprep.subr.mxu0 0.0
        %1053 = vmatpush1.msra.mxu0 0.0
        %1054 = vmatprep.subr.mxu0 0.0
        %1055 = vmatpush1.msra.mxu0 0.0
        %1056 = vmatprep.subr.mxu0 0.0
        %1057 = vmatpush1.msra.mxu0 0.0
        %1058 = vmatprep.subr.mxu0 0.0
        %1059 = vmatpush1.msra.mxu0 0.0
        %1060 = vmatprep.subr.mxu0 0.0
        %1061 = vmatpush1.msra.mxu0 0.0
        %1062 = vmatprep.subr.mxu0 0.0
        %1063 = vmatpush1.msra.mxu0 0.0
        %1064 = vmatprep.subr.mxu0 0.0
        %1065 = vmatpush1.msra.mxu0 0.0
        %1066 = vmatprep.subr.mxu0 0.0
        %1067 = vmatpush1.msra.mxu0 0.0
        %1068 = vmatprep.subr.mxu0 0.0
        %1069 = vmatpush1.msra.mxu0 0.0
        %1070 = vmatprep.subr.mxu0 0.0
        %1071 = vmatpush1.msra.mxu0 0.0
        %1072 = vmatprep.subr.mxu0 0.0
        %1073 = vmatpush1.msra.mxu0 0.0
        %1074 = vmatprep.subr.mxu0 0.0
        %1075 = vmatpush1.msra.mxu0 0.0
        %1076 = vmatprep.subr.mxu0 0.0
        %1077 = vmatpush1.msra.mxu0 0.0
        %1078 = vmatprep.subr.mxu0 0.0
        %1079 = vmatpush1.msra.mxu0 %v1046
        %1080 = vmatprep.subr.mxu0 0.0
        %1081 = vmatpush2.msra.mxu0 0.0
        %1082 = vmatprep.subr.mxu0 0.0
        %1083 = vmatpush2.msra.mxu0 0.0
        %1084 = vmatprep.subr.mxu0 0.0
        %1085 = vmatpush2.msra.mxu0 0.0
        %1086 = vmatprep.subr.mxu0 0.0
        %1087 = vmatpush2.msra.mxu0 0.0
        %1088 = vmatprep.subr.mxu0 0.0
        %1089 = vmatpush2.msra.mxu0 0.0
        %1090 = vmatprep.subr.mxu0 0.0
        %1091 = vmatpush2.msra.mxu0 0.0
        %1092 = vmatprep.subr.mxu0 0.0
        %1093 = vmatpush2.msra.mxu0 0.0
        %1094 = vmatprep.subr.mxu0 0.0
        %1095 = vmatpush2.msra.mxu0 0.0
        %1096 = vmatprep.subr.mxu0 0.0
        %1097 = vmatpush2.msra.mxu0 0.0
        %1098 = vmatprep.subr.mxu0 0.0
        %1099 = vmatpush2.msra.mxu0 0.0
        %1100 = vmatprep.subr.mxu0 0.0
        %1101 = vmatpush2.msra.mxu0 0.0
        %1102 = vmatprep.subr.mxu0 0.0
        %1103 = vmatpush2.msra.mxu0 0.0
        %1104 = vmatprep.subr.mxu0 0.0
        %1105 = vmatpush2.msra.mxu0 0.0
        %1106 = vmatprep.subr.mxu0 0.0
        %1107 = vmatpush2.msra.mxu0 0.0
        %1108 = vmatprep.subr.mxu0 0.0
        %1109 = vmatpush2.msra.mxu0 0.0
        %1110 = vmatprep.subr.mxu0 0.0
        %1111 = vmatpush2.msra.mxu0 0.0
        %1112 = vmatprep.mubr.f32.mxu0 0.0
        %1113 = vmatmul.mubr.f32.gmra.mxu0 %v252
        %v1114 = vpop.f32.mrf.mxu0
        %v1115 = vadd.f32 0.0, %v1114
        %v1116 = vpop.f32.mrf.mxu0
        %1117 = vdwg.mxu0
        %v1118 = vmax.f32 %v1033, %v1115
        %v1120 = vsel %vm410, %v1118, 0
        %1122 = vmatprep.subr.mxu0 0.0
        %1123 = vmatpush1.msra.mxu0 0.0
        %1124 = vmatprep.subr.mxu0 0.0
        %1125 = vmatpush1.msra.mxu0 0.0
        %1126 = vmatprep.subr.mxu0 0.0
        %1127 = vmatpush1.msra.mxu0 0.0
        %1128 = vmatprep.subr.mxu0 0.0
        %1129 = vmatpush1.msra.mxu0 0.0
        %1130 = vmatprep.subr.mxu0 0.0
        %1131 = vmatpush1.msra.mxu0 0.0
        %1132 = vmatprep.subr.mxu0 0.0
        %1133 = vmatpush1.msra.mxu0 0.0
        %1134 = vmatprep.subr.mxu0 0.0
        %1135 = vmatpush1.msra.mxu0 0.0
        %1136 = vmatprep.subr.mxu0 0.0
        %1137 = vmatpush1.msra.mxu0 0.0
        %1138 = vmatprep.subr.mxu0 0.0
        %1139 = vmatpush1.msra.mxu0 0.0
        %1140 = vmatprep.subr.mxu0 0.0
        %1141 = vmatpush1.msra.mxu0 0.0
        %1142 = vmatprep.subr.mxu0 0.0
        %1143 = vmatpush1.msra.mxu0 0.0
        %1144 = vmatprep.subr.mxu0 0.0
        %1145 = vmatpush1.msra.mxu0 0.0
        %1146 = vmatprep.subr.mxu0 0.0
        %1147 = vmatpush1.msra.mxu0 0.0
        %1148 = vmatprep.subr.mxu0 0.0
        %1149 = vmatpush1.msra.mxu0 0.0
        %1150 = vmatprep.subr.mxu0 0.0
        %1151 = vmatpush1.msra.mxu0 %v221
        %1152 = vmatprep.subr.mxu0 0.0
        %1153 = vmatpush1.msra.mxu0 %v220
        %1154 = vmatprep.subr.mxu0 0.0
        %1155 = vmatpush2.msra.mxu0 0.0
        %1156 = vmatprep.subr.mxu0 0.0
        %1157 = vmatpush2.msra.mxu0 0.0
        %1158 = vmatprep.subr.mxu0 0.0
        %1159 = vmatpush2.msra.mxu0 0.0
        %1160 = vmatprep.subr.mxu0 0.0
        %1161 = vmatpush2.msra.mxu0 0.0
        %1162 = vmatprep.subr.mxu0 0.0
        %1163 = vmatpush2.msra.mxu0 0.0
        %1164 = vmatprep.subr.mxu0 0.0
        %1165 = vmatpush2.msra.mxu0 0.0
        %1166 = vmatprep.subr.mxu0 0.0
        %1167 = vmatpush2.msra.mxu0 0.0
        %1168 = vmatprep.subr.mxu0 0.0
        %1169 = vmatpush2.msra.mxu0 0.0
        %1170 = vmatprep.subr.mxu0 0.0
        %1171 = vmatpush2.msra.mxu0 0.0
        %1172 = vmatprep.subr.mxu0 0.0
        %1173 = vmatpush2.msra.mxu0 0.0
        %1174 = vmatprep.subr.mxu0 0.0
        %1175 = vmatpush2.msra.mxu0 0.0
        %1176 = vmatprep.subr.mxu0 0.0
        %1177 = vmatpush2.msra.mxu0 0.0
        %1178 = vmatprep.subr.mxu0 0.0
        %1179 = vmatpush2.msra.mxu0 0.0
        %1180 = vmatprep.subr.mxu0 0.0
        %1181 = vmatpush2.msra.mxu0 0.0
        %1182 = vmatprep.subr.mxu0 0.0
        %1183 = vmatpush2.msra.mxu0 0.0
        %1184 = vmatprep.subr.mxu0 0.0
        %1185 = vmatpush2.msra.mxu0 0.0
        %1186 = vmatprep.mubr.f32.mxu0 0.0
        %1187 = vmatmul.mubr.f32.gmra.mxu0 %v1120
        %v1188 = vpop.f32.mrf.mxu0
        %v1189 = vadd.f32 0.0, %v1188
        %v1190 = vpop.f32.mrf.mxu0
        %1191 = vdwg.mxu0
        %1192 = vmatprep.subr.mxu0 0.0
        %1193 = vmatpush1.msra.mxu0 0.0
        %1194 = vmatprep.subr.mxu0 0.0
        %1195 = vmatpush1.msra.mxu0 0.0
        %1196 = vmatprep.subr.mxu0 0.0
        %1197 = vmatpush1.msra.mxu0 0.0
        %1198 = vmatprep.subr.mxu0 0.0
        %1199 = vmatpush1.msra.mxu0 0.0
        %1200 = vmatprep.subr.mxu0 0.0
        %1201 = vmatpush1.msra.mxu0 0.0
        %1202 = vmatprep.subr.mxu0 0.0
        %1203 = vmatpush1.msra.mxu0 0.0
        %1204 = vmatprep.subr.mxu0 0.0
        %1205 = vmatpush1.msra.mxu0 0.0
        %1206 = vmatprep.subr.mxu0 0.0
        %1207 = vmatpush1.msra.mxu0 0.0
        %1208 = vmatprep.subr.mxu0 0.0
        %1209 = vmatpush1.msra.mxu0 0.0
        %1210 = vmatprep.subr.mxu0 0.0
        %1211 = vmatpush1.msra.mxu0 0.0
        %1212 = vmatprep.subr.mxu0 0.0
        %1213 = vmatpush1.msra.mxu0 0.0
        %1214 = vmatprep.subr.mxu0 0.0
        %1215 = vmatpush1.msra.mxu0 0.0
        %1216 = vmatprep.subr.mxu0 0.0
        %1217 = vmatpush1.msra.mxu0 0.0
        %1218 = vmatprep.subr.mxu0 0.0
        %1219 = vmatpush1.msra.mxu0 0.0
        %1220 = vmatprep.subr.mxu0 0.0
        %1221 = vmatpush1.msra.mxu0 %v228
        %1222 = vmatprep.subr.mxu0 0.0
        %1223 = vmatpush1.msra.mxu0 %v227
        %1224 = vmatprep.subr.mxu0 0.0
        %1225 = vmatpush2.msra.mxu0 0.0
        %1226 = vmatprep.subr.mxu0 0.0
        %1227 = vmatpush2.msra.mxu0 0.0
        %1228 = vmatprep.subr.mxu0 0.0
        %1229 = vmatpush2.msra.mxu0 0.0
        %1230 = vmatprep.subr.mxu0 0.0
        %1231 = vmatpush2.msra.mxu0 0.0
        %1232 = vmatprep.subr.mxu0 0.0
        %1233 = vmatpush2.msra.mxu0 0.0
        %1234 = vmatprep.subr.mxu0 0.0
        %1235 = vmatpush2.msra.mxu0 0.0
        %1236 = vmatprep.subr.mxu0 0.0
        %1237 = vmatpush2.msra.mxu0 0.0
        %1238 = vmatprep.subr.mxu0 0.0
        %1239 = vmatpush2.msra.mxu0 0.0
        %1240 = vmatprep.subr.mxu0 0.0
        %1241 = vmatpush2.msra.mxu0 0.0
        %1242 = vmatprep.subr.mxu0 0.0
        %1243 = vmatpush2.msra.mxu0 0.0
        %1244 = vmatprep.subr.mxu0 0.0
        %1245 = vmatpush2.msra.mxu0 0.0
        %1246 = vmatprep.subr.mxu0 0.0
        %1247 = vmatpush2.msra.mxu0 0.0
        %1248 = vmatprep.subr.mxu0 0.0
        %1249 = vmatpush2.msra.mxu0 0.0
        %1250 = vmatprep.subr.mxu0 0.0
        %1251 = vmatpush2.msra.mxu0 0.0
        %1252 = vmatprep.subr.mxu0 0.0
        %1253 = vmatpush2.msra.mxu0 0.0
        %1254 = vmatprep.subr.mxu0 0.0
        %1255 = vmatpush2.msra.mxu0 0.0
        %1256 = vmatprep.mubr.f32.mxu0 0.0
        %1257 = vmatmul.mubr.f32.gmra.mxu0 %v1120
        %v1258 = vpop.f32.mrf.mxu0
        %v1259 = vadd.f32 0.0, %v1258
        %v1260 = vpop.f32.mrf.mxu0
        %1261 = vdwg.mxu0
        %v1262 = vmax.f32 %v1189, %v1259
        %v1263 = vadd.f32 %v1262, %v558
        %v1264 = vxor.u32 %v1263, 2147483648
        %v1265 = vmul.f32 %v1264, 1.442695
        %v1266 = vpow.pop %v1265
        %v1267 = vadd.f32 %v1266, 1.0
        %v1268 = vrcp.pop %v1267
        %v1269 = vmul.f32 1.0, %v1268
        %v1272 = vunpack.c.l.s4 1966171168
        %v1273 = vunpack.c.0.s8 %v1272
        %v1274 = vlaneseq
        %v1275 = vshrl.u32 %v1274, 7
        %v1276 = vsub.s32 %v1273, %v1275
        %v1277 = vrot.slane %v1269, %v1276
        %v1278 = vcombine.high %v1277, %v1277
        %v1280 = vunpack.c.l.s4 1966171168
        %v1281 = vunpack.c.0.s8 %v1280
        %v1282 = vlaneseq
        %v1283 = vshrl.u32 %v1282, 7
        %v1284 = vsub.s32 %v1281, %v1283
        %v1285 = vrot.slane %v1277, %v1284
        %v1287 = vunpack.c.l.s4 1966171168
        %v1288 = vunpack.c.0.s8 %v1287
        %v1289 = vlaneseq
        %v1290 = vshrl.u32 %v1289, 7
        %v1291 = vsub.s32 %v1288, %v1290
        %v1292 = vrot.slane %v1278, %v1291
        %1295 = vst.msk [vmem:[%s206 + $0x2] sm:$0x1] %vm592, %v1285
        %1296 = vst.msk [vmem:[%s206 + $0xa] sm:$0x1] %vm592, %v1292
        %v1297 = vld [vmem:[%s184 + $0x6] sm:$0x1]
        %v1298 = vld [vmem:[%s184 + $0x16] sm:$0x1]
        %v1299 = vld [vmem:[%s184 + $0x26] sm:$0x1]
        %v1300 = vld [vmem:[%s184 + $0x36] sm:$0x1]
        %v1301 = vld [vmem:[%s184 + $0x7] sm:$0x1]
        %v1302 = vld [vmem:[%s184 + $0x17] sm:$0x1]
        %v1303 = vld [vmem:[%s184 + $0x27] sm:$0x1]
        %v1304 = vld [vmem:[%s184 + $0x37] sm:$0x1]
        %v1309 = vrot.slane %v1298, 7
        %v1310 = vsel %vm242, %v1309, %v1297
        %v1311 = vrot.slane %v1299, 6
        %v1312 = vsel %vm245, %v1311, %v1310
        %v1313 = vrot.slane %v1300, 5
        %v1314 = vsel %vm248, %v1313, %v1312
        %v1315 = vsel %vm254, %v1314, 0
        %1317 = vmatprep.subr.mxu0 0.0
        %1318 = vmatpush1.msra.mxu0 0.0
        %1319 = vmatprep.subr.mxu0 0.0
        %1320 = vmatpush1.msra.mxu0 0.0
        %1321 = vmatprep.subr.mxu0 0.0
        %1322 = vmatpush1.msra.mxu0 0.0
        %1323 = vmatprep.subr.mxu0 0.0
        %1324 = vmatpush1.msra.mxu0 0.0
        %1325 = vmatprep.subr.mxu0 0.0
        %1326 = vmatpush1.msra.mxu0 0.0
        %1327 = vmatprep.subr.mxu0 0.0
        %1328 = vmatpush1.msra.mxu0 0.0
        %1329 = vmatprep.subr.mxu0 0.0
        %1330 = vmatpush1.msra.mxu0 0.0
        %1331 = vmatprep.subr.mxu0 0.0
        %1332 = vmatpush1.msra.mxu0 0.0
        %1333 = vmatprep.subr.mxu0 0.0
        %1334 = vmatpush1.msra.mxu0 0.0
        %1335 = vmatprep.subr.mxu0 0.0
        %1336 = vmatpush1.msra.mxu0 0.0
        %1337 = vmatprep.subr.mxu0 0.0
        %1338 = vmatpush1.msra.mxu0 0.0
        %1339 = vmatprep.subr.mxu0 0.0
        %1340 = vmatpush1.msra.mxu0 0.0
        %1341 = vmatprep.subr.mxu0 0.0
        %1342 = vmatpush1.msra.mxu0 0.0
        %1343 = vmatprep.subr.mxu0 0.0
        %1344 = vmatpush1.msra.mxu0 0.0
        %1345 = vmatprep.subr.mxu0 0.0
        %1346 = vmatpush1.msra.mxu0 0.0
        %1347 = vmatprep.subr.mxu0 0.0
        %1348 = vmatpush1.msra.mxu0 %v1315
        %1349 = vmatprep.subr.mxu0 0.0
        %1350 = vmatpush2.msra.mxu0 0.0
        %1351 = vmatprep.subr.mxu0 0.0
        %1352 = vmatpush2.msra.mxu0 0.0
        %1353 = vmatprep.subr.mxu0 0.0
        %1354 = vmatpush2.msra.mxu0 0.0
        %1355 = vmatprep.subr.mxu0 0.0
        %1356 = vmatpush2.msra.mxu0 0.0
        %1357 = vmatprep.subr.mxu0 0.0
        %1358 = vmatpush2.msra.mxu0 0.0
        %1359 = vmatprep.subr.mxu0 0.0
        %1360 = vmatpush2.msra.mxu0 0.0
        %1361 = vmatprep.subr.mxu0 0.0
        %1362 = vmatpush2.msra.mxu0 0.0
        %1363 = vmatprep.subr.mxu0 0.0
        %1364 = vmatpush2.msra.mxu0 0.0
        %1365 = vmatprep.subr.mxu0 0.0
        %1366 = vmatpush2.msra.mxu0 0.0
        %1367 = vmatprep.subr.mxu0 0.0
        %1368 = vmatpush2.msra.mxu0 0.0
        %1369 = vmatprep.subr.mxu0 0.0
        %1370 = vmatpush2.msra.mxu0 0.0
        %1371 = vmatprep.subr.mxu0 0.0
        %1372 = vmatpush2.msra.mxu0 0.0
        %1373 = vmatprep.subr.mxu0 0.0
        %1374 = vmatpush2.msra.mxu0 0.0
        %1375 = vmatprep.subr.mxu0 0.0
        %1376 = vmatpush2.msra.mxu0 0.0
        %1377 = vmatprep.subr.mxu0 0.0
        %1378 = vmatpush2.msra.mxu0 0.0
        %1379 = vmatprep.subr.mxu0 0.0
        %1380 = vmatpush2.msra.mxu0 0.0
        %1381 = vmatprep.mubr.f32.mxu0 0.0
        %1382 = vmatmul.mubr.f32.gmra.mxu0 %v252
        %v1383 = vpop.f32.mrf.mxu0
        %v1384 = vadd.f32 0.0, %v1383
        %v1385 = vpop.f32.mrf.mxu0
        %1386 = vdwg.mxu0
        %v1391 = vrot.slane %v1302, 7
        %v1392 = vsel %vm242, %v1391, %v1301
        %v1393 = vrot.slane %v1303, 6
        %v1394 = vsel %vm245, %v1393, %v1392
        %v1395 = vrot.slane %v1304, 5
        %v1396 = vsel %vm248, %v1395, %v1394
        %v1397 = vsel %vm254, %v1396, 0
        %1399 = vmatprep.subr.mxu0 0.0
        %1400 = vmatpush1.msra.mxu0 0.0
        %1401 = vmatprep.subr.mxu0 0.0
        %1402 = vmatpush1.msra.mxu0 0.0
        %1403 = vmatprep.subr.mxu0 0.0
        %1404 = vmatpush1.msra.mxu0 0.0
        %1405 = vmatprep.subr.mxu0 0.0
        %1406 = vmatpush1.msra.mxu0 0.0
        %1407 = vmatprep.subr.mxu0 0.0
        %1408 = vmatpush1.msra.mxu0 0.0
        %1409 = vmatprep.subr.mxu0 0.0
        %1410 = vmatpush1.msra.mxu0 0.0
        %1411 = vmatprep.subr.mxu0 0.0
        %1412 = vmatpush1.msra.mxu0 0.0
        %1413 = vmatprep.subr.mxu0 0.0
        %1414 = vmatpush1.msra.mxu0 0.0
        %1415 = vmatprep.subr.mxu0 0.0
        %1416 = vmatpush1.msra.mxu0 0.0
        %1417 = vmatprep.subr.mxu0 0.0
        %1418 = vmatpush1.msra.mxu0 0.0
        %1419 = vmatprep.subr.mxu0 0.0
        %1420 = vmatpush1.msra.mxu0 0.0
        %1421 = vmatprep.subr.mxu0 0.0
        %1422 = vmatpush1.msra.mxu0 0.0
        %1423 = vmatprep.subr.mxu0 0.0
        %1424 = vmatpush1.msra.mxu0 0.0
        %1425 = vmatprep.subr.mxu0 0.0
        %1426 = vmatpush1.msra.mxu0 0.0
        %1427 = vmatprep.subr.mxu0 0.0
        %1428 = vmatpush1.msra.mxu0 0.0
        %1429 = vmatprep.subr.mxu0 0.0
        %1430 = vmatpush1.msra.mxu0 %v1397
        %1431 = vmatprep.subr.mxu0 0.0
        %1432 = vmatpush2.msra.mxu0 0.0
        %1433 = vmatprep.subr.mxu0 0.0
        %1434 = vmatpush2.msra.mxu0 0.0
        %1435 = vmatprep.subr.mxu0 0.0
        %1436 = vmatpush2.msra.mxu0 0.0
        %1437 = vmatprep.subr.mxu0 0.0
        %1438 = vmatpush2.msra.mxu0 0.0
        %1439 = vmatprep.subr.mxu0 0.0
        %1440 = vmatpush2.msra.mxu0 0.0
        %1441 = vmatprep.subr.mxu0 0.0
        %1442 = vmatpush2.msra.mxu0 0.0
        %1443 = vmatprep.subr.mxu0 0.0
        %1444 = vmatpush2.msra.mxu0 0.0
        %1445 = vmatprep.subr.mxu0 0.0
        %1446 = vmatpush2.msra.mxu0 0.0
        %1447 = vmatprep.subr.mxu0 0.0
        %1448 = vmatpush2.msra.mxu0 0.0
        %1449 = vmatprep.subr.mxu0 0.0
        %1450 = vmatpush2.msra.mxu0 0.0
        %1451 = vmatprep.subr.mxu0 0.0
        %1452 = vmatpush2.msra.mxu0 0.0
        %1453 = vmatprep.subr.mxu0 0.0
        %1454 = vmatpush2.msra.mxu0 0.0
        %1455 = vmatprep.subr.mxu0 0.0
        %1456 = vmatpush2.msra.mxu0 0.0
        %1457 = vmatprep.subr.mxu0 0.0
        %1458 = vmatpush2.msra.mxu0 0.0
        %1459 = vmatprep.subr.mxu0 0.0
        %1460 = vmatpush2.msra.mxu0 0.0
        %1461 = vmatprep.subr.mxu0 0.0
        %1462 = vmatpush2.msra.mxu0 0.0
        %1463 = vmatprep.mubr.f32.mxu0 0.0
        %1464 = vmatmul.mubr.f32.gmra.mxu0 %v252
        %v1465 = vpop.f32.mrf.mxu0
        %v1466 = vadd.f32 0.0, %v1465
        %v1467 = vpop.f32.mrf.mxu0
        %1468 = vdwg.mxu0
        %v1469 = vmax.f32 %v1384, %v1466
        %v1471 = vsel %vm410, %v1469, 0
        %1473 = vmatprep.subr.mxu0 0.0
        %1474 = vmatpush1.msra.mxu0 0.0
        %1475 = vmatprep.subr.mxu0 0.0
        %1476 = vmatpush1.msra.mxu0 0.0
        %1477 = vmatprep.subr.mxu0 0.0
        %1478 = vmatpush1.msra.mxu0 0.0
        %1479 = vmatprep.subr.mxu0 0.0
        %1480 = vmatpush1.msra.mxu0 0.0
        %1481 = vmatprep.subr.mxu0 0.0
        %1482 = vmatpush1.msra.mxu0 0.0
        %1483 = vmatprep.subr.mxu0 0.0
        %1484 = vmatpush1.msra.mxu0 0.0
        %1485 = vmatprep.subr.mxu0 0.0
        %1486 = vmatpush1.msra.mxu0 0.0
        %1487 = vmatprep.subr.mxu0 0.0
        %1488 = vmatpush1.msra.mxu0 0.0
        %1489 = vmatprep.subr.mxu0 0.0
        %1490 = vmatpush1.msra.mxu0 0.0
        %1491 = vmatprep.subr.mxu0 0.0
        %1492 = vmatpush1.msra.mxu0 0.0
        %1493 = vmatprep.subr.mxu0 0.0
        %1494 = vmatpush1.msra.mxu0 0.0
        %1495 = vmatprep.subr.mxu0 0.0
        %1496 = vmatpush1.msra.mxu0 0.0
        %1497 = vmatprep.subr.mxu0 0.0
        %1498 = vmatpush1.msra.mxu0 0.0
        %1499 = vmatprep.subr.mxu0 0.0
        %1500 = vmatpush1.msra.mxu0 0.0
        %1501 = vmatprep.subr.mxu0 0.0
        %1502 = vmatpush1.msra.mxu0 %v221
        %1503 = vmatprep.subr.mxu0 0.0
        %1504 = vmatpush1.msra.mxu0 %v220
        %1505 = vmatprep.subr.mxu0 0.0
        %1506 = vmatpush2.msra.mxu0 0.0
        %1507 = vmatprep.subr.mxu0 0.0
        %1508 = vmatpush2.msra.mxu0 0.0
        %1509 = vmatprep.subr.mxu0 0.0
        %1510 = vmatpush2.msra.mxu0 0.0
        %1511 = vmatprep.subr.mxu0 0.0
        %1512 = vmatpush2.msra.mxu0 0.0
        %1513 = vmatprep.subr.mxu0 0.0
        %1514 = vmatpush2.msra.mxu0 0.0
        %1515 = vmatprep.subr.mxu0 0.0
        %1516 = vmatpush2.msra.mxu0 0.0
        %1517 = vmatprep.subr.mxu0 0.0
        %1518 = vmatpush2.msra.mxu0 0.0
        %1519 = vmatprep.subr.mxu0 0.0
        %1520 = vmatpush2.msra.mxu0 0.0
        %1521 = vmatprep.subr.mxu0 0.0
        %1522 = vmatpush2.msra.mxu0 0.0
        %1523 = vmatprep.subr.mxu0 0.0
        %1524 = vmatpush2.msra.mxu0 0.0
        %1525 = vmatprep.subr.mxu0 0.0
        %1526 = vmatpush2.msra.mxu0 0.0
        %1527 = vmatprep.subr.mxu0 0.0
        %1528 = vmatpush2.msra.mxu0 0.0
        %1529 = vmatprep.subr.mxu0 0.0
        %1530 = vmatpush2.msra.mxu0 0.0
        %1531 = vmatprep.subr.mxu0 0.0
        %1532 = vmatpush2.msra.mxu0 0.0
        %1533 = vmatprep.subr.mxu0 0.0
        %1534 = vmatpush2.msra.mxu0 0.0
        %1535 = vmatprep.subr.mxu0 0.0
        %1536 = vmatpush2.msra.mxu0 0.0
        %1537 = vmatprep.mubr.f32.mxu0 0.0
        %1538 = vmatmul.mubr.f32.gmra.mxu0 %v1471
        %v1539 = vpop.f32.mrf.mxu0
        %v1540 = vadd.f32 0.0, %v1539
        %v1541 = vpop.f32.mrf.mxu0
        %1542 = vdwg.mxu0
        %1543 = vmatprep.subr.mxu0 0.0
        %1544 = vmatpush1.msra.mxu0 0.0
        %1545 = vmatprep.subr.mxu0 0.0
        %1546 = vmatpush1.msra.mxu0 0.0
        %1547 = vmatprep.subr.mxu0 0.0
        %1548 = vmatpush1.msra.mxu0 0.0
        %1549 = vmatprep.subr.mxu0 0.0
        %1550 = vmatpush1.msra.mxu0 0.0
        %1551 = vmatprep.subr.mxu0 0.0
        %1552 = vmatpush1.msra.mxu0 0.0
        %1553 = vmatprep.subr.mxu0 0.0
        %1554 = vmatpush1.msra.mxu0 0.0
        %1555 = vmatprep.subr.mxu0 0.0
        %1556 = vmatpush1.msra.mxu0 0.0
        %1557 = vmatprep.subr.mxu0 0.0
        %1558 = vmatpush1.msra.mxu0 0.0
        %1559 = vmatprep.subr.mxu0 0.0
        %1560 = vmatpush1.msra.mxu0 0.0
        %1561 = vmatprep.subr.mxu0 0.0
        %1562 = vmatpush1.msra.mxu0 0.0
        %1563 = vmatprep.subr.mxu0 0.0
        %1564 = vmatpush1.msra.mxu0 0.0
        %1565 = vmatprep.subr.mxu0 0.0
        %1566 = vmatpush1.msra.mxu0 0.0
        %1567 = vmatprep.subr.mxu0 0.0
        %1568 = vmatpush1.msra.mxu0 0.0
        %1569 = vmatprep.subr.mxu0 0.0
        %1570 = vmatpush1.msra.mxu0 0.0
        %1571 = vmatprep.subr.mxu0 0.0
        %1572 = vmatpush1.msra.mxu0 %v228
        %1573 = vmatprep.subr.mxu0 0.0
        %1574 = vmatpush1.msra.mxu0 %v227
        %1575 = vmatprep.subr.mxu0 0.0
        %1576 = vmatpush2.msra.mxu0 0.0
        %1577 = vmatprep.subr.mxu0 0.0
        %1578 = vmatpush2.msra.mxu0 0.0
        %1579 = vmatprep.subr.mxu0 0.0
        %1580 = vmatpush2.msra.mxu0 0.0
        %1581 = vmatprep.subr.mxu0 0.0
        %1582 = vmatpush2.msra.mxu0 0.0
        %1583 = vmatprep.subr.mxu0 0.0
        %1584 = vmatpush2.msra.mxu0 0.0
        %1585 = vmatprep.subr.mxu0 0.0
        %1586 = vmatpush2.msra.mxu0 0.0
        %1587 = vmatprep.subr.mxu0 0.0
        %1588 = vmatpush2.msra.mxu0 0.0
        %1589 = vmatprep.subr.mxu0 0.0
        %1590 = vmatpush2.msra.mxu0 0.0
        %1591 = vmatprep.subr.mxu0 0.0
        %1592 = vmatpush2.msra.mxu0 0.0
        %1593 = vmatprep.subr.mxu0 0.0
        %1594 = vmatpush2.msra.mxu0 0.0
        %1595 = vmatprep.subr.mxu0 0.0
        %1596 = vmatpush2.msra.mxu0 0.0
        %1597 = vmatprep.subr.mxu0 0.0
        %1598 = vmatpush2.msra.mxu0 0.0
        %1599 = vmatprep.subr.mxu0 0.0
        %1600 = vmatpush2.msra.mxu0 0.0
        %1601 = vmatprep.subr.mxu0 0.0
        %1602 = vmatpush2.msra.mxu0 0.0
        %1603 = vmatprep.subr.mxu0 0.0
        %1604 = vmatpush2.msra.mxu0 0.0
        %1605 = vmatprep.subr.mxu0 0.0
        %1606 = vmatpush2.msra.mxu0 0.0
        %1607 = vmatprep.mubr.f32.mxu0 0.0
        %1608 = vmatmul.mubr.f32.gmra.mxu0 %v1471
        %v1609 = vpop.f32.mrf.mxu0
        %v1610 = vadd.f32 0.0, %v1609
        %v1611 = vpop.f32.mrf.mxu0
        %1612 = vdwg.mxu0
        %v1613 = vmax.f32 %v1540, %v1610
        %v1614 = vadd.f32 %v1613, %v558
        %v1615 = vxor.u32 %v1614, 2147483648
        %v1616 = vmul.f32 %v1615, 1.442695
        %v1617 = vpow.pop %v1616
        %v1618 = vadd.f32 %v1617, 1.0
        %v1619 = vrcp.pop %v1618
        %v1620 = vmul.f32 1.0, %v1619
        %v1623 = vunpack.c.l.s4 1966171168
        %v1624 = vunpack.c.0.s8 %v1623
        %v1625 = vlaneseq
        %v1626 = vshrl.u32 %v1625, 7
        %v1627 = vsub.s32 %v1624, %v1626
        %v1628 = vrot.slane %v1620, %v1627
        %v1629 = vcombine.high %v1628, %v1628
        %v1631 = vunpack.c.l.s4 1966171168
        %v1632 = vunpack.c.0.s8 %v1631
        %v1633 = vlaneseq
        %v1634 = vshrl.u32 %v1633, 7
        %v1635 = vsub.s32 %v1632, %v1634
        %v1636 = vrot.slane %v1628, %v1635
        %v1638 = vunpack.c.l.s4 1966171168
        %v1639 = vunpack.c.0.s8 %v1638
        %v1640 = vlaneseq
        %v1641 = vshrl.u32 %v1640, 7
        %v1642 = vsub.s32 %v1639, %v1641
        %v1643 = vrot.slane %v1629, %v1642
        %1646 = vst.msk [vmem:[%s206 + $0x3] sm:$0x1] %vm592, %v1636
        %1647 = vst.msk [vmem:[%s206 + $0xb] sm:$0x1] %vm592, %v1643
        %v1648 = vld [vmem:[%s184 + $0x8] sm:$0x1]
        %v1649 = vld [vmem:[%s184 + $0x18] sm:$0x1]
        %v1650 = vld [vmem:[%s184 + $0x28] sm:$0x1]
        %v1651 = vld [vmem:[%s184 + $0x38] sm:$0x1]
        %v1652 = vld [vmem:[%s184 + $0x9] sm:$0x1]
        %v1653 = vld [vmem:[%s184 + $0x19] sm:$0x1]
        %v1654 = vld [vmem:[%s184 + $0x29] sm:$0x1]
        %v1655 = vld [vmem:[%s184 + $0x39] sm:$0x1]
        %v1660 = vrot.slane %v1649, 7
        %v1661 = vsel %vm242, %v1660, %v1648
        %v1662 = vrot.slane %v1650, 6
        %v1663 = vsel %vm245, %v1662, %v1661
        %v1664 = vrot.slane %v1651, 5
        %v1665 = vsel %vm248, %v1664, %v1663
        %v1666 = vsel %vm254, %v1665, 0
        %1668 = vmatprep.subr.mxu0 0.0
        %1669 = vmatpush1.msra.mxu0 0.0
        %1670 = vmatprep.subr.mxu0 0.0
        %1671 = vmatpush1.msra.mxu0 0.0
        %1672 = vmatprep.subr.mxu0 0.0
        %1673 = vmatpush1.msra.mxu0 0.0
        %1674 = vmatprep.subr.mxu0 0.0
        %1675 = vmatpush1.msra.mxu0 0.0
        %1676 = vmatprep.subr.mxu0 0.0
        %1677 = vmatpush1.msra.mxu0 0.0
        %1678 = vmatprep.subr.mxu0 0.0
        %1679 = vmatpush1.msra.mxu0 0.0
        %1680 = vmatprep.subr.mxu0 0.0
        %1681 = vmatpush1.msra.mxu0 0.0
        %1682 = vmatprep.subr.mxu0 0.0
        %1683 = vmatpush1.msra.mxu0 0.0
        %1684 = vmatprep.subr.mxu0 0.0
        %1685 = vmatpush1.msra.mxu0 0.0
        %1686 = vmatprep.subr.mxu0 0.0
        %1687 = vmatpush1.msra.mxu0 0.0
        %1688 = vmatprep.subr.mxu0 0.0
        %1689 = vmatpush1.msra.mxu0 0.0
        %1690 = vmatprep.subr.mxu0 0.0
        %1691 = vmatpush1.msra.mxu0 0.0
        %1692 = vmatprep.subr.mxu0 0.0
        %1693 = vmatpush1.msra.mxu0 0.0
        %1694 = vmatprep.subr.mxu0 0.0
        %1695 = vmatpush1.msra.mxu0 0.0
        %1696 = vmatprep.subr.mxu0 0.0
        %1697 = vmatpush1.msra.mxu0 0.0
        %1698 = vmatprep.subr.mxu0 0.0
        %1699 = vmatpush1.msra.mxu0 %v1666
        %1700 = vmatprep.subr.mxu0 0.0
        %1701 = vmatpush2.msra.mxu0 0.0
        %1702 = vmatprep.subr.mxu0 0.0
        %1703 = vmatpush2.msra.mxu0 0.0
        %1704 = vmatprep.subr.mxu0 0.0
        %1705 = vmatpush2.msra.mxu0 0.0
        %1706 = vmatprep.subr.mxu0 0.0
        %1707 = vmatpush2.msra.mxu0 0.0
        %1708 = vmatprep.subr.mxu0 0.0
        %1709 = vmatpush2.msra.mxu0 0.0
        %1710 = vmatprep.subr.mxu0 0.0
        %1711 = vmatpush2.msra.mxu0 0.0
        %1712 = vmatprep.subr.mxu0 0.0
        %1713 = vmatpush2.msra.mxu0 0.0
        %1714 = vmatprep.subr.mxu0 0.0
        %1715 = vmatpush2.msra.mxu0 0.0
        %1716 = vmatprep.subr.mxu0 0.0
        %1717 = vmatpush2.msra.mxu0 0.0
        %1718 = vmatprep.subr.mxu0 0.0
        %1719 = vmatpush2.msra.mxu0 0.0
        %1720 = vmatprep.subr.mxu0 0.0
        %1721 = vmatpush2.msra.mxu0 0.0
        %1722 = vmatprep.subr.mxu0 0.0
        %1723 = vmatpush2.msra.mxu0 0.0
        %1724 = vmatprep.subr.mxu0 0.0
        %1725 = vmatpush2.msra.mxu0 0.0
        %1726 = vmatprep.subr.mxu0 0.0
        %1727 = vmatpush2.msra.mxu0 0.0
        %1728 = vmatprep.subr.mxu0 0.0
        %1729 = vmatpush2.msra.mxu0 0.0
        %1730 = vmatprep.subr.mxu0 0.0
        %1731 = vmatpush2.msra.mxu0 0.0
        %1732 = vmatprep.mubr.f32.mxu0 0.0
        %1733 = vmatmul.mubr.f32.gmra.mxu0 %v252
        %v1734 = vpop.f32.mrf.mxu0
        %v1735 = vadd.f32 0.0, %v1734
        %v1736 = vpop.f32.mrf.mxu0
        %1737 = vdwg.mxu0
        %v1742 = vrot.slane %v1653, 7
        %v1743 = vsel %vm242, %v1742, %v1652
        %v1744 = vrot.slane %v1654, 6
        %v1745 = vsel %vm245, %v1744, %v1743
        %v1746 = vrot.slane %v1655, 5
        %v1747 = vsel %vm248, %v1746, %v1745
        %v1748 = vsel %vm254, %v1747, 0
        %1750 = vmatprep.subr.mxu0 0.0
        %1751 = vmatpush1.msra.mxu0 0.0
        %1752 = vmatprep.subr.mxu0 0.0
        %1753 = vmatpush1.msra.mxu0 0.0
        %1754 = vmatprep.subr.mxu0 0.0
        %1755 = vmatpush1.msra.mxu0 0.0
        %1756 = vmatprep.subr.mxu0 0.0
        %1757 = vmatpush1.msra.mxu0 0.0
        %1758 = vmatprep.subr.mxu0 0.0
        %1759 = vmatpush1.msra.mxu0 0.0
        %1760 = vmatprep.subr.mxu0 0.0
        %1761 = vmatpush1.msra.mxu0 0.0
        %1762 = vmatprep.subr.mxu0 0.0
        %1763 = vmatpush1.msra.mxu0 0.0
        %1764 = vmatprep.subr.mxu0 0.0
        %1765 = vmatpush1.msra.mxu0 0.0
        %1766 = vmatprep.subr.mxu0 0.0
        %1767 = vmatpush1.msra.mxu0 0.0
        %1768 = vmatprep.subr.mxu0 0.0
        %1769 = vmatpush1.msra.mxu0 0.0
        %1770 = vmatprep.subr.mxu0 0.0
        %1771 = vmatpush1.msra.mxu0 0.0
        %1772 = vmatprep.subr.mxu0 0.0
        %1773 = vmatpush1.msra.mxu0 0.0
        %1774 = vmatprep.subr.mxu0 0.0
        %1775 = vmatpush1.msra.mxu0 0.0
        %1776 = vmatprep.subr.mxu0 0.0
        %1777 = vmatpush1.msra.mxu0 0.0
        %1778 = vmatprep.subr.mxu0 0.0
        %1779 = vmatpush1.msra.mxu0 0.0
        %1780 = vmatprep.subr.mxu0 0.0
        %1781 = vmatpush1.msra.mxu0 %v1748
        %1782 = vmatprep.subr.mxu0 0.0
        %1783 = vmatpush2.msra.mxu0 0.0
        %1784 = vmatprep.subr.mxu0 0.0
        %1785 = vmatpush2.msra.mxu0 0.0
        %1786 = vmatprep.subr.mxu0 0.0
        %1787 = vmatpush2.msra.mxu0 0.0
        %1788 = vmatprep.subr.mxu0 0.0
        %1789 = vmatpush2.msra.mxu0 0.0
        %1790 = vmatprep.subr.mxu0 0.0
        %1791 = vmatpush2.msra.mxu0 0.0
        %1792 = vmatprep.subr.mxu0 0.0
        %1793 = vmatpush2.msra.mxu0 0.0
        %1794 = vmatprep.subr.mxu0 0.0
        %1795 = vmatpush2.msra.mxu0 0.0
        %1796 = vmatprep.subr.mxu0 0.0
        %1797 = vmatpush2.msra.mxu0 0.0
        %1798 = vmatprep.subr.mxu0 0.0
        %1799 = vmatpush2.msra.mxu0 0.0
        %1800 = vmatprep.subr.mxu0 0.0
        %1801 = vmatpush2.msra.mxu0 0.0
        %1802 = vmatprep.subr.mxu0 0.0
        %1803 = vmatpush2.msra.mxu0 0.0
        %1804 = vmatprep.subr.mxu0 0.0
        %1805 = vmatpush2.msra.mxu0 0.0
        %1806 = vmatprep.subr.mxu0 0.0
        %1807 = vmatpush2.msra.mxu0 0.0
        %1808 = vmatprep.subr.mxu0 0.0
        %1809 = vmatpush2.msra.mxu0 0.0
        %1810 = vmatprep.subr.mxu0 0.0
        %1811 = vmatpush2.msra.mxu0 0.0
        %1812 = vmatprep.subr.mxu0 0.0
        %1813 = vmatpush2.msra.mxu0 0.0
        %1814 = vmatprep.mubr.f32.mxu0 0.0
        %1815 = vmatmul.mubr.f32.gmra.mxu0 %v252
        %v1816 = vpop.f32.mrf.mxu0
        %v1817 = vadd.f32 0.0, %v1816
        %v1818 = vpop.f32.mrf.mxu0
        %1819 = vdwg.mxu0
        %v1820 = vmax.f32 %v1735, %v1817
        %v1822 = vsel %vm410, %v1820, 0
        %1824 = vmatprep.subr.mxu0 0.0
        %1825 = vmatpush1.msra.mxu0 0.0
        %1826 = vmatprep.subr.mxu0 0.0
        %1827 = vmatpush1.msra.mxu0 0.0
        %1828 = vmatprep.subr.mxu0 0.0
        %1829 = vmatpush1.msra.mxu0 0.0
        %1830 = vmatprep.subr.mxu0 0.0
        %1831 = vmatpush1.msra.mxu0 0.0
        %1832 = vmatprep.subr.mxu0 0.0
        %1833 = vmatpush1.msra.mxu0 0.0
        %1834 = vmatprep.subr.mxu0 0.0
        %1835 = vmatpush1.msra.mxu0 0.0
        %1836 = vmatprep.subr.mxu0 0.0
        %1837 = vmatpush1.msra.mxu0 0.0
        %1838 = vmatprep.subr.mxu0 0.0
        %1839 = vmatpush1.msra.mxu0 0.0
        %1840 = vmatprep.subr.mxu0 0.0
        %1841 = vmatpush1.msra.mxu0 0.0
        %1842 = vmatprep.subr.mxu0 0.0
        %1843 = vmatpush1.msra.mxu0 0.0
        %1844 = vmatprep.subr.mxu0 0.0
        %1845 = vmatpush1.msra.mxu0 0.0
        %1846 = vmatprep.subr.mxu0 0.0
        %1847 = vmatpush1.msra.mxu0 0.0
        %1848 = vmatprep.subr.mxu0 0.0
        %1849 = vmatpush1.msra.mxu0 0.0
        %1850 = vmatprep.subr.mxu0 0.0
        %1851 = vmatpush1.msra.mxu0 0.0
        %1852 = vmatprep.subr.mxu0 0.0
        %1853 = vmatpush1.msra.mxu0 %v221
        %1854 = vmatprep.subr.mxu0 0.0
        %1855 = vmatpush1.msra.mxu0 %v220
        %1856 = vmatprep.subr.mxu0 0.0
        %1857 = vmatpush2.msra.mxu0 0.0
        %1858 = vmatprep.subr.mxu0 0.0
        %1859 = vmatpush2.msra.mxu0 0.0
        %1860 = vmatprep.subr.mxu0 0.0
        %1861 = vmatpush2.msra.mxu0 0.0
        %1862 = vmatprep.subr.mxu0 0.0
        %1863 = vmatpush2.msra.mxu0 0.0
        %1864 = vmatprep.subr.mxu0 0.0
        %1865 = vmatpush2.msra.mxu0 0.0
        %1866 = vmatprep.subr.mxu0 0.0
        %1867 = vmatpush2.msra.mxu0 0.0
        %1868 = vmatprep.subr.mxu0 0.0
        %1869 = vmatpush2.msra.mxu0 0.0
        %1870 = vmatprep.subr.mxu0 0.0
        %1871 = vmatpush2.msra.mxu0 0.0
        %1872 = vmatprep.subr.mxu0 0.0
        %1873 = vmatpush2.msra.mxu0 0.0
        %1874 = vmatprep.subr.mxu0 0.0
        %1875 = vmatpush2.msra.mxu0 0.0
        %1876 = vmatprep.subr.mxu0 0.0
        %1877 = vmatpush2.msra.mxu0 0.0
        %1878 = vmatprep.subr.mxu0 0.0
        %1879 = vmatpush2.msra.mxu0 0.0
        %1880 = vmatprep.subr.mxu0 0.0
        %1881 = vmatpush2.msra.mxu0 0.0
        %1882 = vmatprep.subr.mxu0 0.0
        %1883 = vmatpush2.msra.mxu0 0.0
        %1884 = vmatprep.subr.mxu0 0.0
        %1885 = vmatpush2.msra.mxu0 0.0
        %1886 = vmatprep.subr.mxu0 0.0
        %1887 = vmatpush2.msra.mxu0 0.0
        %1888 = vmatprep.mubr.f32.mxu0 0.0
        %1889 = vmatmul.mubr.f32.gmra.mxu0 %v1822
        %v1890 = vpop.f32.mrf.mxu0
        %v1891 = vadd.f32 0.0, %v1890
        %v1892 = vpop.f32.mrf.mxu0
        %1893 = vdwg.mxu0
        %1894 = vmatprep.subr.mxu0 0.0
        %1895 = vmatpush1.msra.mxu0 0.0
        %1896 = vmatprep.subr.mxu0 0.0
        %1897 = vmatpush1.msra.mxu0 0.0
        %1898 = vmatprep.subr.mxu0 0.0
        %1899 = vmatpush1.msra.mxu0 0.0
        %1900 = vmatprep.subr.mxu0 0.0
        %1901 = vmatpush1.msra.mxu0 0.0
        %1902 = vmatprep.subr.mxu0 0.0
        %1903 = vmatpush1.msra.mxu0 0.0
        %1904 = vmatprep.subr.mxu0 0.0
        %1905 = vmatpush1.msra.mxu0 0.0
        %1906 = vmatprep.subr.mxu0 0.0
        %1907 = vmatpush1.msra.mxu0 0.0
        %1908 = vmatprep.subr.mxu0 0.0
        %1909 = vmatpush1.msra.mxu0 0.0
        %1910 = vmatprep.subr.mxu0 0.0
        %1911 = vmatpush1.msra.mxu0 0.0
        %1912 = vmatprep.subr.mxu0 0.0
        %1913 = vmatpush1.msra.mxu0 0.0
        %1914 = vmatprep.subr.mxu0 0.0
        %1915 = vmatpush1.msra.mxu0 0.0
        %1916 = vmatprep.subr.mxu0 0.0
        %1917 = vmatpush1.msra.mxu0 0.0
        %1918 = vmatprep.subr.mxu0 0.0
        %1919 = vmatpush1.msra.mxu0 0.0
        %1920 = vmatprep.subr.mxu0 0.0
        %1921 = vmatpush1.msra.mxu0 0.0
        %1922 = vmatprep.subr.mxu0 0.0
        %1923 = vmatpush1.msra.mxu0 %v228
        %1924 = vmatprep.subr.mxu0 0.0
        %1925 = vmatpush1.msra.mxu0 %v227
        %1926 = vmatprep.subr.mxu0 0.0
        %1927 = vmatpush2.msra.mxu0 0.0
        %1928 = vmatprep.subr.mxu0 0.0
        %1929 = vmatpush2.msra.mxu0 0.0
        %1930 = vmatprep.subr.mxu0 0.0
        %1931 = vmatpush2.msra.mxu0 0.0
        %1932 = vmatprep.subr.mxu0 0.0
        %1933 = vmatpush2.msra.mxu0 0.0
        %1934 = vmatprep.subr.mxu0 0.0
        %1935 = vmatpush2.msra.mxu0 0.0
        %1936 = vmatprep.subr.mxu0 0.0
        %1937 = vmatpush2.msra.mxu0 0.0
        %1938 = vmatprep.subr.mxu0 0.0
        %1939 = vmatpush2.msra.mxu0 0.0
        %1940 = vmatprep.subr.mxu0 0.0
        %1941 = vmatpush2.msra.mxu0 0.0
        %1942 = vmatprep.subr.mxu0 0.0
        %1943 = vmatpush2.msra.mxu0 0.0
        %1944 = vmatprep.subr.mxu0 0.0
        %1945 = vmatpush2.msra.mxu0 0.0
        %1946 = vmatprep.subr.mxu0 0.0
        %1947 = vmatpush2.msra.mxu0 0.0
        %1948 = vmatprep.subr.mxu0 0.0
        %1949 = vmatpush2.msra.mxu0 0.0
        %1950 = vmatprep.subr.mxu0 0.0
        %1951 = vmatpush2.msra.mxu0 0.0
        %1952 = vmatprep.subr.mxu0 0.0
        %1953 = vmatpush2.msra.mxu0 0.0
        %1954 = vmatprep.subr.mxu0 0.0
        %1955 = vmatpush2.msra.mxu0 0.0
        %1956 = vmatprep.subr.mxu0 0.0
        %1957 = vmatpush2.msra.mxu0 0.0
        %1958 = vmatprep.mubr.f32.mxu0 0.0
        %1959 = vmatmul.mubr.f32.gmra.mxu0 %v1822
        %v1960 = vpop.f32.mrf.mxu0
        %v1961 = vadd.f32 0.0, %v1960
        %v1962 = vpop.f32.mrf.mxu0
        %1963 = vdwg.mxu0
        %v1964 = vmax.f32 %v1891, %v1961
        %v1965 = vadd.f32 %v1964, %v558
        %v1966 = vxor.u32 %v1965, 2147483648
        %v1967 = vmul.f32 %v1966, 1.442695
        %v1968 = vpow.pop %v1967
        %v1969 = vadd.f32 %v1968, 1.0
        %v1970 = vrcp.pop %v1969
        %v1971 = vmul.f32 1.0, %v1970
        %v1974 = vunpack.c.l.s4 1966171168
        %v1975 = vunpack.c.0.s8 %v1974
        %v1976 = vlaneseq
        %v1977 = vshrl.u32 %v1976, 7
        %v1978 = vsub.s32 %v1975, %v1977
        %v1979 = vrot.slane %v1971, %v1978
        %v1980 = vcombine.high %v1979, %v1979
        %v1982 = vunpack.c.l.s4 1966171168
        %v1983 = vunpack.c.0.s8 %v1982
        %v1984 = vlaneseq
        %v1985 = vshrl.u32 %v1984, 7
        %v1986 = vsub.s32 %v1983, %v1985
        %v1987 = vrot.slane %v1979, %v1986
        %v1989 = vunpack.c.l.s4 1966171168
        %v1990 = vunpack.c.0.s8 %v1989
        %v1991 = vlaneseq
        %v1992 = vshrl.u32 %v1991, 7
        %v1993 = vsub.s32 %v1990, %v1992
        %v1994 = vrot.slane %v1980, %v1993
        %1997 = vst.msk [vmem:[%s206 + $0x4] sm:$0x1] %vm592, %v1987
        %1998 = vst.msk [vmem:[%s206 + $0xc] sm:$0x1] %vm592, %v1994
        %v1999 = vld [vmem:[%s184 + $0xa] sm:$0x1]
        %v2000 = vld [vmem:[%s184 + $0x1a] sm:$0x1]
        %v2001 = vld [vmem:[%s184 + $0x2a] sm:$0x1]
        %v2002 = vld [vmem:[%s184 + $0x3a] sm:$0x1]
        %v2003 = vld [vmem:[%s184 + $0xb] sm:$0x1]
        %v2004 = vld [vmem:[%s184 + $0x1b] sm:$0x1]
        %v2005 = vld [vmem:[%s184 + $0x2b] sm:$0x1]
        %v2006 = vld [vmem:[%s184 + $0x3b] sm:$0x1]
        %v2011 = vrot.slane %v2000, 7
        %v2012 = vsel %vm242, %v2011, %v1999
        %v2013 = vrot.slane %v2001, 6
        %v2014 = vsel %vm245, %v2013, %v2012
        %v2015 = vrot.slane %v2002, 5
        %v2016 = vsel %vm248, %v2015, %v2014
        %v2017 = vsel %vm254, %v2016, 0
        %2019 = vmatprep.subr.mxu0 0.0
        %2020 = vmatpush1.msra.mxu0 0.0
        %2021 = vmatprep.subr.mxu0 0.0
        %2022 = vmatpush1.msra.mxu0 0.0
        %2023 = vmatprep.subr.mxu0 0.0
        %2024 = vmatpush1.msra.mxu0 0.0
        %2025 = vmatprep.subr.mxu0 0.0
        %2026 = vmatpush1.msra.mxu0 0.0
        %2027 = vmatprep.subr.mxu0 0.0
        %2028 = vmatpush1.msra.mxu0 0.0
        %2029 = vmatprep.subr.mxu0 0.0
        %2030 = vmatpush1.msra.mxu0 0.0
        %2031 = vmatprep.subr.mxu0 0.0
        %2032 = vmatpush1.msra.mxu0 0.0
        %2033 = vmatprep.subr.mxu0 0.0
        %2034 = vmatpush1.msra.mxu0 0.0
        %2035 = vmatprep.subr.mxu0 0.0
        %2036 = vmatpush1.msra.mxu0 0.0
        %2037 = vmatprep.subr.mxu0 0.0
        %2038 = vmatpush1.msra.mxu0 0.0
        %2039 = vmatprep.subr.mxu0 0.0
        %2040 = vmatpush1.msra.mxu0 0.0
        %2041 = vmatprep.subr.mxu0 0.0
        %2042 = vmatpush1.msra.mxu0 0.0
        %2043 = vmatprep.subr.mxu0 0.0
        %2044 = vmatpush1.msra.mxu0 0.0
        %2045 = vmatprep.subr.mxu0 0.0
        %2046 = vmatpush1.msra.mxu0 0.0
        %2047 = vmatprep.subr.mxu0 0.0
        %2048 = vmatpush1.msra.mxu0 0.0
        %2049 = vmatprep.subr.mxu0 0.0
        %2050 = vmatpush1.msra.mxu0 %v2017
        %2051 = vmatprep.subr.mxu0 0.0
        %2052 = vmatpush2.msra.mxu0 0.0
        %2053 = vmatprep.subr.mxu0 0.0
        %2054 = vmatpush2.msra.mxu0 0.0
        %2055 = vmatprep.subr.mxu0 0.0
        %2056 = vmatpush2.msra.mxu0 0.0
        %2057 = vmatprep.subr.mxu0 0.0
        %2058 = vmatpush2.msra.mxu0 0.0
        %2059 = vmatprep.subr.mxu0 0.0
        %2060 = vmatpush2.msra.mxu0 0.0
        %2061 = vmatprep.subr.mxu0 0.0
        %2062 = vmatpush2.msra.mxu0 0.0
        %2063 = vmatprep.subr.mxu0 0.0
        %2064 = vmatpush2.msra.mxu0 0.0
        %2065 = vmatprep.subr.mxu0 0.0
        %2066 = vmatpush2.msra.mxu0 0.0
        %2067 = vmatprep.subr.mxu0 0.0
        %2068 = vmatpush2.msra.mxu0 0.0
        %2069 = vmatprep.subr.mxu0 0.0
        %2070 = vmatpush2.msra.mxu0 0.0
        %2071 = vmatprep.subr.mxu0 0.0
        %2072 = vmatpush2.msra.mxu0 0.0
        %2073 = vmatprep.subr.mxu0 0.0
        %2074 = vmatpush2.msra.mxu0 0.0
        %2075 = vmatprep.subr.mxu0 0.0
        %2076 = vmatpush2.msra.mxu0 0.0
        %2077 = vmatprep.subr.mxu0 0.0
        %2078 = vmatpush2.msra.mxu0 0.0
        %2079 = vmatprep.subr.mxu0 0.0
        %2080 = vmatpush2.msra.mxu0 0.0
        %2081 = vmatprep.subr.mxu0 0.0
        %2082 = vmatpush2.msra.mxu0 0.0
        %2083 = vmatprep.mubr.f32.mxu0 0.0
        %2084 = vmatmul.mubr.f32.gmra.mxu0 %v252
        %v2085 = vpop.f32.mrf.mxu0
        %v2086 = vadd.f32 0.0, %v2085
        %v2087 = vpop.f32.mrf.mxu0
        %2088 = vdwg.mxu0
        %v2093 = vrot.slane %v2004, 7
        %v2094 = vsel %vm242, %v2093, %v2003
        %v2095 = vrot.slane %v2005, 6
        %v2096 = vsel %vm245, %v2095, %v2094
        %v2097 = vrot.slane %v2006, 5
        %v2098 = vsel %vm248, %v2097, %v2096
        %v2099 = vsel %vm254, %v2098, 0
        %2101 = vmatprep.subr.mxu0 0.0
        %2102 = vmatpush1.msra.mxu0 0.0
        %2103 = vmatprep.subr.mxu0 0.0
        %2104 = vmatpush1.msra.mxu0 0.0
        %2105 = vmatprep.subr.mxu0 0.0
        %2106 = vmatpush1.msra.mxu0 0.0
        %2107 = vmatprep.subr.mxu0 0.0
        %2108 = vmatpush1.msra.mxu0 0.0
        %2109 = vmatprep.subr.mxu0 0.0
        %2110 = vmatpush1.msra.mxu0 0.0
        %2111 = vmatprep.subr.mxu0 0.0
        %2112 = vmatpush1.msra.mxu0 0.0
        %2113 = vmatprep.subr.mxu0 0.0
        %2114 = vmatpush1.msra.mxu0 0.0
        %2115 = vmatprep.subr.mxu0 0.0
        %2116 = vmatpush1.msra.mxu0 0.0
        %2117 = vmatprep.subr.mxu0 0.0
        %2118 = vmatpush1.msra.mxu0 0.0
        %2119 = vmatprep.subr.mxu0 0.0
        %2120 = vmatpush1.msra.mxu0 0.0
        %2121 = vmatprep.subr.mxu0 0.0
        %2122 = vmatpush1.msra.mxu0 0.0
        %2123 = vmatprep.subr.mxu0 0.0
        %2124 = vmatpush1.msra.mxu0 0.0
        %2125 = vmatprep.subr.mxu0 0.0
        %2126 = vmatpush1.msra.mxu0 0.0
        %2127 = vmatprep.subr.mxu0 0.0
        %2128 = vmatpush1.msra.mxu0 0.0
        %2129 = vmatprep.subr.mxu0 0.0
        %2130 = vmatpush1.msra.mxu0 0.0
        %2131 = vmatprep.subr.mxu0 0.0
        %2132 = vmatpush1.msra.mxu0 %v2099
        %2133 = vmatprep.subr.mxu0 0.0
        %2134 = vmatpush2.msra.mxu0 0.0
        %2135 = vmatprep.subr.mxu0 0.0
        %2136 = vmatpush2.msra.mxu0 0.0
        %2137 = vmatprep.subr.mxu0 0.0
        %2138 = vmatpush2.msra.mxu0 0.0
        %2139 = vmatprep.subr.mxu0 0.0
        %2140 = vmatpush2.msra.mxu0 0.0
        %2141 = vmatprep.subr.mxu0 0.0
        %2142 = vmatpush2.msra.mxu0 0.0
        %2143 = vmatprep.subr.mxu0 0.0
        %2144 = vmatpush2.msra.mxu0 0.0
        %2145 = vmatprep.subr.mxu0 0.0
        %2146 = vmatpush2.msra.mxu0 0.0
        %2147 = vmatprep.subr.mxu0 0.0
        %2148 = vmatpush2.msra.mxu0 0.0
        %2149 = vmatprep.subr.mxu0 0.0
        %2150 = vmatpush2.msra.mxu0 0.0
        %2151 = vmatprep.subr.mxu0 0.0
        %2152 = vmatpush2.msra.mxu0 0.0
        %2153 = vmatprep.subr.mxu0 0.0
        %2154 = vmatpush2.msra.mxu0 0.0
        %2155 = vmatprep.subr.mxu0 0.0
        %2156 = vmatpush2.msra.mxu0 0.0
        %2157 = vmatprep.subr.mxu0 0.0
        %2158 = vmatpush2.msra.mxu0 0.0
        %2159 = vmatprep.subr.mxu0 0.0
        %2160 = vmatpush2.msra.mxu0 0.0
        %2161 = vmatprep.subr.mxu0 0.0
        %2162 = vmatpush2.msra.mxu0 0.0
        %2163 = vmatprep.subr.mxu0 0.0
        %2164 = vmatpush2.msra.mxu0 0.0
        %2165 = vmatprep.mubr.f32.mxu0 0.0
        %2166 = vmatmul.mubr.f32.gmra.mxu0 %v252
        %v2167 = vpop.f32.mrf.mxu0
        %v2168 = vadd.f32 0.0, %v2167
        %v2169 = vpop.f32.mrf.mxu0
        %2170 = vdwg.mxu0
        %v2171 = vmax.f32 %v2086, %v2168
        %v2173 = vsel %vm410, %v2171, 0
        %2175 = vmatprep.subr.mxu0 0.0
        %2176 = vmatpush1.msra.mxu0 0.0
        %2177 = vmatprep.subr.mxu0 0.0
        %2178 = vmatpush1.msra.mxu0 0.0
        %2179 = vmatprep.subr.mxu0 0.0
        %2180 = vmatpush1.msra.mxu0 0.0
        %2181 = vmatprep.subr.mxu0 0.0
        %2182 = vmatpush1.msra.mxu0 0.0
        %2183 = vmatprep.subr.mxu0 0.0
        %2184 = vmatpush1.msra.mxu0 0.0
        %2185 = vmatprep.subr.mxu0 0.0
        %2186 = vmatpush1.msra.mxu0 0.0
        %2187 = vmatprep.subr.mxu0 0.0
        %2188 = vmatpush1.msra.mxu0 0.0
        %2189 = vmatprep.subr.mxu0 0.0
        %2190 = vmatpush1.msra.mxu0 0.0
        %2191 = vmatprep.subr.mxu0 0.0
        %2192 = vmatpush1.msra.mxu0 0.0
        %2193 = vmatprep.subr.mxu0 0.0
        %2194 = vmatpush1.msra.mxu0 0.0
        %2195 = vmatprep.subr.mxu0 0.0
        %2196 = vmatpush1.msra.mxu0 0.0
        %2197 = vmatprep.subr.mxu0 0.0
        %2198 = vmatpush1.msra.mxu0 0.0
        %2199 = vmatprep.subr.mxu0 0.0
        %2200 = vmatpush1.msra.mxu0 0.0
        %2201 = vmatprep.subr.mxu0 0.0
        %2202 = vmatpush1.msra.mxu0 0.0
        %2203 = vmatprep.subr.mxu0 0.0
        %2204 = vmatpush1.msra.mxu0 %v221
        %2205 = vmatprep.subr.mxu0 0.0
        %2206 = vmatpush1.msra.mxu0 %v220
        %2207 = vmatprep.subr.mxu0 0.0
        %2208 = vmatpush2.msra.mxu0 0.0
        %2209 = vmatprep.subr.mxu0 0.0
        %2210 = vmatpush2.msra.mxu0 0.0
        %2211 = vmatprep.subr.mxu0 0.0
        %2212 = vmatpush2.msra.mxu0 0.0
        %2213 = vmatprep.subr.mxu0 0.0
        %2214 = vmatpush2.msra.mxu0 0.0
        %2215 = vmatprep.subr.mxu0 0.0
        %2216 = vmatpush2.msra.mxu0 0.0
        %2217 = vmatprep.subr.mxu0 0.0
        %2218 = vmatpush2.msra.mxu0 0.0
        %2219 = vmatprep.subr.mxu0 0.0
        %2220 = vmatpush2.msra.mxu0 0.0
        %2221 = vmatprep.subr.mxu0 0.0
        %2222 = vmatpush2.msra.mxu0 0.0
        %2223 = vmatprep.subr.mxu0 0.0
        %2224 = vmatpush2.msra.mxu0 0.0
        %2225 = vmatprep.subr.mxu0 0.0
        %2226 = vmatpush2.msra.mxu0 0.0
        %2227 = vmatprep.subr.mxu0 0.0
        %2228 = vmatpush2.msra.mxu0 0.0
        %2229 = vmatprep.subr.mxu0 0.0
        %2230 = vmatpush2.msra.mxu0 0.0
        %2231 = vmatprep.subr.mxu0 0.0
        %2232 = vmatpush2.msra.mxu0 0.0
        %2233 = vmatprep.subr.mxu0 0.0
        %2234 = vmatpush2.msra.mxu0 0.0
        %2235 = vmatprep.subr.mxu0 0.0
        %2236 = vmatpush2.msra.mxu0 0.0
        %2237 = vmatprep.subr.mxu0 0.0
        %2238 = vmatpush2.msra.mxu0 0.0
        %2239 = vmatprep.mubr.f32.mxu0 0.0
        %2240 = vmatmul.mubr.f32.gmra.mxu0 %v2173
        %v2241 = vpop.f32.mrf.mxu0
        %v2242 = vadd.f32 0.0, %v2241
        %v2243 = vpop.f32.mrf.mxu0
        %2244 = vdwg.mxu0
        %2245 = vmatprep.subr.mxu0 0.0
        %2246 = vmatpush1.msra.mxu0 0.0
        %2247 = vmatprep.subr.mxu0 0.0
        %2248 = vmatpush1.msra.mxu0 0.0
        %2249 = vmatprep.subr.mxu0 0.0
        %2250 = vmatpush1.msra.mxu0 0.0
        %2251 = vmatprep.subr.mxu0 0.0
        %2252 = vmatpush1.msra.mxu0 0.0
        %2253 = vmatprep.subr.mxu0 0.0
        %2254 = vmatpush1.msra.mxu0 0.0
        %2255 = vmatprep.subr.mxu0 0.0
        %2256 = vmatpush1.msra.mxu0 0.0
        %2257 = vmatprep.subr.mxu0 0.0
        %2258 = vmatpush1.msra.mxu0 0.0
        %2259 = vmatprep.subr.mxu0 0.0
        %2260 = vmatpush1.msra.mxu0 0.0
        %2261 = vmatprep.subr.mxu0 0.0
        %2262 = vmatpush1.msra.mxu0 0.0
        %2263 = vmatprep.subr.mxu0 0.0
        %2264 = vmatpush1.msra.mxu0 0.0
        %2265 = vmatprep.subr.mxu0 0.0
        %2266 = vmatpush1.msra.mxu0 0.0
        %2267 = vmatprep.subr.mxu0 0.0
        %2268 = vmatpush1.msra.mxu0 0.0
        %2269 = vmatprep.subr.mxu0 0.0
        %2270 = vmatpush1.msra.mxu0 0.0
        %2271 = vmatprep.subr.mxu0 0.0
        %2272 = vmatpush1.msra.mxu0 0.0
        %2273 = vmatprep.subr.mxu0 0.0
        %2274 = vmatpush1.msra.mxu0 %v228
        %2275 = vmatprep.subr.mxu0 0.0
        %2276 = vmatpush1.msra.mxu0 %v227
        %2277 = vmatprep.subr.mxu0 0.0
        %2278 = vmatpush2.msra.mxu0 0.0
        %2279 = vmatprep.subr.mxu0 0.0
        %2280 = vmatpush2.msra.mxu0 0.0
        %2281 = vmatprep.subr.mxu0 0.0
        %2282 = vmatpush2.msra.mxu0 0.0
        %2283 = vmatprep.subr.mxu0 0.0
        %2284 = vmatpush2.msra.mxu0 0.0
        %2285 = vmatprep.subr.mxu0 0.0
        %2286 = vmatpush2.msra.mxu0 0.0
        %2287 = vmatprep.subr.mxu0 0.0
        %2288 = vmatpush2.msra.mxu0 0.0
        %2289 = vmatprep.subr.mxu0 0.0
        %2290 = vmatpush2.msra.mxu0 0.0
        %2291 = vmatprep.subr.mxu0 0.0
        %2292 = vmatpush2.msra.mxu0 0.0
        %2293 = vmatprep.subr.mxu0 0.0
        %2294 = vmatpush2.msra.mxu0 0.0
        %2295 = vmatprep.subr.mxu0 0.0
        %2296 = vmatpush2.msra.mxu0 0.0
        %2297 = vmatprep.subr.mxu0 0.0
        %2298 = vmatpush2.msra.mxu0 0.0
        %2299 = vmatprep.subr.mxu0 0.0
        %2300 = vmatpush2.msra.mxu0 0.0
        %2301 = vmatprep.subr.mxu0 0.0
        %2302 = vmatpush2.msra.mxu0 0.0
        %2303 = vmatprep.subr.mxu0 0.0
        %2304 = vmatpush2.msra.mxu0 0.0
        %2305 = vmatprep.subr.mxu0 0.0
        %2306 = vmatpush2.msra.mxu0 0.0
        %2307 = vmatprep.subr.mxu0 0.0
        %2308 = vmatpush2.msra.mxu0 0.0
        %2309 = vmatprep.mubr.f32.mxu0 0.0
        %2310 = vmatmul.mubr.f32.gmra.mxu0 %v2173
        %v2311 = vpop.f32.mrf.mxu0
        %v2312 = vadd.f32 0.0, %v2311
        %v2313 = vpop.f32.mrf.mxu0
        %2314 = vdwg.mxu0
        %v2315 = vmax.f32 %v2242, %v2312
        %v2316 = vadd.f32 %v2315, %v558
        %v2317 = vxor.u32 %v2316, 2147483648
        %v2318 = vmul.f32 %v2317, 1.442695
        %v2319 = vpow.pop %v2318
        %v2320 = vadd.f32 %v2319, 1.0
        %v2321 = vrcp.pop %v2320
        %v2322 = vmul.f32 1.0, %v2321
        %v2325 = vunpack.c.l.s4 1966171168
        %v2326 = vunpack.c.0.s8 %v2325
        %v2327 = vlaneseq
        %v2328 = vshrl.u32 %v2327, 7
        %v2329 = vsub.s32 %v2326, %v2328
        %v2330 = vrot.slane %v2322, %v2329
        %v2331 = vcombine.high %v2330, %v2330
        %v2333 = vunpack.c.l.s4 1966171168
        %v2334 = vunpack.c.0.s8 %v2333
        %v2335 = vlaneseq
        %v2336 = vshrl.u32 %v2335, 7
        %v2337 = vsub.s32 %v2334, %v2336
        %v2338 = vrot.slane %v2330, %v2337
        %v2340 = vunpack.c.l.s4 1966171168
        %v2341 = vunpack.c.0.s8 %v2340
        %v2342 = vlaneseq
        %v2343 = vshrl.u32 %v2342, 7
        %v2344 = vsub.s32 %v2341, %v2343
        %v2345 = vrot.slane %v2331, %v2344
        %2348 = vst.msk [vmem:[%s206 + $0x5] sm:$0x1] %vm592, %v2338
        %2349 = vst.msk [vmem:[%s206 + $0xd] sm:$0x1] %vm592, %v2345
        %v2350 = vld [vmem:[%s184 + $0xc] sm:$0x1]
        %v2351 = vld [vmem:[%s184 + $0x1c] sm:$0x1]
        %v2352 = vld [vmem:[%s184 + $0x2c] sm:$0x1]
        %v2353 = vld [vmem:[%s184 + $0x3c] sm:$0x1]
        %v2354 = vld [vmem:[%s184 + $0xd] sm:$0x1]
        %v2355 = vld [vmem:[%s184 + $0x1d] sm:$0x1]
        %v2356 = vld [vmem:[%s184 + $0x2d] sm:$0x1]
        %v2357 = vld [vmem:[%s184 + $0x3d] sm:$0x1]
        %v2362 = vrot.slane %v2351, 7
        %v2363 = vsel %vm242, %v2362, %v2350
        %v2364 = vrot.slane %v2352, 6
        %v2365 = vsel %vm245, %v2364, %v2363
        %v2366 = vrot.slane %v2353, 5
        %v2367 = vsel %vm248, %v2366, %v2365
        %v2368 = vsel %vm254, %v2367, 0
        %2370 = vmatprep.subr.mxu0 0.0
        %2371 = vmatpush1.msra.mxu0 0.0
        %2372 = vmatprep.subr.mxu0 0.0
        %2373 = vmatpush1.msra.mxu0 0.0
        %2374 = vmatprep.subr.mxu0 0.0
        %2375 = vmatpush1.msra.mxu0 0.0
        %2376 = vmatprep.subr.mxu0 0.0
        %2377 = vmatpush1.msra.mxu0 0.0
        %2378 = vmatprep.subr.mxu0 0.0
        %2379 = vmatpush1.msra.mxu0 0.0
        %2380 = vmatprep.subr.mxu0 0.0
        %2381 = vmatpush1.msra.mxu0 0.0
        %2382 = vmatprep.subr.mxu0 0.0
        %2383 = vmatpush1.msra.mxu0 0.0
        %2384 = vmatprep.subr.mxu0 0.0
        %2385 = vmatpush1.msra.mxu0 0.0
        %2386 = vmatprep.subr.mxu0 0.0
        %2387 = vmatpush1.msra.mxu0 0.0
        %2388 = vmatprep.subr.mxu0 0.0
        %2389 = vmatpush1.msra.mxu0 0.0
        %2390 = vmatprep.subr.mxu0 0.0
        %2391 = vmatpush1.msra.mxu0 0.0
        %2392 = vmatprep.subr.mxu0 0.0
        %2393 = vmatpush1.msra.mxu0 0.0
        %2394 = vmatprep.subr.mxu0 0.0
        %2395 = vmatpush1.msra.mxu0 0.0
        %2396 = vmatprep.subr.mxu0 0.0
        %2397 = vmatpush1.msra.mxu0 0.0
        %2398 = vmatprep.subr.mxu0 0.0
        %2399 = vmatpush1.msra.mxu0 0.0
        %2400 = vmatprep.subr.mxu0 0.0
        %2401 = vmatpush1.msra.mxu0 %v2368
        %2402 = vmatprep.subr.mxu0 0.0
        %2403 = vmatpush2.msra.mxu0 0.0
        %2404 = vmatprep.subr.mxu0 0.0
        %2405 = vmatpush2.msra.mxu0 0.0
        %2406 = vmatprep.subr.mxu0 0.0
        %2407 = vmatpush2.msra.mxu0 0.0
        %2408 = vmatprep.subr.mxu0 0.0
        %2409 = vmatpush2.msra.mxu0 0.0
        %2410 = vmatprep.subr.mxu0 0.0
        %2411 = vmatpush2.msra.mxu0 0.0
        %2412 = vmatprep.subr.mxu0 0.0
        %2413 = vmatpush2.msra.mxu0 0.0
        %2414 = vmatprep.subr.mxu0 0.0
        %2415 = vmatpush2.msra.mxu0 0.0
        %2416 = vmatprep.subr.mxu0 0.0
        %2417 = vmatpush2.msra.mxu0 0.0
        %2418 = vmatprep.subr.mxu0 0.0
        %2419 = vmatpush2.msra.mxu0 0.0
        %2420 = vmatprep.subr.mxu0 0.0
        %2421 = vmatpush2.msra.mxu0 0.0
        %2422 = vmatprep.subr.mxu0 0.0
        %2423 = vmatpush2.msra.mxu0 0.0
        %2424 = vmatprep.subr.mxu0 0.0
        %2425 = vmatpush2.msra.mxu0 0.0
        %2426 = vmatprep.subr.mxu0 0.0
        %2427 = vmatpush2.msra.mxu0 0.0
        %2428 = vmatprep.subr.mxu0 0.0
        %2429 = vmatpush2.msra.mxu0 0.0
        %2430 = vmatprep.subr.mxu0 0.0
        %2431 = vmatpush2.msra.mxu0 0.0
        %2432 = vmatprep.subr.mxu0 0.0
        %2433 = vmatpush2.msra.mxu0 0.0
        %2434 = vmatprep.mubr.f32.mxu0 0.0
        %2435 = vmatmul.mubr.f32.gmra.mxu0 %v252
        %v2436 = vpop.f32.mrf.mxu0
        %v2437 = vadd.f32 0.0, %v2436
        %v2438 = vpop.f32.mrf.mxu0
        %2439 = vdwg.mxu0
        %v2444 = vrot.slane %v2355, 7
        %v2445 = vsel %vm242, %v2444, %v2354
        %v2446 = vrot.slane %v2356, 6
        %v2447 = vsel %vm245, %v2446, %v2445
        %v2448 = vrot.slane %v2357, 5
        %v2449 = vsel %vm248, %v2448, %v2447
        %v2450 = vsel %vm254, %v2449, 0
        %2452 = vmatprep.subr.mxu0 0.0
        %2453 = vmatpush1.msra.mxu0 0.0
        %2454 = vmatprep.subr.mxu0 0.0
        %2455 = vmatpush1.msra.mxu0 0.0
        %2456 = vmatprep.subr.mxu0 0.0
        %2457 = vmatpush1.msra.mxu0 0.0
        %2458 = vmatprep.subr.mxu0 0.0
        %2459 = vmatpush1.msra.mxu0 0.0
        %2460 = vmatprep.subr.mxu0 0.0
        %2461 = vmatpush1.msra.mxu0 0.0
        %2462 = vmatprep.subr.mxu0 0.0
        %2463 = vmatpush1.msra.mxu0 0.0
        %2464 = vmatprep.subr.mxu0 0.0
        %2465 = vmatpush1.msra.mxu0 0.0
        %2466 = vmatprep.subr.mxu0 0.0
        %2467 = vmatpush1.msra.mxu0 0.0
        %2468 = vmatprep.subr.mxu0 0.0
        %2469 = vmatpush1.msra.mxu0 0.0
        %2470 = vmatprep.subr.mxu0 0.0
        %2471 = vmatpush1.msra.mxu0 0.0
        %2472 = vmatprep.subr.mxu0 0.0
        %2473 = vmatpush1.msra.mxu0 0.0
        %2474 = vmatprep.subr.mxu0 0.0
        %2475 = vmatpush1.msra.mxu0 0.0
        %2476 = vmatprep.subr.mxu0 0.0
        %2477 = vmatpush1.msra.mxu0 0.0
        %2478 = vmatprep.subr.mxu0 0.0
        %2479 = vmatpush1.msra.mxu0 0.0
        %2480 = vmatprep.subr.mxu0 0.0
        %2481 = vmatpush1.msra.mxu0 0.0
        %2482 = vmatprep.subr.mxu0 0.0
        %2483 = vmatpush1.msra.mxu0 %v2450
        %2484 = vmatprep.subr.mxu0 0.0
        %2485 = vmatpush2.msra.mxu0 0.0
        %2486 = vmatprep.subr.mxu0 0.0
        %2487 = vmatpush2.msra.mxu0 0.0
        %2488 = vmatprep.subr.mxu0 0.0
        %2489 = vmatpush2.msra.mxu0 0.0
        %2490 = vmatprep.subr.mxu0 0.0
        %2491 = vmatpush2.msra.mxu0 0.0
        %2492 = vmatprep.subr.mxu0 0.0
        %2493 = vmatpush2.msra.mxu0 0.0
        %2494 = vmatprep.subr.mxu0 0.0
        %2495 = vmatpush2.msra.mxu0 0.0
        %2496 = vmatprep.subr.mxu0 0.0
        %2497 = vmatpush2.msra.mxu0 0.0
        %2498 = vmatprep.subr.mxu0 0.0
        %2499 = vmatpush2.msra.mxu0 0.0
        %2500 = vmatprep.subr.mxu0 0.0
        %2501 = vmatpush2.msra.mxu0 0.0
        %2502 = vmatprep.subr.mxu0 0.0
        %2503 = vmatpush2.msra.mxu0 0.0
        %2504 = vmatprep.subr.mxu0 0.0
        %2505 = vmatpush2.msra.mxu0 0.0
        %2506 = vmatprep.subr.mxu0 0.0
        %2507 = vmatpush2.msra.mxu0 0.0
        %2508 = vmatprep.subr.mxu0 0.0
        %2509 = vmatpush2.msra.mxu0 0.0
        %2510 = vmatprep.subr.mxu0 0.0
        %2511 = vmatpush2.msra.mxu0 0.0
        %2512 = vmatprep.subr.mxu0 0.0
        %2513 = vmatpush2.msra.mxu0 0.0
        %2514 = vmatprep.subr.mxu0 0.0
        %2515 = vmatpush2.msra.mxu0 0.0
        %2516 = vmatprep.mubr.f32.mxu0 0.0
        %2517 = vmatmul.mubr.f32.gmra.mxu0 %v252
        %v2518 = vpop.f32.mrf.mxu0
        %v2519 = vadd.f32 0.0, %v2518
        %v2520 = vpop.f32.mrf.mxu0
        %2521 = vdwg.mxu0
        %v2522 = vmax.f32 %v2437, %v2519
        %v2524 = vsel %vm410, %v2522, 0
        %2526 = vmatprep.subr.mxu0 0.0
        %2527 = vmatpush1.msra.mxu0 0.0
        %2528 = vmatprep.subr.mxu0 0.0
        %2529 = vmatpush1.msra.mxu0 0.0
        %2530 = vmatprep.subr.mxu0 0.0
        %2531 = vmatpush1.msra.mxu0 0.0
        %2532 = vmatprep.subr.mxu0 0.0
        %2533 = vmatpush1.msra.mxu0 0.0
        %2534 = vmatprep.subr.mxu0 0.0
        %2535 = vmatpush1.msra.mxu0 0.0
        %2536 = vmatprep.subr.mxu0 0.0
        %2537 = vmatpush1.msra.mxu0 0.0
        %2538 = vmatprep.subr.mxu0 0.0
        %2539 = vmatpush1.msra.mxu0 0.0
        %2540 = vmatprep.subr.mxu0 0.0
        %2541 = vmatpush1.msra.mxu0 0.0
        %2542 = vmatprep.subr.mxu0 0.0
        %2543 = vmatpush1.msra.mxu0 0.0
        %2544 = vmatprep.subr.mxu0 0.0
        %2545 = vmatpush1.msra.mxu0 0.0
        %2546 = vmatprep.subr.mxu0 0.0
        %2547 = vmatpush1.msra.mxu0 0.0
        %2548 = vmatprep.subr.mxu0 0.0
        %2549 = vmatpush1.msra.mxu0 0.0
        %2550 = vmatprep.subr.mxu0 0.0
        %2551 = vmatpush1.msra.mxu0 0.0
        %2552 = vmatprep.subr.mxu0 0.0
        %2553 = vmatpush1.msra.mxu0 0.0
        %2554 = vmatprep.subr.mxu0 0.0
        %2555 = vmatpush1.msra.mxu0 %v221
        %2556 = vmatprep.subr.mxu0 0.0
        %2557 = vmatpush1.msra.mxu0 %v220
        %2558 = vmatprep.subr.mxu0 0.0
        %2559 = vmatpush2.msra.mxu0 0.0
        %2560 = vmatprep.subr.mxu0 0.0
        %2561 = vmatpush2.msra.mxu0 0.0
        %2562 = vmatprep.subr.mxu0 0.0
        %2563 = vmatpush2.msra.mxu0 0.0
        %2564 = vmatprep.subr.mxu0 0.0
        %2565 = vmatpush2.msra.mxu0 0.0
        %2566 = vmatprep.subr.mxu0 0.0
        %2567 = vmatpush2.msra.mxu0 0.0
        %2568 = vmatprep.subr.mxu0 0.0
        %2569 = vmatpush2.msra.mxu0 0.0
        %2570 = vmatprep.subr.mxu0 0.0
        %2571 = vmatpush2.msra.mxu0 0.0
        %2572 = vmatprep.subr.mxu0 0.0
        %2573 = vmatpush2.msra.mxu0 0.0
        %2574 = vmatprep.subr.mxu0 0.0
        %2575 = vmatpush2.msra.mxu0 0.0
        %2576 = vmatprep.subr.mxu0 0.0
        %2577 = vmatpush2.msra.mxu0 0.0
        %2578 = vmatprep.subr.mxu0 0.0
        %2579 = vmatpush2.msra.mxu0 0.0
        %2580 = vmatprep.subr.mxu0 0.0
        %2581 = vmatpush2.msra.mxu0 0.0
        %2582 = vmatprep.subr.mxu0 0.0
        %2583 = vmatpush2.msra.mxu0 0.0
        %2584 = vmatprep.subr.mxu0 0.0
        %2585 = vmatpush2.msra.mxu0 0.0
        %2586 = vmatprep.subr.mxu0 0.0
        %2587 = vmatpush2.msra.mxu0 0.0
        %2588 = vmatprep.subr.mxu0 0.0
        %2589 = vmatpush2.msra.mxu0 0.0
        %2590 = vmatprep.mubr.f32.mxu0 0.0
        %2591 = vmatmul.mubr.f32.gmra.mxu0 %v2524
        %v2592 = vpop.f32.mrf.mxu0
        %v2593 = vadd.f32 0.0, %v2592
        %v2594 = vpop.f32.mrf.mxu0
        %2595 = vdwg.mxu0
        %2596 = vmatprep.subr.mxu0 0.0
        %2597 = vmatpush1.msra.mxu0 0.0
        %2598 = vmatprep.subr.mxu0 0.0
        %2599 = vmatpush1.msra.mxu0 0.0
        %2600 = vmatprep.subr.mxu0 0.0
        %2601 = vmatpush1.msra.mxu0 0.0
        %2602 = vmatprep.subr.mxu0 0.0
        %2603 = vmatpush1.msra.mxu0 0.0
        %2604 = vmatprep.subr.mxu0 0.0
        %2605 = vmatpush1.msra.mxu0 0.0
        %2606 = vmatprep.subr.mxu0 0.0
        %2607 = vmatpush1.msra.mxu0 0.0
        %2608 = vmatprep.subr.mxu0 0.0
        %2609 = vmatpush1.msra.mxu0 0.0
        %2610 = vmatprep.subr.mxu0 0.0
        %2611 = vmatpush1.msra.mxu0 0.0
        %2612 = vmatprep.subr.mxu0 0.0
        %2613 = vmatpush1.msra.mxu0 0.0
        %2614 = vmatprep.subr.mxu0 0.0
        %2615 = vmatpush1.msra.mxu0 0.0
        %2616 = vmatprep.subr.mxu0 0.0
        %2617 = vmatpush1.msra.mxu0 0.0
        %2618 = vmatprep.subr.mxu0 0.0
        %2619 = vmatpush1.msra.mxu0 0.0
        %2620 = vmatprep.subr.mxu0 0.0
        %2621 = vmatpush1.msra.mxu0 0.0
        %2622 = vmatprep.subr.mxu0 0.0
        %2623 = vmatpush1.msra.mxu0 0.0
        %2624 = vmatprep.subr.mxu0 0.0
        %2625 = vmatpush1.msra.mxu0 %v228
        %2626 = vmatprep.subr.mxu0 0.0
        %2627 = vmatpush1.msra.mxu0 %v227
        %2628 = vmatprep.subr.mxu0 0.0
        %2629 = vmatpush2.msra.mxu0 0.0
        %2630 = vmatprep.subr.mxu0 0.0
        %2631 = vmatpush2.msra.mxu0 0.0
        %2632 = vmatprep.subr.mxu0 0.0
        %2633 = vmatpush2.msra.mxu0 0.0
        %2634 = vmatprep.subr.mxu0 0.0
        %2635 = vmatpush2.msra.mxu0 0.0
        %2636 = vmatprep.subr.mxu0 0.0
        %2637 = vmatpush2.msra.mxu0 0.0
        %2638 = vmatprep.subr.mxu0 0.0
        %2639 = vmatpush2.msra.mxu0 0.0
        %2640 = vmatprep.subr.mxu0 0.0
        %2641 = vmatpush2.msra.mxu0 0.0
        %2642 = vmatprep.subr.mxu0 0.0
        %2643 = vmatpush2.msra.mxu0 0.0
        %2644 = vmatprep.subr.mxu0 0.0
        %2645 = vmatpush2.msra.mxu0 0.0
        %2646 = vmatprep.subr.mxu0 0.0
        %2647 = vmatpush2.msra.mxu0 0.0
        %2648 = vmatprep.subr.mxu0 0.0
        %2649 = vmatpush2.msra.mxu0 0.0
        %2650 = vmatprep.subr.mxu0 0.0
        %2651 = vmatpush2.msra.mxu0 0.0
        %2652 = vmatprep.subr.mxu0 0.0
        %2653 = vmatpush2.msra.mxu0 0.0
        %2654 = vmatprep.subr.mxu0 0.0
        %2655 = vmatpush2.msra.mxu0 0.0
        %2656 = vmatprep.subr.mxu0 0.0
        %2657 = vmatpush2.msra.mxu0 0.0
        %2658 = vmatprep.subr.mxu0 0.0
        %2659 = vmatpush2.msra.mxu0 0.0
        %2660 = vmatprep.mubr.f32.mxu0 0.0
        %2661 = vmatmul.mubr.f32.gmra.mxu0 %v2524
        %v2662 = vpop.f32.mrf.mxu0
        %v2663 = vadd.f32 0.0, %v2662
        %v2664 = vpop.f32.mrf.mxu0
        %2665 = vdwg.mxu0
        %v2666 = vmax.f32 %v2593, %v2663
        %v2667 = vadd.f32 %v2666, %v558
        %v2668 = vxor.u32 %v2667, 2147483648
        %v2669 = vmul.f32 %v2668, 1.442695
        %v2670 = vpow.pop %v2669
        %v2671 = vadd.f32 %v2670, 1.0
        %v2672 = vrcp.pop %v2671
        %v2673 = vmul.f32 1.0, %v2672
        %v2676 = vunpack.c.l.s4 1966171168
        %v2677 = vunpack.c.0.s8 %v2676
        %v2678 = vlaneseq
        %v2679 = vshrl.u32 %v2678, 7
        %v2680 = vsub.s32 %v2677, %v2679
        %v2681 = vrot.slane %v2673, %v2680
        %v2682 = vcombine.high %v2681, %v2681
        %v2684 = vunpack.c.l.s4 1966171168
        %v2685 = vunpack.c.0.s8 %v2684
        %v2686 = vlaneseq
        %v2687 = vshrl.u32 %v2686, 7
        %v2688 = vsub.s32 %v2685, %v2687
        %v2689 = vrot.slane %v2681, %v2688
        %v2691 = vunpack.c.l.s4 1966171168
        %v2692 = vunpack.c.0.s8 %v2691
        %v2693 = vlaneseq
        %v2694 = vshrl.u32 %v2693, 7
        %v2695 = vsub.s32 %v2692, %v2694
        %v2696 = vrot.slane %v2682, %v2695
        %2699 = vst.msk [vmem:[%s206 + $0x6] sm:$0x1] %vm592, %v2689
        %2700 = vst.msk [vmem:[%s206 + $0xe] sm:$0x1] %vm592, %v2696
        %v2701 = vld [vmem:[%s184 + $0xe] sm:$0x1]
        %v2702 = vld [vmem:[%s184 + $0x1e] sm:$0x1]
        %v2703 = vld [vmem:[%s184 + $0x2e] sm:$0x1]
        %v2704 = vld [vmem:[%s184 + $0x3e] sm:$0x1]
        %v2705 = vld [vmem:[%s184 + $0xf] sm:$0x1]
        %v2706 = vld [vmem:[%s184 + $0x1f] sm:$0x1]
        %v2707 = vld [vmem:[%s184 + $0x2f] sm:$0x1]
        %v2708 = vld [vmem:[%s184 + $0x3f] sm:$0x1]
        %v2713 = vrot.slane %v2702, 7
        %v2714 = vsel %vm242, %v2713, %v2701
        %v2715 = vrot.slane %v2703, 6
        %v2716 = vsel %vm245, %v2715, %v2714
        %v2717 = vrot.slane %v2704, 5
        %v2718 = vsel %vm248, %v2717, %v2716
        %v2719 = vsel %vm254, %v2718, 0
        %2721 = vmatprep.subr.mxu0 0.0
        %2722 = vmatpush1.msra.mxu0 0.0
        %2723 = vmatprep.subr.mxu0 0.0
        %2724 = vmatpush1.msra.mxu0 0.0
        %2725 = vmatprep.subr.mxu0 0.0
        %2726 = vmatpush1.msra.mxu0 0.0
        %2727 = vmatprep.subr.mxu0 0.0
        %2728 = vmatpush1.msra.mxu0 0.0
        %2729 = vmatprep.subr.mxu0 0.0
        %2730 = vmatpush1.msra.mxu0 0.0
        %2731 = vmatprep.subr.mxu0 0.0
        %2732 = vmatpush1.msra.mxu0 0.0
        %2733 = vmatprep.subr.mxu0 0.0
        %2734 = vmatpush1.msra.mxu0 0.0
        %2735 = vmatprep.subr.mxu0 0.0
        %2736 = vmatpush1.msra.mxu0 0.0
        %2737 = vmatprep.subr.mxu0 0.0
        %2738 = vmatpush1.msra.mxu0 0.0
        %2739 = vmatprep.subr.mxu0 0.0
        %2740 = vmatpush1.msra.mxu0 0.0
        %2741 = vmatprep.subr.mxu0 0.0
        %2742 = vmatpush1.msra.mxu0 0.0
        %2743 = vmatprep.subr.mxu0 0.0
        %2744 = vmatpush1.msra.mxu0 0.0
        %2745 = vmatprep.subr.mxu0 0.0
        %2746 = vmatpush1.msra.mxu0 0.0
        %2747 = vmatprep.subr.mxu0 0.0
        %2748 = vmatpush1.msra.mxu0 0.0
        %2749 = vmatprep.subr.mxu0 0.0
        %2750 = vmatpush1.msra.mxu0 0.0
        %2751 = vmatprep.subr.mxu0 0.0
        %2752 = vmatpush1.msra.mxu0 %v2719
        %2753 = vmatprep.subr.mxu0 0.0
        %2754 = vmatpush2.msra.mxu0 0.0
        %2755 = vmatprep.subr.mxu0 0.0
        %2756 = vmatpush2.msra.mxu0 0.0
        %2757 = vmatprep.subr.mxu0 0.0
        %2758 = vmatpush2.msra.mxu0 0.0
        %2759 = vmatprep.subr.mxu0 0.0
        %2760 = vmatpush2.msra.mxu0 0.0
        %2761 = vmatprep.subr.mxu0 0.0
        %2762 = vmatpush2.msra.mxu0 0.0
        %2763 = vmatprep.subr.mxu0 0.0
        %2764 = vmatpush2.msra.mxu0 0.0
        %2765 = vmatprep.subr.mxu0 0.0
        %2766 = vmatpush2.msra.mxu0 0.0
        %2767 = vmatprep.subr.mxu0 0.0
        %2768 = vmatpush2.msra.mxu0 0.0
        %2769 = vmatprep.subr.mxu0 0.0
        %2770 = vmatpush2.msra.mxu0 0.0
        %2771 = vmatprep.subr.mxu0 0.0
        %2772 = vmatpush2.msra.mxu0 0.0
        %2773 = vmatprep.subr.mxu0 0.0
        %2774 = vmatpush2.msra.mxu0 0.0
        %2775 = vmatprep.subr.mxu0 0.0
        %2776 = vmatpush2.msra.mxu0 0.0
        %2777 = vmatprep.subr.mxu0 0.0
        %2778 = vmatpush2.msra.mxu0 0.0
        %2779 = vmatprep.subr.mxu0 0.0
        %2780 = vmatpush2.msra.mxu0 0.0
        %2781 = vmatprep.subr.mxu0 0.0
        %2782 = vmatpush2.msra.mxu0 0.0
        %2783 = vmatprep.subr.mxu0 0.0
        %2784 = vmatpush2.msra.mxu0 0.0
        %2785 = vmatprep.mubr.f32.mxu0 0.0
        %2786 = vmatmul.mubr.f32.gmra.mxu0 %v252
        %v2787 = vpop.f32.mrf.mxu0
        %v2788 = vadd.f32 0.0, %v2787
        %v2789 = vpop.f32.mrf.mxu0
        %2790 = vdwg.mxu0
        %v2795 = vrot.slane %v2706, 7
        %v2796 = vsel %vm242, %v2795, %v2705
        %v2797 = vrot.slane %v2707, 6
        %v2798 = vsel %vm245, %v2797, %v2796
        %v2799 = vrot.slane %v2708, 5
        %v2800 = vsel %vm248, %v2799, %v2798
        %v2801 = vsel %vm254, %v2800, 0
        %2803 = vmatprep.subr.mxu0 0.0
        %2804 = vmatpush1.msra.mxu0 0.0
        %2805 = vmatprep.subr.mxu0 0.0
        %2806 = vmatpush1.msra.mxu0 0.0
        %2807 = vmatprep.subr.mxu0 0.0
        %2808 = vmatpush1.msra.mxu0 0.0
        %2809 = vmatprep.subr.mxu0 0.0
        %2810 = vmatpush1.msra.mxu0 0.0
        %2811 = vmatprep.subr.mxu0 0.0
        %2812 = vmatpush1.msra.mxu0 0.0
        %2813 = vmatprep.subr.mxu0 0.0
        %2814 = vmatpush1.msra.mxu0 0.0
        %2815 = vmatprep.subr.mxu0 0.0
        %2816 = vmatpush1.msra.mxu0 0.0
        %2817 = vmatprep.subr.mxu0 0.0
        %2818 = vmatpush1.msra.mxu0 0.0
        %2819 = vmatprep.subr.mxu0 0.0
        %2820 = vmatpush1.msra.mxu0 0.0
        %2821 = vmatprep.subr.mxu0 0.0
        %2822 = vmatpush1.msra.mxu0 0.0
        %2823 = vmatprep.subr.mxu0 0.0
        %2824 = vmatpush1.msra.mxu0 0.0
        %2825 = vmatprep.subr.mxu0 0.0
        %2826 = vmatpush1.msra.mxu0 0.0
        %2827 = vmatprep.subr.mxu0 0.0
        %2828 = vmatpush1.msra.mxu0 0.0
        %2829 = vmatprep.subr.mxu0 0.0
        %2830 = vmatpush1.msra.mxu0 0.0
        %2831 = vmatprep.subr.mxu0 0.0
        %2832 = vmatpush1.msra.mxu0 0.0
        %2833 = vmatprep.subr.mxu0 0.0
        %2834 = vmatpush1.msra.mxu0 %v2801
        %2835 = vmatprep.subr.mxu0 0.0
        %2836 = vmatpush2.msra.mxu0 0.0
        %2837 = vmatprep.subr.mxu0 0.0
        %2838 = vmatpush2.msra.mxu0 0.0
        %2839 = vmatprep.subr.mxu0 0.0
        %2840 = vmatpush2.msra.mxu0 0.0
        %2841 = vmatprep.subr.mxu0 0.0
        %2842 = vmatpush2.msra.mxu0 0.0
        %2843 = vmatprep.subr.mxu0 0.0
        %2844 = vmatpush2.msra.mxu0 0.0
        %2845 = vmatprep.subr.mxu0 0.0
        %2846 = vmatpush2.msra.mxu0 0.0
        %2847 = vmatprep.subr.mxu0 0.0
        %2848 = vmatpush2.msra.mxu0 0.0
        %2849 = vmatprep.subr.mxu0 0.0
        %2850 = vmatpush2.msra.mxu0 0.0
        %2851 = vmatprep.subr.mxu0 0.0
        %2852 = vmatpush2.msra.mxu0 0.0
        %2853 = vmatprep.subr.mxu0 0.0
        %2854 = vmatpush2.msra.mxu0 0.0
        %2855 = vmatprep.subr.mxu0 0.0
        %2856 = vmatpush2.msra.mxu0 0.0
        %2857 = vmatprep.subr.mxu0 0.0
        %2858 = vmatpush2.msra.mxu0 0.0
        %2859 = vmatprep.subr.mxu0 0.0
        %2860 = vmatpush2.msra.mxu0 0.0
        %2861 = vmatprep.subr.mxu0 0.0
        %2862 = vmatpush2.msra.mxu0 0.0
        %2863 = vmatprep.subr.mxu0 0.0
        %2864 = vmatpush2.msra.mxu0 0.0
        %2865 = vmatprep.subr.mxu0 0.0
        %2866 = vmatpush2.msra.mxu0 0.0
        %2867 = vmatprep.mubr.f32.mxu0 0.0
        %2868 = vmatmul.mubr.f32.gmra.mxu0 %v252
        %v2869 = vpop.f32.mrf.mxu0
        %v2870 = vadd.f32 0.0, %v2869
        %v2871 = vpop.f32.mrf.mxu0
        %2872 = vdwg.mxu0
        %v2873 = vmax.f32 %v2788, %v2870
        %v2875 = vsel %vm410, %v2873, 0
        %2877 = vmatprep.subr.mxu0 0.0
        %2878 = vmatpush1.msra.mxu0 0.0
        %2879 = vmatprep.subr.mxu0 0.0
        %2880 = vmatpush1.msra.mxu0 0.0
        %2881 = vmatprep.subr.mxu0 0.0
        %2882 = vmatpush1.msra.mxu0 0.0
        %2883 = vmatprep.subr.mxu0 0.0
        %2884 = vmatpush1.msra.mxu0 0.0
        %2885 = vmatprep.subr.mxu0 0.0
        %2886 = vmatpush1.msra.mxu0 0.0
        %2887 = vmatprep.subr.mxu0 0.0
        %2888 = vmatpush1.msra.mxu0 0.0
        %2889 = vmatprep.subr.mxu0 0.0
        %2890 = vmatpush1.msra.mxu0 0.0
        %2891 = vmatprep.subr.mxu0 0.0
        %2892 = vmatpush1.msra.mxu0 0.0
        %2893 = vmatprep.subr.mxu0 0.0
        %2894 = vmatpush1.msra.mxu0 0.0
        %2895 = vmatprep.subr.mxu0 0.0
        %2896 = vmatpush1.msra.mxu0 0.0
        %2897 = vmatprep.subr.mxu0 0.0
        %2898 = vmatpush1.msra.mxu0 0.0
        %2899 = vmatprep.subr.mxu0 0.0
        %2900 = vmatpush1.msra.mxu0 0.0
        %2901 = vmatprep.subr.mxu0 0.0
        %2902 = vmatpush1.msra.mxu0 0.0
        %2903 = vmatprep.subr.mxu0 0.0
        %2904 = vmatpush1.msra.mxu0 0.0
        %2905 = vmatprep.subr.mxu0 0.0
        %2906 = vmatpush1.msra.mxu0 %v221
        %2907 = vmatprep.subr.mxu0 0.0
        %2908 = vmatpush1.msra.mxu0 %v220
        %2909 = vmatprep.subr.mxu0 0.0
        %2910 = vmatpush2.msra.mxu0 0.0
        %2911 = vmatprep.subr.mxu0 0.0
        %2912 = vmatpush2.msra.mxu0 0.0
        %2913 = vmatprep.subr.mxu0 0.0
        %2914 = vmatpush2.msra.mxu0 0.0
        %2915 = vmatprep.subr.mxu0 0.0
        %2916 = vmatpush2.msra.mxu0 0.0
        %2917 = vmatprep.subr.mxu0 0.0
        %2918 = vmatpush2.msra.mxu0 0.0
        %2919 = vmatprep.subr.mxu0 0.0
        %2920 = vmatpush2.msra.mxu0 0.0
        %2921 = vmatprep.subr.mxu0 0.0
        %2922 = vmatpush2.msra.mxu0 0.0
        %2923 = vmatprep.subr.mxu0 0.0
        %2924 = vmatpush2.msra.mxu0 0.0
        %2925 = vmatprep.subr.mxu0 0.0
        %2926 = vmatpush2.msra.mxu0 0.0
        %2927 = vmatprep.subr.mxu0 0.0
        %2928 = vmatpush2.msra.mxu0 0.0
        %2929 = vmatprep.subr.mxu0 0.0
        %2930 = vmatpush2.msra.mxu0 0.0
        %2931 = vmatprep.subr.mxu0 0.0
        %2932 = vmatpush2.msra.mxu0 0.0
        %2933 = vmatprep.subr.mxu0 0.0
        %2934 = vmatpush2.msra.mxu0 0.0
        %2935 = vmatprep.subr.mxu0 0.0
        %2936 = vmatpush2.msra.mxu0 0.0
        %2937 = vmatprep.subr.mxu0 0.0
        %2938 = vmatpush2.msra.mxu0 0.0
        %2939 = vmatprep.subr.mxu0 0.0
        %2940 = vmatpush2.msra.mxu0 0.0
        %2941 = vmatprep.mubr.f32.mxu0 0.0
        %2942 = vmatmul.mubr.f32.gmra.mxu0 %v2875
        %v2943 = vpop.f32.mrf.mxu0
        %v2944 = vadd.f32 0.0, %v2943
        %v2945 = vpop.f32.mrf.mxu0
        %2946 = vdwg.mxu0
        %2947 = vmatprep.subr.mxu0 0.0
        %2948 = vmatpush1.msra.mxu0 0.0
        %2949 = vmatprep.subr.mxu0 0.0
        %2950 = vmatpush1.msra.mxu0 0.0
        %2951 = vmatprep.subr.mxu0 0.0
        %2952 = vmatpush1.msra.mxu0 0.0
        %2953 = vmatprep.subr.mxu0 0.0
        %2954 = vmatpush1.msra.mxu0 0.0
        %2955 = vmatprep.subr.mxu0 0.0
        %2956 = vmatpush1.msra.mxu0 0.0
        %2957 = vmatprep.subr.mxu0 0.0
        %2958 = vmatpush1.msra.mxu0 0.0
        %2959 = vmatprep.subr.mxu0 0.0
        %2960 = vmatpush1.msra.mxu0 0.0
        %2961 = vmatprep.subr.mxu0 0.0
        %2962 = vmatpush1.msra.mxu0 0.0
        %2963 = vmatprep.subr.mxu0 0.0
        %2964 = vmatpush1.msra.mxu0 0.0
        %2965 = vmatprep.subr.mxu0 0.0
        %2966 = vmatpush1.msra.mxu0 0.0
        %2967 = vmatprep.subr.mxu0 0.0
        %2968 = vmatpush1.msra.mxu0 0.0
        %2969 = vmatprep.subr.mxu0 0.0
        %2970 = vmatpush1.msra.mxu0 0.0
        %2971 = vmatprep.subr.mxu0 0.0
        %2972 = vmatpush1.msra.mxu0 0.0
        %2973 = vmatprep.subr.mxu0 0.0
        %2974 = vmatpush1.msra.mxu0 0.0
        %2975 = vmatprep.subr.mxu0 0.0
        %2976 = vmatpush1.msra.mxu0 %v228
        %2977 = vmatprep.subr.mxu0 0.0
        %2978 = vmatpush1.msra.mxu0 %v227
        %2979 = vmatprep.subr.mxu0 0.0
        %2980 = vmatpush2.msra.mxu0 0.0
        %2981 = vmatprep.subr.mxu0 0.0
        %2982 = vmatpush2.msra.mxu0 0.0
        %2983 = vmatprep.subr.mxu0 0.0
        %2984 = vmatpush2.msra.mxu0 0.0
        %2985 = vmatprep.subr.mxu0 0.0
        %2986 = vmatpush2.msra.mxu0 0.0
        %2987 = vmatprep.subr.mxu0 0.0
        %2988 = vmatpush2.msra.mxu0 0.0
        %2989 = vmatprep.subr.mxu0 0.0
        %2990 = vmatpush2.msra.mxu0 0.0
        %2991 = vmatprep.subr.mxu0 0.0
        %2992 = vmatpush2.msra.mxu0 0.0
        %2993 = vmatprep.subr.mxu0 0.0
        %2994 = vmatpush2.msra.mxu0 0.0
        %2995 = vmatprep.subr.mxu0 0.0
        %2996 = vmatpush2.msra.mxu0 0.0
        %2997 = vmatprep.subr.mxu0 0.0
        %2998 = vmatpush2.msra.mxu0 0.0
        %2999 = vmatprep.subr.mxu0 0.0
        %3000 = vmatpush2.msra.mxu0 0.0
        %3001 = vmatprep.subr.mxu0 0.0
        %3002 = vmatpush2.msra.mxu0 0.0
        %3003 = vmatprep.subr.mxu0 0.0
        %3004 = vmatpush2.msra.mxu0 0.0
        %3005 = vmatprep.subr.mxu0 0.0
        %3006 = vmatpush2.msra.mxu0 0.0
        %3007 = vmatprep.subr.mxu0 0.0
        %3008 = vmatpush2.msra.mxu0 0.0
        %3009 = vmatprep.subr.mxu0 0.0
        %3010 = vmatpush2.msra.mxu0 0.0
        %3011 = vmatprep.mubr.f32.mxu0 0.0
        %3012 = vmatmul.mubr.f32.gmra.mxu0 %v2875
        %v3013 = vpop.f32.mrf.mxu0
        %v3014 = vadd.f32 0.0, %v3013
        %v3015 = vpop.f32.mrf.mxu0
        %3016 = vdwg.mxu0
        %v3017 = vmax.f32 %v2944, %v3014
        %v3018 = vadd.f32 %v3017, %v558
        %v3019 = vxor.u32 %v3018, 2147483648
        %v3020 = vmul.f32 %v3019, 1.442695
        %v3021 = vpow.pop %v3020
        %v3022 = vadd.f32 %v3021, 1.0
        %v3023 = vrcp.pop %v3022
        %v3024 = vmul.f32 1.0, %v3023
        %v3027 = vunpack.c.l.s4 1966171168
        %v3028 = vunpack.c.0.s8 %v3027
        %v3029 = vlaneseq
        %v3030 = vshrl.u32 %v3029, 7
        %v3031 = vsub.s32 %v3028, %v3030
        %v3032 = vrot.slane %v3024, %v3031
        %v3033 = vcombine.high %v3032, %v3032
        %v3035 = vunpack.c.l.s4 1966171168
        %v3036 = vunpack.c.0.s8 %v3035
        %v3037 = vlaneseq
        %v3038 = vshrl.u32 %v3037, 7
        %v3039 = vsub.s32 %v3036, %v3038
        %v3040 = vrot.slane %v3032, %v3039
        %v3042 = vunpack.c.l.s4 1966171168
        %v3043 = vunpack.c.0.s8 %v3042
        %v3044 = vlaneseq
        %v3045 = vshrl.u32 %v3044, 7
        %v3046 = vsub.s32 %v3043, %v3045
        %v3047 = vrot.slane %v3033, %v3046
        %3050 = vst.msk [vmem:[%s206 + $0x7] sm:$0x1] %vm592, %v3040
        %3051 = vst.msk [vmem:[%s206 + $0xf] sm:$0x1] %vm592, %v3047
        %s3052 = sand.u32 %s112, 1
        %s3053 = scalar_lea.sflag [#allocation4], %s3052
        %s3054 = sand.u32 %s112, 1
        %s3055 = smul.addr %s3054, 16
        %s3056 = scalar_lea.vmem [#allocation5], %s3055
        // Predicated region
        $region37: #{tpu_custom_call.1} parent=31 // pred_check
          %p3057 = pneg %p122
        $region38: #{tpu_custom_call.1} parent=31 // pred_check_branch
          %3059 = sbr.rel (%p3057) target = $region40
        $region39: #{tpu_custom_call.1} parent=31 // pred_region
          %s3061 = ssub.s32 256, 256
          %3062 = vsyncadd %s3053, %s3061
          %s3063 = smul.addr %s24, 2
          %s3064 = sadd.s32 %s25, %s3063
          %s3065 = smul.addr %s3064, 128
          %s3066 = scalar_lea.hbm %s3, %s3065
          %s3067 = sshll.u32 %s3056, 4
          %s3068 = int_to_ptr.vmem [resolvable:$true] %s3067
          %3073 = dma.vmem_to_hbm [thread:$0]  %s3068, 256, %s3066, %s3053, 128, 128, 8
        $region40: #{tpu_custom_call.1} parent=31 // pred_fallthru
          _
      $region32: #{tpu_custom_call.1} parent=5 // pred_fallthru
        _
      %p3074 = scmp.le.s32.totalorder 2, %s15
      // Predicated region
      $region41: #{tpu_custom_call.1} parent=5 // pred_check
        %p3075 = pneg %p3074
      $region42: #{tpu_custom_call.1} parent=5 // pred_check_branch
        %3077 = sbr.rel (%p3075) target = $region44
      $region43: #{tpu_custom_call.1} parent=5 // pred_region
        %s3078 = ssub.s32 %s15, 2
        // Predicated region
        $region45: #{tpu_custom_call.1} parent=43 // pred_check
          %p3079 = pneg %p128
        $region46: #{tpu_custom_call.1} parent=43 // pred_check_branch
          %3081 = sbr.rel (%p3079) target = $region48
        $region47: #{tpu_custom_call.1} parent=43 // pred_region
          %s3082 = sand.u32 %s113, 1
          %s3083 = scalar_lea.sflag [#allocation4], %s3082
          %s3084 = sand.u32 %s113, 1
          %s3085 = smul.addr %s3084, 16
          %s3086 = scalar_lea.vmem [#allocation5], %s3085
          %3087 = dma.done %s3083, 256
        $region48: #{tpu_custom_call.1} parent=43 // pred_fallthru
          _
      $region44: #{tpu_custom_call.1} parent=5 // pred_fallthru
        _
    $region6: #{tpu_custom_call.1} parent=1 // loop_footer
      %s19 = sadd.s32 1, %s15
    $region7: #{tpu_custom_call.1} parent=1 // loop_footer_branch
      %14 = sbr.rel target = $region3
    $region8: #{tpu_custom_call.1} parent=1 // loop_exit
      _
    %3088 = vsyncpa [#allocation3], 1
    %s3089 = scalar_lea.sflag [#allocation3], 1
    %3090 = vsyncpa %s3089, 1
    %3091 = vsyncpa [#allocation4], 1
    %s3092 = scalar_lea.sflag [#allocation4], 1
    %3093 = vsyncpa %s3092, 1

</llo_original>
